<compile_context>
chip_gen: v7x
topology: tpu7x:2x2x1
jax: 0.10.0
libtpu: 0.0.40
codegen_flags: <defaults>
</compile_context>

<pallas_src>
import functools

import numpy as np
import jax
import jax.numpy as jnp
from jax import lax
from jax.experimental import pallas as pl
from jax.experimental.pallas import tpu as pltpu


_GLO_PAD = 8                      # global-sim row lives at node 0; words start at row 8
_MXU_DTYPE = jnp.bfloat16         # set to jnp.float32 for bit-exact f32 matmuls


def _round_up(x, m):
    return ((x + m - 1) // m) * m


def _vmem_capacity_bytes():
    """Best-effort VMEM capacity query; conservative v7x-sized fallback."""
    try:
        get_info = getattr(pltpu, "get_tpu_info", None)
        if get_info is not None:
            cap = getattr(get_info(), "vmem_capacity_bytes", None)
            if cap:
                return int(cap)
    except Exception:
        pass
    return 64 * 1024 * 1024


# ----------------------------------------------------------------------------
# Pallas kernel: one caption (padded, masked via cap_lens) vs img_block images.
# ----------------------------------------------------------------------------
def _sim_kernel(lens_ref,                                   # SMEM (n_caption,) int32
                img_ref, img_glo_ref, cap_ref, cap_glo_ref,
                w_loc_ref, b_loc_ref, w_glo_ref, b_glo_ref,
                wqk_ref, bqk_ref, wg_ref, bg_ref,
                w_eval_ref, b_eval_ref,
                out_ref,
                *, sgr_step, smooth, glo_pad, mxu_dtype):
    ci = pl.program_id(1)                     # captions are the INNER grid axis
    n_word = lens_ref[ci]                     # valid #words of this caption

    img = img_ref[...]                        # (B, R, D)  image regions (f32)
    img_glo = img_glo_ref[:, 0, :]            # (B, D)     image globals
    cap = cap_ref[0]                          # (Lmax, D)  caption words (padded)
    cap_glo = cap_glo_ref[0]                  # (1, D)     caption global

    B, R, D = img.shape
    Lmax = cap.shape[0]
    S = w_loc_ref.shape[1]
    L1 = Lmax + glo_pad                       # node axis: [0]=global, [glo_pad:]=words

    img_mx = img.astype(mxu_dtype)

    # ---------------- SCAN attention: logits as ONE wide 2-D MXU matmul ------
    logits = lax.dot_general(img_mx.reshape(B * R, D), cap.astype(mxu_dtype),
                             (((1,), (1,)), ((), ())),
                             preferred_element_type=jnp.float32)        # (B*R, Lmax)
    attn = logits.reshape(B, R, Lmax)
    attn = jnp.where(attn >= 0, attn, 0.1 * attn) * smooth              # LeakyReLU(0.1)*smooth
    attn = attn - jnp.max(attn, axis=1, keepdims=True)                  # softmax over regions
    pa = jnp.exp(attn)                                                  # lane-dense exp
    attn_sm = pa * pl.reciprocal(jnp.sum(pa, axis=1, keepdims=True), approx=True)
    attn_t = jnp.swapaxes(attn_sm, 1, 2)                                # (B, Lmax, R) f32
    wctx = jnp.einsum('bwr,brd->bwd', attn_t.astype(mxu_dtype), img_mx,
                      preferred_element_type=jnp.float32)               # (B, Lmax, D)

    # ---------------- local / global similarity embeddings -------------------
    dif_loc = (wctx - cap[None]) ** 2                                   # implicit broadcast
    sim_loc = (jnp.dot(dif_loc.reshape(B * Lmax, D).astype(mxu_dtype), w_loc_ref[...],
                       preferred_element_type=jnp.float32)
               + b_loc_ref[...]).reshape(B, Lmax, S)
    dif_glo = (img_glo - cap_glo) ** 2                                  # (B, D)
    sim_glo = jnp.dot(dif_glo.astype(mxu_dtype), w_glo_ref[...],
                      preferred_element_type=jnp.float32) + b_glo_ref[...]   # (B, S)

    # Concat [sim_glo ; structural zero rows ; sim_loc] (sublane aligned).
    row = lax.broadcasted_iota(jnp.int32, (B, glo_pad, S), 1)
    glo_block = jnp.where(row == 0, sim_glo[:, None, :], 0.0)
    sim_emb = jnp.concatenate([glo_block, sim_loc], axis=1)             # (B, L1, S)

    # Key mask over the node axis: node 0 (global) + the first n_word word rows.
    kidx = lax.broadcasted_iota(jnp.int32, (1, 1, L1), 2)
    key_ok = jnp.logical_or(
        kidx == 0, jnp.logical_and(kidx >= glo_pad, kidx < glo_pad + n_word))

    # ---------------- SGR graph-reasoning steps ------------------------------
    for s in range(sgr_step):
        emb_mx = sim_emb.astype(mxu_dtype)                              # cast once / step
        qk = (jnp.dot(emb_mx.reshape(B * L1, S), wqk_ref[s],
                      preferred_element_type=jnp.float32)
              + bqk_ref[s:s + 1, :]).reshape(B, L1, 2 * S)
        q = qk[:, :, :S]
        k = qk[:, :, S:]
        e = jnp.einsum('bls,bms->blm', q.astype(mxu_dtype), k.astype(mxu_dtype),
                       preferred_element_type=jnp.float32)              # (B, L1, L1)
        e = jnp.where(key_ok, e, -1e30)                                 # mask padded keys
        e = e - jnp.max(e, axis=-1, keepdims=True)
        pe = jnp.exp(e)
        edge = pe * pl.reciprocal(jnp.sum(pe, axis=-1, keepdims=True), approx=True)
        sgr = jnp.einsum('blm,bms->bls', edge.astype(mxu_dtype), emb_mx,
                         preferred_element_type=jnp.float32)            # (B, L1, S)
        sim_emb = jnp.maximum(
            (jnp.dot(sgr.reshape(B * L1, S).astype(mxu_dtype), wg_ref[s],
                     preferred_element_type=jnp.float32)
             + bg_ref[s:s + 1, :]).reshape(B, L1, S), 0.0)

    # ---------------- final score: exact sigmoid, (1, B) store ----------------
    sim_vec = sim_emb[:, 0, :]                                          # (B, S)
    z = lax.dot_general(w_eval_ref[...], sim_vec.astype(mxu_dtype),
                        (((1,), (1,)), ((), ())),
                        preferred_element_type=jnp.float32) + b_eval_ref[...]   # (1, B)
    out_ref[0, 0] = 1.0 / (1.0 + jnp.exp(-z))


# ----------------------------------------------------------------------------
# Image-block sizing against a generation-aware VMEM budget.
# ----------------------------------------------------------------------------
def _choose_img_block(n_image, R, D, Lmax, S, budget_bytes):
    L1 = Lmax + _GLO_PAD
    itm = jnp.dtype(_MXU_DTYPE).itemsize
    per_img = (4 * (2 * R * D            # double-buffered f32 image-region block
                    + 2 * D              # double-buffered f32 image-global block
                    + 3 * R * Lmax       # attention logits / exp / softmax / transpose
                    + 2 * Lmax * D       # weighted context + squared diff
                    + Lmax * S           # sim_loc
                    + 2 * L1 * S         # sim_emb + relu(graph) output
                    + 2 * L1 * S         # fused q / k
                    + 3 * L1 * L1)       # edge logits / exp / normalized edge
               + itm * (R * D + Lmax * D + 2 * L1 * S))   # bf16 MXU-side copies
    if n_image * per_img <= budget_bytes:
        return n_image                   # whole image axis resident in one block
    blk = max(int(budget_bytes // per_img), 8)
    blk = (blk // 128) * 128 if blk >= 128 else (blk // 8) * 8   # lane / sublane aligned
    return max(8, min(blk, n_image))


# ----------------------------------------------------------------------------
# Plain-JAX glue: batched TextSA (tiny, masked by cap_lens).
# ----------------------------------------------------------------------------
def _text_sa_batched(cap_emb, cap_lens, p):
    # TODO(synk): TextSA Dropout(0.4) treated as identity (eval mode only).
    n_cap, Lmax, D = cap_emb.shape
    wmask = jnp.arange(Lmax)[None, :] < cap_lens[:, None]               # (n_cap, Lmax)
    cnt = jnp.maximum(cap_lens, 1).astype(jnp.float32)[:, None]
    cap_ave = jnp.where(wmask[..., None], cap_emb, 0.0).sum(axis=1) / cnt
    l_emb = jnp.tanh(cap_emb @ p["tsa_wl"] + p["tsa_bl"])               # (n_cap, Lmax, D)
    g_emb = jnp.tanh(cap_ave @ p["tsa_wg"] + p["tsa_bg"])               # (n_cap, D)
    common = l_emb * g_emb[:, None, :]
    w = (common @ p["tsa_wc"] + p["tsa_bc"])[..., 0]                    # (n_cap, Lmax)
    w = jnp.where(wmask, w, -1e30)
    w = jax.nn.softmax(w, axis=1)
    return jnp.sum(w[..., None] * cap_emb, axis=1)                      # (n_cap, D)


# ----------------------------------------------------------------------------
# Host wrapper: one fused pallas_call over (image blocks, captions).
# ----------------------------------------------------------------------------
def encoder_similarity(img_emb, code_global_emb, cap_emb, cap_lens, params,
                       sgr_step, smooth=9.0):
    """Returns sim_all of shape (n_image, n_caption), matching the PyTorch module."""
    # TODO(synk): only the module_name == 'SGR' branch is implemented (no SAF path).
    img_emb = jnp.asarray(img_emb, jnp.float32)
    code_global_emb = jnp.asarray(code_global_emb, jnp.float32)
    cap_emb = jnp.asarray(cap_emb, jnp.float32)
    cap_lens = jnp.asarray(cap_lens, jnp.int32)

    n_image, R, D = img_emb.shape
    n_caption, L, _ = cap_emb.shape
    S = params["w_loc"].shape[1]

    # Static word-axis padding to a multiple of 8 (sublane friendly, no recompiles).
    Lmax = _round_up(max(L, 1), 8)
    if Lmax != L:
        cap_emb = jnp.pad(cap_emb, ((0, 0), (0, Lmax - L), (0, 0)))

    # Global caption embedding (TextSA) - tiny, batched plain JAX.
    cap_glo = _text_sa_batched(cap_emb, cap_lens, params)[:, None, :]   # (n_caption, 1, D)

    # Generation-aware VMEM budgeting (v5e/v6e: 128 MiB, v7x: 64 MiB, fallback 64 MiB).
    vmem_cap = _vmem_capacity_bytes()
    vmem_limit = min(int(vmem_cap * 3 // 4), 100 * 1024 * 1024)
    itm = jnp.dtype(_MXU_DTYPE).itemsize
    weight_bytes = 2 * ((2 * D * S + 3 * sgr_step * S * S + S) * itm
                        + (2 * S + 3 * sgr_step * S + 1) * 4)           # double-buffered
    block_budget = max(int(vmem_cap * 3 // 10) - weight_bytes, 4 * 1024 * 1024)

    img_block = _choose_img_block(n_image, R, D, Lmax, S, block_budget)
    n_img_pad = _round_up(n_image, img_block)
    if n_img_pad != n_image:
        img_emb = jnp.pad(img_emb, ((0, n_img_pad - n_image), (0, 0), (0, 0)))
        code_global_emb = jnp.pad(code_global_emb, ((0, n_img_pad - n_image), (0, 0)))
    img_glo = code_global_emb[:, None, :]                               # (n_img_pad, 1, D)
    n_blocks = n_img_pad // img_block

    # bf16 weights at the MXU boundary; biases and accumulation stay f32.
    w_loc = params["w_loc"].astype(_MXU_DTYPE)
    w_glo = params["w_glo"].astype(_MXU_DTYPE)
    wqk = params["wqk"].astype(_MXU_DTYPE)
    wg = params["wg"].astype(_MXU_DTYPE)
    w_eval = params["w_eval"].astype(_MXU_DTYPE)

    kernel = functools.partial(_sim_kernel, sgr_step=sgr_step, smooth=smooth,
                               glo_pad=_GLO_PAD, mxu_dtype=_MXU_DTYPE)

    def fullspec(shape):
        # Constant block index -> DMA'd only once, VMEM-resident for the whole grid.
        # TODO(synk): pipeline_mode=pl.Buffered(1) would drop the second buffer copy;
        # skipped for portability across jax versions (weights are small anyway).
        nd = len(shape)
        return pl.BlockSpec(shape, lambda ii, ci, lens, _nd=nd: (0,) * _nd)

    grid_spec = pltpu.PrefetchScalarGridSpec(
        num_scalar_prefetch=1,
        grid=(n_blocks, n_caption),            # images OUTER -> resident per caption sweep
        in_specs=[
            pl.BlockSpec((img_block, R, D), lambda ii, ci, lens: (ii, 0, 0)),   # image regions
            pl.BlockSpec((img_block, 1, D), lambda ii, ci, lens: (ii, 0, 0)),   # image globals
            pl.BlockSpec((1, Lmax, D), lambda ii, ci, lens: (ci, 0, 0)),        # caption words
            pl.BlockSpec((1, 1, D), lambda ii, ci, lens: (ci, 0, 0)),           # caption global
            fullspec((D, S)), fullspec((1, S)),                                 # sim_tranloc_w
            fullspec((D, S)), fullspec((1, S)),                                 # sim_tranglo_w
            fullspec((sgr_step, S, 2 * S)), fullspec((sgr_step, 2 * S)),        # fused q/k
            fullspec((sgr_step, S, S)), fullspec((sgr_step, S)),                # sim_graph_w
            fullspec((1, S)), fullspec((1, 1)),                                 # sim_eval_w
        ],
        out_specs=pl.BlockSpec((1, 1, 1, img_block),
                               lambda ii, ci, lens: (ci, ii, 0, 0)),
    )

    out = pl.pallas_call(
        kernel,
        out_shape=jax.ShapeDtypeStruct((n_caption, n_blocks, 1, img_block), jnp.float32),
        grid_spec=grid_spec,
        compiler_params=pltpu.CompilerParams(
            dimension_semantics=("parallel", "parallel"),
            vmem_limit_bytes=int(vmem_limit)),
    )(cap_lens, img_emb, img_glo, cap_emb, cap_glo,
      w_loc, params["b_loc"], w_glo, params["b_glo"],
      wqk, params["bqk"], wg, params["bg"],
      w_eval, params["b_eval"])

    sim = out.reshape(n_caption, n_blocks * img_block)[:, :n_image]
    return jnp.transpose(sim)                               # (n_image, n_caption)


# ----------------------------------------------------------------------------
# Deterministic parameter init (shapes / init scheme from the PyTorch __init__).
# ----------------------------------------------------------------------------
def init_params(key, D, S, sgr_step):
    keys = iter(jax.random.split(key, 64))

    def lin(fan_in, fan_out):
        r = float(np.sqrt(6.0) / np.sqrt(fan_in + fan_out))
        w = jax.random.uniform(next(keys), (fan_in, fan_out), jnp.float32, -r, r)
        return w, jnp.zeros((1, fan_out), jnp.float32)

    p = {}
    p["tsa_wl"], p["tsa_bl"] = lin(D, D)          # TextSA embedding_local
    p["tsa_wg"], p["tsa_bg"] = lin(D, D)          # TextSA embedding_global
    p["tsa_wc"], p["tsa_bc"] = lin(D, 1)          # TextSA embedding_common
    p["w_loc"], p["b_loc"] = lin(D, S)            # sim_tranloc_w
    p["w_glo"], p["b_glo"] = lin(D, S)            # sim_tranglo_w

    r_ev = float(np.sqrt(6.0) / np.sqrt(S + 1))   # sim_eval_w stored as (1, S) (torch layout)
    p["w_eval"] = jax.random.uniform(next(keys), (1, S), jnp.float32, -r_ev, r_ev)
    p["b_eval"] = jnp.zeros((1, 1), jnp.float32)

    r_ss = float(np.sqrt(6.0) / np.sqrt(S + S))

    def stack(n, shape):
        return jnp.stack([jax.random.uniform(next(keys), shape, jnp.float32, -r_ss, r_ss)
                          for _ in range(n)])

    p["wqk"] = stack(sgr_step, (S, 2 * S))        # GraphReasoning query & key fused
    p["bqk"] = jnp.zeros((sgr_step, 2 * S), jnp.float32)
    p["wg"] = stack(sgr_step, (S, S))             # GraphReasoning sim_graph
    p["bg"] = jnp.zeros((sgr_step, S), jnp.float32)
    return p


if __name__ == "__main__":
    key = jax.random.PRNGKey(0)
    D, S, R = 64, 32, 16                 # embed_size, sim_dim, #regions
    n_image, n_caption, L = 8, 4, 12
    sgr_step = 2
    k1, k2, k3, k4 = jax.random.split(key, 4)

    img_emb = jax.random.normal(k1, (n_image, R, D), jnp.float32)
    code_global_emb = jax.random.normal(k2, (n_image, D), jnp.float32)
    cap_emb = jax.random.normal(k3, (n_caption, L, D), jnp.float32)
    cap_lens = jnp.array([12, 9, 7, 10], jnp.int32)

    params = init_params(k4, D, S, sgr_step)

    run = jax.jit(functools.partial(encoder_similarity, sgr_step=sgr_step))
    sim_all = jax.block_until_ready(run(img_emb, code_global_emb, cap_emb,
                                        cap_lens, params))
    assert sim_all.shape == (n_image, n_caption)
    assert bool(jnp.all(jnp.isfinite(sim_all)))
    assert bool(jnp.all((sim_all > 0.0) & (sim_all < 1.0)))   # sigmoid range
    print("KERNEL_OK")
</pallas_src>

<mosaic_0001>
module attributes {stable_mosaic.version = 11 : i64} {
  func.func @_sim_kernel(%arg0: i32, %arg1: i32, %arg2: memref<4xi32, #tpu.memory_space<smem>>, %arg3: memref<8x16x64xf32, #tpu.memory_space<vmem>>, %arg4: memref<8x1x64xf32, #tpu.memory_space<vmem>>, %arg5: memref<1x16x64xf32, #tpu.memory_space<vmem>>, %arg6: memref<1x1x64xf32, #tpu.memory_space<vmem>>, %arg7: memref<64x32xbf16, #tpu.memory_space<vmem>>, %arg8: memref<1x32xf32, #tpu.memory_space<vmem>>, %arg9: memref<64x32xbf16, #tpu.memory_space<vmem>>, %arg10: memref<1x32xf32, #tpu.memory_space<vmem>>, %arg11: memref<2x32x64xbf16, #tpu.memory_space<vmem>>, %arg12: memref<2x64xf32, #tpu.memory_space<vmem>>, %arg13: memref<2x32x32xbf16, #tpu.memory_space<vmem>>, %arg14: memref<2x32xf32, #tpu.memory_space<vmem>>, %arg15: memref<1x32xbf16, #tpu.memory_space<vmem>>, %arg16: memref<1x1xf32, #tpu.memory_space<vmem>>, %arg17: memref<1x1x1x8xf32, #tpu.memory_space<vmem>>) attributes {dimension_semantics = [#tpu.dimension_semantics<parallel>, #tpu.dimension_semantics<parallel>], iteration_bounds = array<i64: 1, 4>, scalar_prefetch = 1 : i64, scratch_operands = 0 : i64, tpu.core_type = #tpu.core_type<tc>, window_params = [{transform_indices = @transform_0, window_bounds = array<i64: 8, 16, 64>}, {transform_indices = @transform_1, window_bounds = array<i64: 8, 1, 64>}, {transform_indices = @transform_2, window_bounds = array<i64: 1, 16, 64>}, {transform_indices = @transform_3, window_bounds = array<i64: 1, 1, 64>}, {pipeline_mode = #tpu.pipeline_mode<synchronous>, transform_indices = @transform_4, window_bounds = array<i64: 64, 32>}, {pipeline_mode = #tpu.pipeline_mode<synchronous>, transform_indices = @transform_5, window_bounds = array<i64: 1, 32>}, {pipeline_mode = #tpu.pipeline_mode<synchronous>, transform_indices = @transform_6, window_bounds = array<i64: 64, 32>}, {pipeline_mode = #tpu.pipeline_mode<synchronous>, transform_indices = @transform_7, window_bounds = array<i64: 1, 32>}, {pipeline_mode = #tpu.pipeline_mode<synchronous>, transform_indices = @transform_8, window_bounds = array<i64: 2, 32, 64>}, {pipeline_mode = #tpu.pipeline_mode<synchronous>, transform_indices = @transform_9, window_bounds = array<i64: 2, 64>}, {pipeline_mode = #tpu.pipeline_mode<synchronous>, transform_indices = @transform_10, window_bounds = array<i64: 2, 32, 32>}, {pipeline_mode = #tpu.pipeline_mode<synchronous>, transform_indices = @transform_11, window_bounds = array<i64: 2, 32>}, {pipeline_mode = #tpu.pipeline_mode<synchronous>, transform_indices = @transform_12, window_bounds = array<i64: 1, 32>}, {pipeline_mode = #tpu.pipeline_mode<synchronous>, transform_indices = @transform_13, window_bounds = array<i64: 1, 1>}, {transform_indices = @transform_14, window_bounds = array<i64: 1, 1, 1, 8>}]} {
    %0 = arith.index_cast %arg1 : i32 to index
    %1 = memref.load %arg2[%0] : memref<4xi32, #tpu.memory_space<smem>>
    %c0 = arith.constant 0 : index
    %c0_0 = arith.constant 0 : index
    %c0_1 = arith.constant 0 : index
    %2 = vector.load %arg3[%c0, %c0_0, %c0_1] : memref<8x16x64xf32, #tpu.memory_space<vmem>>, vector<8x16x64xf32>
    %c0_2 = arith.constant 0 : index
    %c0_3 = arith.constant 0 : index
    %c0_4 = arith.constant 0 : index
    %3 = vector.load %arg4[%c0_2, %c0_3, %c0_4] : memref<8x1x64xf32, #tpu.memory_space<vmem>>, vector<8x1x64xf32>
    %4 = vector.shape_cast %3 : vector<8x1x64xf32> to vector<8x64xf32>
    %c0_5 = arith.constant 0 : index
    %c0_6 = arith.constant 0 : index
    %c0_7 = arith.constant 0 : index
    %5 = vector.load %arg5[%c0_5, %c0_6, %c0_7] : memref<1x16x64xf32, #tpu.memory_space<vmem>>, vector<1x16x64xf32>
    %6 = vector.shape_cast %5 : vector<1x16x64xf32> to vector<16x64xf32>
    %c0_8 = arith.constant 0 : index
    %c0_9 = arith.constant 0 : index
    %c0_10 = arith.constant 0 : index
    %7 = vector.load %arg6[%c0_8, %c0_9, %c0_10] : memref<1x1x64xf32, #tpu.memory_space<vmem>>, vector<1x1x64xf32>
    %8 = vector.shape_cast %7 : vector<1x1x64xf32> to vector<1x64xf32>
    %9 = arith.truncf %2 : vector<8x16x64xf32> to vector<8x16x64xbf16>
    %10 = vector.shape_cast %9 : vector<8x16x64xbf16> to vector<128x64xbf16>
    %11 = arith.truncf %6 : vector<16x64xf32> to vector<16x64xbf16>
    %cst = arith.constant dense<0.000000e+00> : vector<128x16xf32>
    %12 = tpu.matmul %10, %11, %cst {dimension_numbers = #tpu.dot_dimension_numbers<[1], [1], [0], [0], [0, 0, 1, 0], [], []>} : vector<128x64xbf16>, vector<16x64xbf16>, vector<128x16xf32> -> vector<128x16xf32>
    %13 = vector.shape_cast %12 : vector<128x16xf32> to vector<8x16x16xf32>
    %cst_11 = arith.constant 0.000000e+00 : f32
    %14 = vector.broadcast %cst_11 : f32 to vector<8x16x16xf32>
    %15 = arith.cmpf oge, %13, %14 : vector<8x16x16xf32>
    %cst_12 = arith.constant 1.000000e-01 : f32
    %16 = vector.broadcast %cst_12 : f32 to vector<8x16x16xf32>
    %17 = arith.mulf %16, %13 : vector<8x16x16xf32>
    %18 = arith.select %15, %13, %17 : vector<8x16x16xi1>, vector<8x16x16xf32>
    %cst_13 = arith.constant 9.000000e+00 : f32
    %19 = vector.broadcast %cst_13 : f32 to vector<8x16x16xf32>
    %20 = arith.mulf %18, %19 : vector<8x16x16xf32>
    %cst_14 = arith.constant dense<0xFF800000> : vector<8x16xf32>
    %21 = vector.multi_reduction <maximumf>, %20, %cst_14 [1] : vector<8x16x16xf32> to vector<8x16xf32>
    %22 = vector.shape_cast %21 : vector<8x16xf32> to vector<8x1x16xf32>
    %23 = vector.broadcast %22 : vector<8x1x16xf32> to vector<8x16x16xf32>
    %24 = arith.subf %20, %23 : vector<8x16x16xf32>
    %25 = math.exp %24 : vector<8x16x16xf32>
    %cst_15 = arith.constant dense<0.000000e+00> : vector<8x16xf32>
    %26 = vector.multi_reduction <add>, %25, %cst_15 [1] : vector<8x16x16xf32> to vector<8x16xf32>
    %27 = vector.shape_cast %26 : vector<8x16xf32> to vector<8x1x16xf32>
    %28 = tpu.reciprocal %27 {approx = true} : vector<8x1x16xf32> -> vector<8x1x16xf32>
    %29 = vector.broadcast %28 : vector<8x1x16xf32> to vector<8x16x16xf32>
    %30 = arith.mulf %25, %29 : vector<8x16x16xf32>
    %31 = tpu.transpose %30, [0, 2, 1] : vector<8x16x16xf32> -> vector<8x16x16xf32>
    %32 = arith.truncf %31 : vector<8x16x16xf32> to vector<8x16x16xbf16>
    "tpu.trace_start"() <{level = 10 : i32, message = "bwr,brd->bwd"}> : () -> ()
    %cst_16 = arith.constant dense<0.000000e+00> : vector<8x16x64xf32>
    %33 = tpu.matmul %32, %9, %cst_16 {dimension_numbers = #tpu.dot_dimension_numbers<[2], [1], [1], [2], [0, 0, 0, 1, 1, 2], [0], [0]>} : vector<8x16x16xbf16>, vector<8x16x64xbf16>, vector<8x16x64xf32> -> vector<8x16x64xf32>
    "tpu.trace_stop"() : () -> ()
    %34 = vector.shape_cast %6 : vector<16x64xf32> to vector<1x16x64xf32>
    %35 = vector.broadcast %34 : vector<1x16x64xf32> to vector<8x16x64xf32>
    %36 = arith.subf %33, %35 : vector<8x16x64xf32>
    %37 = arith.mulf %36, %36 : vector<8x16x64xf32>
    %38 = vector.shape_cast %37 : vector<8x16x64xf32> to vector<128x64xf32>
    %39 = arith.truncf %38 : vector<128x64xf32> to vector<128x64xbf16>
    %c0_17 = arith.constant 0 : index
    %c0_18 = arith.constant 0 : index
    %40 = vector.load %arg7[%c0_17, %c0_18] : memref<64x32xbf16, #tpu.memory_space<vmem>>, vector<64x32xbf16>
    %cst_19 = arith.constant dense<0.000000e+00> : vector<128x32xf32>
    %41 = tpu.matmul %39, %40, %cst_19 {dimension_numbers = #tpu.dot_dimension_numbers<[1], [0], [0], [1], [0, 0, 1, 1], [], []>} : vector<128x64xbf16>, vector<64x32xbf16>, vector<128x32xf32> -> vector<128x32xf32>
    %c0_20 = arith.constant 0 : index
    %c0_21 = arith.constant 0 : index
    %42 = vector.load %arg8[%c0_20, %c0_21] : memref<1x32xf32, #tpu.memory_space<vmem>>, vector<1x32xf32>
    %43 = vector.broadcast %42 : vector<1x32xf32> to vector<128x32xf32>
    %44 = arith.addf %41, %43 : vector<128x32xf32>
    %45 = vector.shape_cast %44 : vector<128x32xf32> to vector<8x16x32xf32>
    %46 = vector.broadcast %8 : vector<1x64xf32> to vector<8x64xf32>
    %47 = arith.subf %4, %46 : vector<8x64xf32>
    %48 = arith.mulf %47, %47 : vector<8x64xf32>
    %49 = arith.truncf %48 : vector<8x64xf32> to vector<8x64xbf16>
    %c0_22 = arith.constant 0 : index
    %c0_23 = arith.constant 0 : index
    %50 = vector.load %arg9[%c0_22, %c0_23] : memref<64x32xbf16, #tpu.memory_space<vmem>>, vector<64x32xbf16>
    %cst_24 = arith.constant dense<0.000000e+00> : vector<8x32xf32>
    %51 = tpu.matmul %49, %50, %cst_24 {dimension_numbers = #tpu.dot_dimension_numbers<[1], [0], [0], [1], [0, 0, 1, 1], [], []>} : vector<8x64xbf16>, vector<64x32xbf16>, vector<8x32xf32> -> vector<8x32xf32>
    %c0_25 = arith.constant 0 : index
    %c0_26 = arith.constant 0 : index
    %52 = vector.load %arg10[%c0_25, %c0_26] : memref<1x32xf32, #tpu.memory_space<vmem>>, vector<1x32xf32>
    %53 = vector.broadcast %52 : vector<1x32xf32> to vector<8x32xf32>
    %54 = arith.addf %51, %53 : vector<8x32xf32>
    %55 = tpu.iota {dimensions = array<i32: 1>} : vector<8x8x32xi32>
    %c0_i32 = arith.constant 0 : i32
    %56 = vector.broadcast %c0_i32 : i32 to vector<8x8x32xi32>
    %57 = arith.cmpi eq, %55, %56 : vector<8x8x32xi32>
    %58 = vector.shape_cast %54 : vector<8x32xf32> to vector<8x1x32xf32>
    %cst_27 = arith.constant 0.000000e+00 : f32
    %59 = vector.shape_cast %58 : vector<8x1x32xf32> to vector<8x1x32xf32>
    %60 = vector.broadcast %59 : vector<8x1x32xf32> to vector<8x8x32xf32>
    %61 = vector.broadcast %cst_27 : f32 to vector<8x8x32xf32>
    %62 = arith.select %57, %60, %61 : vector<8x8x32xi1>, vector<8x8x32xf32>
    %63 = tpu.concatenate %62, %45 in 1 : vector<8x8x32xf32>, vector<8x16x32xf32> -> vector<8x24x32xf32>
    %64 = tpu.iota {dimensions = array<i32: 2>} : vector<1x1x24xi32>
    %c0_i32_28 = arith.constant 0 : i32
    %65 = vector.broadcast %c0_i32_28 : i32 to vector<1x1x24xi32>
    %66 = arith.cmpi eq, %64, %65 : vector<1x1x24xi32>
    %c8_i32 = arith.constant 8 : i32
    %67 = vector.broadcast %c8_i32 : i32 to vector<1x1x24xi32>
    %68 = arith.cmpi sge, %64, %67 : vector<1x1x24xi32>
    %c8_i32_29 = arith.constant 8 : i32
    %69 = arith.addi %c8_i32_29, %1 : i32
    %70 = vector.broadcast %69 : i32 to vector<1x1x24xi32>
    %71 = arith.cmpi slt, %64, %70 : vector<1x1x24xi32>
    %72 = arith.andi %68, %71 : vector<1x1x24xi1>
    %73 = arith.ori %66, %72 : vector<1x1x24xi1>
    %74 = arith.truncf %63 : vector<8x24x32xf32> to vector<8x24x32xbf16>
    %75 = vector.shape_cast %74 : vector<8x24x32xbf16> to vector<192x32xbf16>
    %c0_30 = arith.constant 0 : index
    %c0_31 = arith.constant 0 : index
    %c0_32 = arith.constant 0 : index
    %76 = vector.load %arg11[%c0_30, %c0_31, %c0_32] : memref<2x32x64xbf16, #tpu.memory_space<vmem>>, vector<1x32x64xbf16>
    %77 = vector.shape_cast %76 : vector<1x32x64xbf16> to vector<32x64xbf16>
    %cst_33 = arith.constant dense<0.000000e+00> : vector<192x64xf32>
    %78 = tpu.matmul %75, %77, %cst_33 {dimension_numbers = #tpu.dot_dimension_numbers<[1], [0], [0], [1], [0, 0, 1, 1], [], []>} : vector<192x32xbf16>, vector<32x64xbf16>, vector<192x64xf32> -> vector<192x64xf32>
    %c0_34 = arith.constant 0 : index
    %c0_35 = arith.constant 0 : index
    %79 = vector.load %arg12[%c0_34, %c0_35] : memref<2x64xf32, #tpu.memory_space<vmem>>, vector<1x64xf32>
    %80 = vector.broadcast %79 : vector<1x64xf32> to vector<192x64xf32>
    %81 = arith.addf %78, %80 : vector<192x64xf32>
    %82 = vector.shape_cast %81 : vector<192x64xf32> to vector<8x24x64xf32>
    %83 = vector.extract_strided_slice %82 {offsets = [0, 0, 0], sizes = [8, 24, 32], strides = [1, 1, 1]} : vector<8x24x64xf32> to vector<8x24x32xf32>
    %84 = vector.extract_strided_slice %82 {offsets = [0, 0, 32], sizes = [8, 24, 32], strides = [1, 1, 1]} : vector<8x24x64xf32> to vector<8x24x32xf32>
    %85 = arith.truncf %83 : vector<8x24x32xf32> to vector<8x24x32xbf16>
    %86 = arith.truncf %84 : vector<8x24x32xf32> to vector<8x24x32xbf16>
    "tpu.trace_start"() <{level = 10 : i32, message = "bls,bms->blm"}> : () -> ()
    %cst_36 = arith.constant dense<0.000000e+00> : vector<8x24x24xf32>
    %87 = tpu.matmul %85, %86, %cst_36 {dimension_numbers = #tpu.dot_dimension_numbers<[2], [2], [1], [1], [0, 0, 0, 1, 1, 1], [0], [0]>} : vector<8x24x32xbf16>, vector<8x24x32xbf16>, vector<8x24x24xf32> -> vector<8x24x24xf32>
    %cst_37 = arith.constant -1.000000e+30 : f32
    "tpu.trace_stop"() : () -> ()
    %88 = vector.shape_cast %73 : vector<1x1x24xi1> to vector<1x1x24xi1>
    %89 = vector.broadcast %88 : vector<1x1x24xi1> to vector<8x24x24xi1>
    %90 = vector.broadcast %cst_37 : f32 to vector<8x24x24xf32>
    %91 = arith.select %89, %87, %90 : vector<8x24x24xi1>, vector<8x24x24xf32>
    %cst_38 = arith.constant dense<0xFF800000> : vector<8x24xf32>
    %92 = vector.multi_reduction <maximumf>, %91, %cst_38 [2] : vector<8x24x24xf32> to vector<8x24xf32>
    %93 = vector.shape_cast %92 : vector<8x24xf32> to vector<8x24x1xf32>
    %94 = vector.broadcast %93 : vector<8x24x1xf32> to vector<8x24x24xf32>
    %95 = arith.subf %91, %94 : vector<8x24x24xf32>
    %96 = math.exp %95 : vector<8x24x24xf32>
    %cst_39 = arith.constant dense<0.000000e+00> : vector<8x24xf32>
    %97 = vector.multi_reduction <add>, %96, %cst_39 [2] : vector<8x24x24xf32> to vector<8x24xf32>
    %98 = vector.shape_cast %97 : vector<8x24xf32> to vector<8x24x1xf32>
    %99 = tpu.reciprocal %98 {approx = true} : vector<8x24x1xf32> -> vector<8x24x1xf32>
    %100 = vector.broadcast %99 : vector<8x24x1xf32> to vector<8x24x24xf32>
    %101 = arith.mulf %96, %100 : vector<8x24x24xf32>
    %102 = arith.truncf %101 : vector<8x24x24xf32> to vector<8x24x24xbf16>
    "tpu.trace_start"() <{level = 10 : i32, message = "blm,bms->bls"}> : () -> ()
    %cst_40 = arith.constant dense<0.000000e+00> : vector<8x24x32xf32>
    %103 = tpu.matmul %102, %74, %cst_40 {dimension_numbers = #tpu.dot_dimension_numbers<[2], [1], [1], [2], [0, 0, 0, 1, 1, 2], [0], [0]>} : vector<8x24x24xbf16>, vector<8x24x32xbf16>, vector<8x24x32xf32> -> vector<8x24x32xf32>
    "tpu.trace_stop"() : () -> ()
    %104 = vector.shape_cast %103 : vector<8x24x32xf32> to vector<192x32xf32>
    %105 = arith.truncf %104 : vector<192x32xf32> to vector<192x32xbf16>
    %c0_41 = arith.constant 0 : index
    %c0_42 = arith.constant 0 : index
    %c0_43 = arith.constant 0 : index
    %106 = vector.load %arg13[%c0_41, %c0_42, %c0_43] : memref<2x32x32xbf16, #tpu.memory_space<vmem>>, vector<1x32x32xbf16>
    %107 = vector.shape_cast %106 : vector<1x32x32xbf16> to vector<32x32xbf16>
    %cst_44 = arith.constant dense<0.000000e+00> : vector<192x32xf32>
    %108 = tpu.matmul %105, %107, %cst_44 {dimension_numbers = #tpu.dot_dimension_numbers<[1], [0], [0], [1], [0, 0, 1, 1], [], []>} : vector<192x32xbf16>, vector<32x32xbf16>, vector<192x32xf32> -> vector<192x32xf32>
    %c0_45 = arith.constant 0 : index
    %c0_46 = arith.constant 0 : index
    %109 = vector.load %arg14[%c0_45, %c0_46] : memref<2x32xf32, #tpu.memory_space<vmem>>, vector<1x32xf32>
    %110 = vector.broadcast %109 : vector<1x32xf32> to vector<192x32xf32>
    %111 = arith.addf %108, %110 : vector<192x32xf32>
    %112 = vector.shape_cast %111 : vector<192x32xf32> to vector<8x24x32xf32>
    %cst_47 = arith.constant 0.000000e+00 : f32
    %113 = vector.broadcast %cst_47 : f32 to vector<8x24x32xf32>
    %114 = arith.maximumf %112, %113 : vector<8x24x32xf32>
    %115 = arith.truncf %114 : vector<8x24x32xf32> to vector<8x24x32xbf16>
    %116 = vector.shape_cast %115 : vector<8x24x32xbf16> to vector<192x32xbf16>
    %c1 = arith.constant 1 : index
    %c0_48 = arith.constant 0 : index
    %c0_49 = arith.constant 0 : index
    %117 = vector.load %arg11[%c1, %c0_48, %c0_49] : memref<2x32x64xbf16, #tpu.memory_space<vmem>>, vector<1x32x64xbf16>
    %118 = vector.shape_cast %117 : vector<1x32x64xbf16> to vector<32x64xbf16>
    %cst_50 = arith.constant dense<0.000000e+00> : vector<192x64xf32>
    %119 = tpu.matmul %116, %118, %cst_50 {dimension_numbers = #tpu.dot_dimension_numbers<[1], [0], [0], [1], [0, 0, 1, 1], [], []>} : vector<192x32xbf16>, vector<32x64xbf16>, vector<192x64xf32> -> vector<192x64xf32>
    %c1_51 = arith.constant 1 : index
    %c0_52 = arith.constant 0 : index
    %120 = vector.load %arg12[%c1_51, %c0_52] : memref<2x64xf32, #tpu.memory_space<vmem>>, vector<1x64xf32>
    %121 = vector.broadcast %120 : vector<1x64xf32> to vector<192x64xf32>
    %122 = arith.addf %119, %121 : vector<192x64xf32>
    %123 = vector.shape_cast %122 : vector<192x64xf32> to vector<8x24x64xf32>
    %124 = vector.extract_strided_slice %123 {offsets = [0, 0, 0], sizes = [8, 24, 32], strides = [1, 1, 1]} : vector<8x24x64xf32> to vector<8x24x32xf32>
    %125 = vector.extract_strided_slice %123 {offsets = [0, 0, 32], sizes = [8, 24, 32], strides = [1, 1, 1]} : vector<8x24x64xf32> to vector<8x24x32xf32>
    %126 = arith.truncf %124 : vector<8x24x32xf32> to vector<8x24x32xbf16>
    %127 = arith.truncf %125 : vector<8x24x32xf32> to vector<8x24x32xbf16>
    "tpu.trace_start"() <{level = 10 : i32, message = "bls,bms->blm"}> : () -> ()
    %cst_53 = arith.constant dense<0.000000e+00> : vector<8x24x24xf32>
    %128 = tpu.matmul %126, %127, %cst_53 {dimension_numbers = #tpu.dot_dimension_numbers<[2], [2], [1], [1], [0, 0, 0, 1, 1, 1], [0], [0]>} : vector<8x24x32xbf16>, vector<8x24x32xbf16>, vector<8x24x24xf32> -> vector<8x24x24xf32>
    %cst_54 = arith.constant -1.000000e+30 : f32
    "tpu.trace_stop"() : () -> ()
    %129 = vector.shape_cast %73 : vector<1x1x24xi1> to vector<1x1x24xi1>
    %130 = vector.broadcast %129 : vector<1x1x24xi1> to vector<8x24x24xi1>
    %131 = vector.broadcast %cst_54 : f32 to vector<8x24x24xf32>
    %132 = arith.select %130, %128, %131 : vector<8x24x24xi1>, vector<8x24x24xf32>
    %cst_55 = arith.constant dense<0xFF800000> : vector<8x24xf32>
    %133 = vector.multi_reduction <maximumf>, %132, %cst_55 [2] : vector<8x24x24xf32> to vector<8x24xf32>
    %134 = vector.shape_cast %133 : vector<8x24xf32> to vector<8x24x1xf32>
    %135 = vector.broadcast %134 : vector<8x24x1xf32> to vector<8x24x24xf32>
    %136 = arith.subf %132, %135 : vector<8x24x24xf32>
    %137 = math.exp %136 : vector<8x24x24xf32>
    %cst_56 = arith.constant dense<0.000000e+00> : vector<8x24xf32>
    %138 = vector.multi_reduction <add>, %137, %cst_56 [2] : vector<8x24x24xf32> to vector<8x24xf32>
    %139 = vector.shape_cast %138 : vector<8x24xf32> to vector<8x24x1xf32>
    %140 = tpu.reciprocal %139 {approx = true} : vector<8x24x1xf32> -> vector<8x24x1xf32>
    %141 = vector.broadcast %140 : vector<8x24x1xf32> to vector<8x24x24xf32>
    %142 = arith.mulf %137, %141 : vector<8x24x24xf32>
    %143 = arith.truncf %142 : vector<8x24x24xf32> to vector<8x24x24xbf16>
    "tpu.trace_start"() <{level = 10 : i32, message = "blm,bms->bls"}> : () -> ()
    %cst_57 = arith.constant dense<0.000000e+00> : vector<8x24x32xf32>
    %144 = tpu.matmul %143, %115, %cst_57 {dimension_numbers = #tpu.dot_dimension_numbers<[2], [1], [1], [2], [0, 0, 0, 1, 1, 2], [0], [0]>} : vector<8x24x24xbf16>, vector<8x24x32xbf16>, vector<8x24x32xf32> -> vector<8x24x32xf32>
    "tpu.trace_stop"() : () -> ()
    %145 = vector.shape_cast %144 : vector<8x24x32xf32> to vector<192x32xf32>
    %146 = arith.truncf %145 : vector<192x32xf32> to vector<192x32xbf16>
    %c1_58 = arith.constant 1 : index
    %c0_59 = arith.constant 0 : index
    %c0_60 = arith.constant 0 : index
    %147 = vector.load %arg13[%c1_58, %c0_59, %c0_60] : memref<2x32x32xbf16, #tpu.memory_space<vmem>>, vector<1x32x32xbf16>
    %148 = vector.shape_cast %147 : vector<1x32x32xbf16> to vector<32x32xbf16>
    %cst_61 = arith.constant dense<0.000000e+00> : vector<192x32xf32>
    %149 = tpu.matmul %146, %148, %cst_61 {dimension_numbers = #tpu.dot_dimension_numbers<[1], [0], [0], [1], [0, 0, 1, 1], [], []>} : vector<192x32xbf16>, vector<32x32xbf16>, vector<192x32xf32> -> vector<192x32xf32>
    %c1_62 = arith.constant 1 : index
    %c0_63 = arith.constant 0 : index
    %150 = vector.load %arg14[%c1_62, %c0_63] : memref<2x32xf32, #tpu.memory_space<vmem>>, vector<1x32xf32>
    %151 = vector.broadcast %150 : vector<1x32xf32> to vector<192x32xf32>
    %152 = arith.addf %149, %151 : vector<192x32xf32>
    %153 = vector.shape_cast %152 : vector<192x32xf32> to vector<8x24x32xf32>
    %cst_64 = arith.constant 0.000000e+00 : f32
    %154 = vector.broadcast %cst_64 : f32 to vector<8x24x32xf32>
    %155 = arith.maximumf %153, %154 : vector<8x24x32xf32>
    %156 = vector.extract_strided_slice %155 {offsets = [0, 0, 0], sizes = [8, 1, 32], strides = [1, 1, 1]} : vector<8x24x32xf32> to vector<8x1x32xf32>
    %157 = vector.shape_cast %156 : vector<8x1x32xf32> to vector<8x32xf32>
    %c0_65 = arith.constant 0 : index
    %c0_66 = arith.constant 0 : index
    %158 = vector.load %arg15[%c0_65, %c0_66] : memref<1x32xbf16, #tpu.memory_space<vmem>>, vector<1x32xbf16>
    %159 = arith.truncf %157 : vector<8x32xf32> to vector<8x32xbf16>
    %cst_67 = arith.constant dense<0.000000e+00> : vector<1x8xf32>
    %160 = tpu.matmul %158, %159, %cst_67 {dimension_numbers = #tpu.dot_dimension_numbers<[1], [1], [0], [0], [0, 0, 1, 0], [], []>} : vector<1x32xbf16>, vector<8x32xbf16>, vector<1x8xf32> -> vector<1x8xf32>
    %c0_68 = arith.constant 0 : index
    %c0_69 = arith.constant 0 : index
    %161 = vector.load %arg16[%c0_68, %c0_69] : memref<1x1xf32, #tpu.memory_space<vmem>>, vector<1x1xf32>
    %162 = vector.broadcast %161 : vector<1x1xf32> to vector<1x8xf32>
    %163 = arith.addf %160, %162 : vector<1x8xf32>
    %cst_70 = arith.constant 0.000000e+00 : f32
    %164 = vector.broadcast %cst_70 : f32 to vector<1x8xf32>
    %165 = arith.subf %164, %163 : vector<1x8xf32>
    %166 = math.exp %165 : vector<1x8xf32>
    %cst_71 = arith.constant 1.000000e+00 : f32
    %167 = vector.broadcast %cst_71 : f32 to vector<1x8xf32>
    %168 = arith.addf %167, %166 : vector<1x8xf32>
    %cst_72 = arith.constant 1.000000e+00 : f32
    %169 = vector.broadcast %cst_72 : f32 to vector<1x8xf32>
    %170 = arith.divf %169, %168 : vector<1x8xf32>
    %c0_73 = arith.constant 0 : index
    %c0_74 = arith.constant 0 : index
    %c0_75 = arith.constant 0 : index
    %c0_76 = arith.constant 0 : index
    %171 = vector.load %arg17[%c0_73, %c0_74, %c0_75, %c0_76] : memref<1x1x1x8xf32, #tpu.memory_space<vmem>>, vector<1x1x1x8xf32>
    %172 = vector.shape_cast %171 : vector<1x1x1x8xf32> to vector<1x8xf32>
    %173 = vector.shape_cast %170 : vector<1x8xf32> to vector<1x1x1x8xf32>
    tpu.vector_store %arg17[%c0_73, %c0_74, %c0_75, %c0_76], %173 {strides = array<i32>} : memref<1x1x1x8xf32, #tpu.memory_space<vmem>>, vector<1x1x1x8xf32>,
    return
  }
  func.func @transform_0(%arg0: i32, %arg1: i32, %arg2: memref<4xi32, #tpu.memory_space<smem>>) -> (i32, i32, i32) {
    %c0_i32 = arith.constant 0 : i32
    %c0_i32_0 = arith.constant 0 : i32
    %c0_i32_1 = arith.constant 0 : i32
    return %arg0, %c0_i32, %c0_i32_0 : i32, i32, i32
  }
  func.func @transform_1(%arg0: i32, %arg1: i32, %arg2: memref<4xi32, #tpu.memory_space<smem>>) -> (i32, i32, i32) {
    %c0_i32 = arith.constant 0 : i32
    %c0_i32_0 = arith.constant 0 : i32
    %c0_i32_1 = arith.constant 0 : i32
    return %arg0, %c0_i32, %c0_i32_0 : i32, i32, i32
  }
  func.func @transform_2(%arg0: i32, %arg1: i32, %arg2: memref<4xi32, #tpu.memory_space<smem>>) -> (i32, i32, i32) {
    %c0_i32 = arith.constant 0 : i32
    %c0_i32_0 = arith.constant 0 : i32
    %c0_i32_1 = arith.constant 0 : i32
    return %arg1, %c0_i32, %c0_i32_0 : i32, i32, i32
  }
  func.func @transform_3(%arg0: i32, %arg1: i32, %arg2: memref<4xi32, #tpu.memory_space<smem>>) -> (i32, i32, i32) {
    %c0_i32 = arith.constant 0 : i32
    %c0_i32_0 = arith.constant 0 : i32
    %c0_i32_1 = arith.constant 0 : i32
    return %arg1, %c0_i32, %c0_i32_0 : i32, i32, i32
  }
  func.func @transform_4(%arg0: i32, %arg1: i32, %arg2: memref<4xi32, #tpu.memory_space<smem>>) -> (i32, i32) {
    %c0_i32 = arith.constant 0 : i32
    %c0_i32_0 = arith.constant 0 : i32
    %c0_i32_1 = arith.constant 0 : i32
    return %c0_i32, %c0_i32_0 : i32, i32
  }
  func.func @transform_5(%arg0: i32, %arg1: i32, %arg2: memref<4xi32, #tpu.memory_space<smem>>) -> (i32, i32) {
    %c0_i32 = arith.constant 0 : i32
    %c0_i32_0 = arith.constant 0 : i32
    %c0_i32_1 = arith.constant 0 : i32
    return %c0_i32, %c0_i32_0 : i32, i32
  }
  func.func @transform_6(%arg0: i32, %arg1: i32, %arg2: memref<4xi32, #tpu.memory_space<smem>>) -> (i32, i32) {
    %c0_i32 = arith.constant 0 : i32
    %c0_i32_0 = arith.constant 0 : i32
    %c0_i32_1 = arith.constant 0 : i32
    return %c0_i32, %c0_i32_0 : i32, i32
  }
  func.func @transform_7(%arg0: i32, %arg1: i32, %arg2: memref<4xi32, #tpu.memory_space<smem>>) -> (i32, i32) {
    %c0_i32 = arith.constant 0 : i32
    %c0_i32_0 = arith.constant 0 : i32
    %c0_i32_1 = arith.constant 0 : i32
    return %c0_i32, %c0_i32_0 : i32, i32
  }
  func.func @transform_8(%arg0: i32, %arg1: i32, %arg2: memref<4xi32, #tpu.memory_space<smem>>) -> (i32, i32, i32) {
    %c0_i32 = arith.constant 0 : i32
    %c0_i32_0 = arith.constant 0 : i32
    %c0_i32_1 = arith.constant 0 : i32
    %c0_i32_2 = arith.constant 0 : i32
    return %c0_i32, %c0_i32_0, %c0_i32_1 : i32, i32, i32
  }
  func.func @transform_9(%arg0: i32, %arg1: i32, %arg2: memref<4xi32, #tpu.memory_space<smem>>) -> (i32, i32) {
    %c0_i32 = arith.constant 0 : i32
    %c0_i32_0 = arith.constant 0 : i32
    %c0_i32_1 = arith.constant 0 : i32
    return %c0_i32, %c0_i32_0 : i32, i32
  }
  func.func @transform_10(%arg0: i32, %arg1: i32, %arg2: memref<4xi32, #tpu.memory_space<smem>>) -> (i32, i32, i32) {
    %c0_i32 = arith.constant 0 : i32
    %c0_i32_0 = arith.constant 0 : i32
    %c0_i32_1 = arith.constant 0 : i32
    %c0_i32_2 = arith.constant 0 : i32
    return %c0_i32, %c0_i32_0, %c0_i32_1 : i32, i32, i32
  }
  func.func @transform_11(%arg0: i32, %arg1: i32, %arg2: memref<4xi32, #tpu.memory_space<smem>>) -> (i32, i32) {
    %c0_i32 = arith.constant 0 : i32
    %c0_i32_0 = arith.constant 0 : i32
    %c0_i32_1 = arith.constant 0 : i32
    return %c0_i32, %c0_i32_0 : i32, i32
  }
  func.func @transform_12(%arg0: i32, %arg1: i32, %arg2: memref<4xi32, #tpu.memory_space<smem>>) -> (i32, i32) {
    %c0_i32 = arith.constant 0 : i32
    %c0_i32_0 = arith.constant 0 : i32
    %c0_i32_1 = arith.constant 0 : i32
    return %c0_i32, %c0_i32_0 : i32, i32
  }
  func.func @transform_13(%arg0: i32, %arg1: i32, %arg2: memref<4xi32, #tpu.memory_space<smem>>) -> (i32, i32) {
    %c0_i32 = arith.constant 0 : i32
    %c0_i32_0 = arith.constant 0 : i32
    %c0_i32_1 = arith.constant 0 : i32
    return %c0_i32, %c0_i32_0 : i32, i32
  }
  func.func @transform_14(%arg0: i32, %arg1: i32, %arg2: memref<4xi32, #tpu.memory_space<smem>>) -> (i32, i32, i32, i32) {
    %c0_i32 = arith.constant 0 : i32
    %c0_i32_0 = arith.constant 0 : i32
    %c0_i32_1 = arith.constant 0 : i32
    return %arg1, %arg0, %c0_i32, %c0_i32_0 : i32, i32, i32, i32
  }
}

</mosaic_0001>

<llo_original>
// kernel: encoder_similarity.1
$region0: #{encoder_similarity.1}
  #allocation0 [shape = 'u32[]', space=smem, size = 0x4, offset = 0x4, fixed_abs, tag = 'smem constant byte address 0x4 - core index']
  #allocation1 [shape = 'u32[144,128]{1,0:T(1,128)}', space=vmem, size = 0x12000, scoped, tag = 'internal scratch']
  #allocation2 [shape = 's32[1]{0}', space=sflag, size = 0x4, scoped, tag = 'scoped memory for encoder_similarity.1']
  #allocation3 [shape = 'u8[512]{0}', space=smem, size = 0x200, scoped, tag = 'prefetched SMEM operand 0']
  #allocation4 [shape = 'f32[1,1]{1,0:T(1,128)S(1)}', space=vmem, size = 0x200, scoped, tag = 'scoped memory for encoder_similarity.1']
  %s0 = inlined_call_operand.vmem [shape: s32[4], index: 0, kind: input, shape index: {}]
  %s1 = inlined_call_operand.vmem [shape: f32[8,16,64], index: 1, kind: input, shape index: {}]
  %s2 = inlined_call_operand.vmem [shape: f32[8,1,64], index: 2, kind: input, shape index: {}]
  %s3 = inlined_call_operand.vmem [shape: f32[4,16,64], index: 3, kind: input, shape index: {}]
  %s4 = inlined_call_operand.vmem [shape: f32[4,1,64], index: 4, kind: input, shape index: {}]
  %s5 = inlined_call_operand.vmem [shape: bf16[64,32], index: 5, kind: input, shape index: {}]
  %s6 = inlined_call_operand.vmem [shape: f32[1,32], index: 6, kind: input, shape index: {}]
  %s7 = inlined_call_operand.vmem [shape: bf16[64,32], index: 7, kind: input, shape index: {}]
  %s8 = inlined_call_operand.vmem [shape: f32[1,32], index: 8, kind: input, shape index: {}]
  %s9 = inlined_call_operand.vmem [shape: bf16[2,32,64], index: 9, kind: input, shape index: {}]
  %s10 = inlined_call_operand.vmem [shape: f32[2,64], index: 10, kind: input, shape index: {}]
  %s11 = inlined_call_operand.vmem [shape: bf16[2,32,32], index: 11, kind: input, shape index: {}]
  %s12 = inlined_call_operand.vmem [shape: f32[2,32], index: 12, kind: input, shape index: {}]
  %s13 = inlined_call_operand.vmem [shape: bf16[1,32], index: 13, kind: input, shape index: {}]
  %s14 = inlined_call_operand.<no memory space> [shape: f32[1,1], index: 14, kind: input, shape index: {}]
  %s15 = inlined_call_operand.hbm [shape: f32[4,1,1,8], index: 15, kind: output, shape index: {}]
  %s16 = sld [smem:[#allocation0]]
  $region89: #{encoder_similarity.1} parent=0
    _
  %s18 = ssub.s32 1, %s16
  %s19 = scalar_select 0, %s18, %s16
  %s20 = sshll.u32 %s0, 4
  %s21 = int_to_ptr.vmem [resolvable:$true] %s20
  %23 = dma.vmem_to_smem %s21, 16, [#allocation3], [#allocation2]
  %v24 = vstv %s14
  %25 = vst [vmem:[#allocation4] sm:$0x1] %v24
  %26 = dma.done [#allocation2], 16
  %27 = sfence
  $region1: #{encoder_similarity.1} parent=0
    #allocation5 [shape = 'u8[1024]{0}', space=vmem, size = 0x400, scoped, tag = 'output window, operand 0']
    #allocation6 [shape = 's32[2]{0}', space=sflag, size = 0x8, scoped, tag = 'scoped memory for encoder_similarity.1']
    %28 = vsyncpa [#allocation6], 0
    %s29 = scalar_lea.sflag [#allocation6], 1
    %30 = vsyncpa %s29, 0
    loop: start=0, step=1, limit=6
    $region2: #{encoder_similarity.1} parent=1 // loop_pre_header
      _
    $region3: #{encoder_similarity.1} parent=1 // loop_header
      %s32 = sphi 0, %s36
      %p33 = scmp.ge.s32.totalorder %s32, 6
      %s39 = sphi 0, %s51
      %s40 = sphi 0, %s47
      %s41 = sphi 0, %s39
      %s42 = sphi 0, %s40
      %s43 = sphi 0, %s41
      %s44 = sphi 0, %s42
      %s54 = sphi 0, %s56
      %s57 = sphi 0, %s54
      %s58 = sphi 0, %s57
      %s74 = sphi 0, %s58
      %s80 = sphi 0, %s82
      %s83 = sphi 0, %s80
      %s84 = sphi 0, %s83
      %s100 = sphi 0, %s84
      %s106 = sphi 0, %s108
      %s109 = sphi 0, %s106
      %s110 = sphi 0, %s109
      %s126 = sphi 0, %s110
      %s132 = sphi 0, %s134
      %s135 = sphi 0, %s132
      %s136 = sphi 0, %s135
      %s152 = sphi 0, %s136
      %s156 = sphi 0, %s156
      %s158 = sphi 0, %s156
      %s159 = sphi 0, %s158
      %s173 = sphi 0, %s159
      %s177 = sphi 0, %s177
      %s179 = sphi 0, %s177
      %s180 = sphi 0, %s179
      %s194 = sphi 0, %s180
      %s198 = sphi 0, %s198
      %s200 = sphi 0, %s198
      %s201 = sphi 0, %s200
      %s215 = sphi 0, %s201
      %s219 = sphi 0, %s219
      %s221 = sphi 0, %s219
      %s222 = sphi 0, %s221
      %s236 = sphi 0, %s222
      %s240 = sphi 0, %s240
      %s242 = sphi 0, %s240
      %s243 = sphi 0, %s242
      %s257 = sphi 0, %s243
      %s261 = sphi 0, %s261
      %s263 = sphi 0, %s261
      %s264 = sphi 0, %s263
      %s278 = sphi 0, %s264
      %s282 = sphi 0, %s282
      %s284 = sphi 0, %s282
      %s285 = sphi 0, %s284
      %s299 = sphi 0, %s285
      %s303 = sphi 0, %s303
      %s305 = sphi 0, %s303
      %s306 = sphi 0, %s305
      %s320 = sphi 0, %s306
      %s324 = sphi 0, %s324
      %s326 = sphi 0, %s324
      %s327 = sphi 0, %s326
      %s341 = sphi 0, %s327
      %s345 = sphi 0, %s345
      %s347 = sphi 0, %s345
      %s348 = sphi 0, %s347
      %s362 = sphi 0, %s348
      %s370 = sphi 0, %s372
      %s373 = sphi 0, %s370
      %s374 = sphi 0, %s373
      %s390 = sphi 0, %s374
    $region4: #{encoder_similarity.1} parent=1 // loop_header_branch
      %35 = sbr.rel (%p33) target = $region8
    $region5: #{encoder_similarity.1} parent=1 // loop_body
      %s37 = ssub.s32 %s32, 1
      %s38 = ssub.s32 %s32, 2
      %s45 = sadd.s32 1, %s40
      %p46 = scmp.ge.s32.totalorder %s45, 4
      %s47 = scalar_select %p46, 0, %s45
      %s48 = sadd.s32 1, %s39
      %s49 = scalar_select %p46, %s48, %s39
      %p50 = scmp.ge.s32.totalorder %s49, 1
      %s51 = scalar_select %p50, 0, %s49
      %s52 = ssub.s32 %s39, %s51
      %p53 = scmp.eq.s32.totalorder %s52, 0
      %s55 = sadd.s32 %s54, 1
      %s56 = scalar_select %p53, %s54, %s55
      %p59 = pneg %p53
      %p60 = scmp.eq.s32.totalorder %s32, 3
      %p61 = por %p59, %p60
      %p62 = scmp.ne.s32.totalorder %s54, %s57
      %p63 = scmp.eq.s32.totalorder %s32, 0
      %p64 = por %p62, %p63
      %p65 = scmp.ne.s32.totalorder %s54, %s57
      %p66 = scmp.eq.s32.totalorder %s37, 3
      %p67 = por %p65, %p66
      %p68 = scmp.ne.s32.totalorder %s57, %s58
      %p69 = scmp.eq.s32.totalorder %s37, 0
      %p70 = por %p68, %p69
      %p71 = scmp.ne.s32.totalorder %s57, %s58
      %p72 = scmp.eq.s32.totalorder %s38, 3
      %p73 = por %p71, %p72
      %p75 = scmp.ne.s32.totalorder %s58, %s74
      %p76 = scmp.eq.s32.totalorder %s38, 0
      %p77 = por %p75, %p76
      %s78 = ssub.s32 %s39, %s51
      %p79 = scmp.eq.s32.totalorder %s78, 0
      %s81 = sadd.s32 %s80, 1
      %s82 = scalar_select %p79, %s80, %s81
      %p85 = pneg %p79
      %p86 = scmp.eq.s32.totalorder %s32, 3
      %p87 = por %p85, %p86
      %p88 = scmp.ne.s32.totalorder %s80, %s83
      %p89 = scmp.eq.s32.totalorder %s32, 0
      %p90 = por %p88, %p89
      %p91 = scmp.ne.s32.totalorder %s80, %s83
      %p92 = scmp.eq.s32.totalorder %s37, 3
      %p93 = por %p91, %p92
      %p94 = scmp.ne.s32.totalorder %s83, %s84
      %p95 = scmp.eq.s32.totalorder %s37, 0
      %p96 = por %p94, %p95
      %p97 = scmp.ne.s32.totalorder %s83, %s84
      %p98 = scmp.eq.s32.totalorder %s38, 3
      %p99 = por %p97, %p98
      %p101 = scmp.ne.s32.totalorder %s84, %s100
      %p102 = scmp.eq.s32.totalorder %s38, 0
      %p103 = por %p101, %p102
      %s104 = ssub.s32 %s40, %s47
      %p105 = scmp.eq.s32.totalorder %s104, 0
      %s107 = sadd.s32 %s106, 1
      %s108 = scalar_select %p105, %s106, %s107
      %p111 = pneg %p105
      %p112 = scmp.eq.s32.totalorder %s32, 3
      %p113 = por %p111, %p112
      %p114 = scmp.ne.s32.totalorder %s106, %s109
      %p115 = scmp.eq.s32.totalorder %s32, 0
      %p116 = por %p114, %p115
      %p117 = scmp.ne.s32.totalorder %s106, %s109
      %p118 = scmp.eq.s32.totalorder %s37, 3
      %p119 = por %p117, %p118
      %p120 = scmp.ne.s32.totalorder %s109, %s110
      %p121 = scmp.eq.s32.totalorder %s37, 0
      %p122 = por %p120, %p121
      %p123 = scmp.ne.s32.totalorder %s109, %s110
      %p124 = scmp.eq.s32.totalorder %s38, 3
      %p125 = por %p123, %p124
      %p127 = scmp.ne.s32.totalorder %s110, %s126
      %p128 = scmp.eq.s32.totalorder %s38, 0
      %p129 = por %p127, %p128
      %s130 = ssub.s32 %s40, %s47
      %p131 = scmp.eq.s32.totalorder %s130, 0
      %s133 = sadd.s32 %s132, 1
      %s134 = scalar_select %p131, %s132, %s133
      %p137 = pneg %p131
      %p138 = scmp.eq.s32.totalorder %s32, 3
      %p139 = por %p137, %p138
      %p140 = scmp.ne.s32.totalorder %s132, %s135
      %p141 = scmp.eq.s32.totalorder %s32, 0
      %p142 = por %p140, %p141
      %p143 = scmp.ne.s32.totalorder %s132, %s135
      %p144 = scmp.eq.s32.totalorder %s37, 3
      %p145 = por %p143, %p144
      %p146 = scmp.ne.s32.totalorder %s135, %s136
      %p147 = scmp.eq.s32.totalorder %s37, 0
      %p148 = por %p146, %p147
      %p149 = scmp.ne.s32.totalorder %s135, %s136
      %p150 = scmp.eq.s32.totalorder %s38, 3
      %p151 = por %p149, %p150
      %p153 = scmp.ne.s32.totalorder %s136, %s152
      %p154 = scmp.eq.s32.totalorder %s38, 0
      %p155 = por %p153, %p154
      %s157 = sadd.s32 %s156, 1
      %p160 = scmp.eq.s32.totalorder %s32, 3
      %p161 = scmp.ne.s32.totalorder %s156, %s158
      %p162 = scmp.eq.s32.totalorder %s32, 0
      %p163 = por %p161, %p162
      %p164 = scmp.ne.s32.totalorder %s156, %s158
      %p165 = scmp.eq.s32.totalorder %s37, 3
      %p166 = por %p164, %p165
      %p167 = scmp.ne.s32.totalorder %s158, %s159
      %p168 = scmp.eq.s32.totalorder %s37, 0
      %p169 = por %p167, %p168
      %p170 = scmp.ne.s32.totalorder %s158, %s159
      %p171 = scmp.eq.s32.totalorder %s38, 3
      %p172 = por %p170, %p171
      %p174 = scmp.ne.s32.totalorder %s159, %s173
      %p175 = scmp.eq.s32.totalorder %s38, 0
      %p176 = por %p174, %p175
      %s178 = sadd.s32 %s177, 1
      %p181 = scmp.eq.s32.totalorder %s32, 3
      %p182 = scmp.ne.s32.totalorder %s177, %s179
      %p183 = scmp.eq.s32.totalorder %s32, 0
      %p184 = por %p182, %p183
      %p185 = scmp.ne.s32.totalorder %s177, %s179
      %p186 = scmp.eq.s32.totalorder %s37, 3
      %p187 = por %p185, %p186
      %p188 = scmp.ne.s32.totalorder %s179, %s180
      %p189 = scmp.eq.s32.totalorder %s37, 0
      %p190 = por %p188, %p189
      %p191 = scmp.ne.s32.totalorder %s179, %s180
      %p192 = scmp.eq.s32.totalorder %s38, 3
      %p193 = por %p191, %p192
      %p195 = scmp.ne.s32.totalorder %s180, %s194
      %p196 = scmp.eq.s32.totalorder %s38, 0
      %p197 = por %p195, %p196
      %s199 = sadd.s32 %s198, 1
      %p202 = scmp.eq.s32.totalorder %s32, 3
      %p203 = scmp.ne.s32.totalorder %s198, %s200
      %p204 = scmp.eq.s32.totalorder %s32, 0
      %p205 = por %p203, %p204
      %p206 = scmp.ne.s32.totalorder %s198, %s200
      %p207 = scmp.eq.s32.totalorder %s37, 3
      %p208 = por %p206, %p207
      %p209 = scmp.ne.s32.totalorder %s200, %s201
      %p210 = scmp.eq.s32.totalorder %s37, 0
      %p211 = por %p209, %p210
      %p212 = scmp.ne.s32.totalorder %s200, %s201
      %p213 = scmp.eq.s32.totalorder %s38, 3
      %p214 = por %p212, %p213
      %p216 = scmp.ne.s32.totalorder %s201, %s215
      %p217 = scmp.eq.s32.totalorder %s38, 0
      %p218 = por %p216, %p217
      %s220 = sadd.s32 %s219, 1
      %p223 = scmp.eq.s32.totalorder %s32, 3
      %p224 = scmp.ne.s32.totalorder %s219, %s221
      %p225 = scmp.eq.s32.totalorder %s32, 0
      %p226 = por %p224, %p225
      %p227 = scmp.ne.s32.totalorder %s219, %s221
      %p228 = scmp.eq.s32.totalorder %s37, 3
      %p229 = por %p227, %p228
      %p230 = scmp.ne.s32.totalorder %s221, %s222
      %p231 = scmp.eq.s32.totalorder %s37, 0
      %p232 = por %p230, %p231
      %p233 = scmp.ne.s32.totalorder %s221, %s222
      %p234 = scmp.eq.s32.totalorder %s38, 3
      %p235 = por %p233, %p234
      %p237 = scmp.ne.s32.totalorder %s222, %s236
      %p238 = scmp.eq.s32.totalorder %s38, 0
      %p239 = por %p237, %p238
      %s241 = sadd.s32 %s240, 1
      %p244 = scmp.eq.s32.totalorder %s32, 3
      %p245 = scmp.ne.s32.totalorder %s240, %s242
      %p246 = scmp.eq.s32.totalorder %s32, 0
      %p247 = por %p245, %p246
      %p248 = scmp.ne.s32.totalorder %s240, %s242
      %p249 = scmp.eq.s32.totalorder %s37, 3
      %p250 = por %p248, %p249
      %p251 = scmp.ne.s32.totalorder %s242, %s243
      %p252 = scmp.eq.s32.totalorder %s37, 0
      %p253 = por %p251, %p252
      %p254 = scmp.ne.s32.totalorder %s242, %s243
      %p255 = scmp.eq.s32.totalorder %s38, 3
      %p256 = por %p254, %p255
      %p258 = scmp.ne.s32.totalorder %s243, %s257
      %p259 = scmp.eq.s32.totalorder %s38, 0
      %p260 = por %p258, %p259
      %s262 = sadd.s32 %s261, 1
      %p265 = scmp.eq.s32.totalorder %s32, 3
      %p266 = scmp.ne.s32.totalorder %s261, %s263
      %p267 = scmp.eq.s32.totalorder %s32, 0
      %p268 = por %p266, %p267
      %p269 = scmp.ne.s32.totalorder %s261, %s263
      %p270 = scmp.eq.s32.totalorder %s37, 3
      %p271 = por %p269, %p270
      %p272 = scmp.ne.s32.totalorder %s263, %s264
      %p273 = scmp.eq.s32.totalorder %s37, 0
      %p274 = por %p272, %p273
      %p275 = scmp.ne.s32.totalorder %s263, %s264
      %p276 = scmp.eq.s32.totalorder %s38, 3
      %p277 = por %p275, %p276
      %p279 = scmp.ne.s32.totalorder %s264, %s278
      %p280 = scmp.eq.s32.totalorder %s38, 0
      %p281 = por %p279, %p280
      %s283 = sadd.s32 %s282, 1
      %p286 = scmp.eq.s32.totalorder %s32, 3
      %p287 = scmp.ne.s32.totalorder %s282, %s284
      %p288 = scmp.eq.s32.totalorder %s32, 0
      %p289 = por %p287, %p288
      %p290 = scmp.ne.s32.totalorder %s282, %s284
      %p291 = scmp.eq.s32.totalorder %s37, 3
      %p292 = por %p290, %p291
      %p293 = scmp.ne.s32.totalorder %s284, %s285
      %p294 = scmp.eq.s32.totalorder %s37, 0
      %p295 = por %p293, %p294
      %p296 = scmp.ne.s32.totalorder %s284, %s285
      %p297 = scmp.eq.s32.totalorder %s38, 3
      %p298 = por %p296, %p297
      %p300 = scmp.ne.s32.totalorder %s285, %s299
      %p301 = scmp.eq.s32.totalorder %s38, 0
      %p302 = por %p300, %p301
      %s304 = sadd.s32 %s303, 1
      %p307 = scmp.eq.s32.totalorder %s32, 3
      %p308 = scmp.ne.s32.totalorder %s303, %s305
      %p309 = scmp.eq.s32.totalorder %s32, 0
      %p310 = por %p308, %p309
      %p311 = scmp.ne.s32.totalorder %s303, %s305
      %p312 = scmp.eq.s32.totalorder %s37, 3
      %p313 = por %p311, %p312
      %p314 = scmp.ne.s32.totalorder %s305, %s306
      %p315 = scmp.eq.s32.totalorder %s37, 0
      %p316 = por %p314, %p315
      %p317 = scmp.ne.s32.totalorder %s305, %s306
      %p318 = scmp.eq.s32.totalorder %s38, 3
      %p319 = por %p317, %p318
      %p321 = scmp.ne.s32.totalorder %s306, %s320
      %p322 = scmp.eq.s32.totalorder %s38, 0
      %p323 = por %p321, %p322
      %s325 = sadd.s32 %s324, 1
      %p328 = scmp.eq.s32.totalorder %s32, 3
      %p329 = scmp.ne.s32.totalorder %s324, %s326
      %p330 = scmp.eq.s32.totalorder %s32, 0
      %p331 = por %p329, %p330
      %p332 = scmp.ne.s32.totalorder %s324, %s326
      %p333 = scmp.eq.s32.totalorder %s37, 3
      %p334 = por %p332, %p333
      %p335 = scmp.ne.s32.totalorder %s326, %s327
      %p336 = scmp.eq.s32.totalorder %s37, 0
      %p337 = por %p335, %p336
      %p338 = scmp.ne.s32.totalorder %s326, %s327
      %p339 = scmp.eq.s32.totalorder %s38, 3
      %p340 = por %p338, %p339
      %p342 = scmp.ne.s32.totalorder %s327, %s341
      %p343 = scmp.eq.s32.totalorder %s38, 0
      %p344 = por %p342, %p343
      %s346 = sadd.s32 %s345, 1
      %p349 = scmp.eq.s32.totalorder %s32, 3
      %p350 = scmp.ne.s32.totalorder %s345, %s347
      %p351 = scmp.eq.s32.totalorder %s32, 0
      %p352 = por %p350, %p351
      %p353 = scmp.ne.s32.totalorder %s345, %s347
      %p354 = scmp.eq.s32.totalorder %s37, 3
      %p355 = por %p353, %p354
      %p356 = scmp.ne.s32.totalorder %s347, %s348
      %p357 = scmp.eq.s32.totalorder %s37, 0
      %p358 = por %p356, %p357
      %p359 = scmp.ne.s32.totalorder %s347, %s348
      %p360 = scmp.eq.s32.totalorder %s38, 3
      %p361 = por %p359, %p360
      %p363 = scmp.ne.s32.totalorder %s348, %s362
      %p364 = scmp.eq.s32.totalorder %s38, 0
      %p365 = por %p363, %p364
      %s366 = ssub.s32 %s40, %s47
      %s367 = ssub.s32 %s39, %s51
      %s368 = sor.u32 %s366, %s367
      %p369 = scmp.eq.s32.totalorder %s368, 0
      %s371 = sadd.s32 %s370, 1
      %s372 = scalar_select %p369, %s370, %s371
      %p375 = pneg %p369
      %p376 = scmp.eq.s32.totalorder %s32, 3
      %p377 = por %p375, %p376
      %p378 = scmp.ne.s32.totalorder %s370, %s373
      %p379 = scmp.eq.s32.totalorder %s32, 0
      %p380 = por %p378, %p379
      %p381 = scmp.ne.s32.totalorder %s370, %s373
      %p382 = scmp.eq.s32.totalorder %s37, 3
      %p383 = por %p381, %p382
      %p384 = scmp.ne.s32.totalorder %s373, %s374
      %p385 = scmp.eq.s32.totalorder %s37, 0
      %p386 = por %p384, %p385
      %p387 = scmp.ne.s32.totalorder %s373, %s374
      %p388 = scmp.eq.s32.totalorder %s38, 3
      %p389 = por %p387, %p388
      %p391 = scmp.ne.s32.totalorder %s374, %s390
      %p392 = scmp.eq.s32.totalorder %s38, 0
      %p393 = por %p391, %p392
      %p394 = scmp.le.s32.totalorder 1, %s32
      %p395 = scmp.lt.s32.totalorder %s32, 5
      %p396 = pnand %p394, %p395
      %p397 = pneg %p396
      // Predicated region
      $region9: #{encoder_similarity.1} parent=5 // pred_check
        _
      $region10: #{encoder_similarity.1} parent=5 // pred_check_branch
        %399 = sbr.rel (%p396) target = $region12
      $region11: #{encoder_similarity.1} parent=5 // pred_region
        %s400 = ssub.s32 %s32, 1
        // Predicated region
        $region13: #{encoder_similarity.1} parent=11 // pred_check
          %p401 = pneg %p70
        $region14: #{encoder_similarity.1} parent=11 // pred_check_branch
          %403 = sbr.rel (%p401) target = $region16
        $region15: #{encoder_similarity.1} parent=11 // pred_region
          %s404 = smul.u32 8, %s41
          %p405 = scmp.lt.s32.totalorder %s404, 7
          %s406 = scalar_select %p405, %s404, 7
          %s407 = smul.addr %s406, 2
          %s408 = smul.addr %s407, 8
          %s409 = scalar_lea.vmem %s1, %s408
          %s410 = smul.u32 8, %s41
        $region16: #{encoder_similarity.1} parent=11 // pred_fallthru
          _
        // Predicated region
        $region17: #{encoder_similarity.1} parent=11 // pred_check
          %p411 = pneg %p96
        $region18: #{encoder_similarity.1} parent=11 // pred_check_branch
          %413 = sbr.rel (%p411) target = $region20
        $region19: #{encoder_similarity.1} parent=11 // pred_region
          %s414 = smul.u32 8, %s41
          %p415 = scmp.lt.s32.totalorder %s414, 7
          %s416 = scalar_select %p415, %s414, 7
          %s417 = scalar_lea.vmem %s2, %s416
          %s418 = smul.u32 8, %s41
        $region20: #{encoder_similarity.1} parent=11 // pred_fallthru
          _
        // Predicated region
        $region21: #{encoder_similarity.1} parent=11 // pred_check
          %p419 = pneg %p169
        $region22: #{encoder_similarity.1} parent=11 // pred_check_branch
          %421 = sbr.rel (%p419) target = $region24
        $region23: #{encoder_similarity.1} parent=11 // pred_region
          _
        $region24: #{encoder_similarity.1} parent=11 // pred_fallthru
          _
        // Predicated region
        $region25: #{encoder_similarity.1} parent=11 // pred_check
          %p422 = pneg %p190
        $region26: #{encoder_similarity.1} parent=11 // pred_check_branch
          %424 = sbr.rel (%p422) target = $region28
        $region27: #{encoder_similarity.1} parent=11 // pred_region
          _
        $region28: #{encoder_similarity.1} parent=11 // pred_fallthru
          _
        // Predicated region
        $region29: #{encoder_similarity.1} parent=11 // pred_check
          %p425 = pneg %p211
        $region30: #{encoder_similarity.1} parent=11 // pred_check_branch
          %427 = sbr.rel (%p425) target = $region32
        $region31: #{encoder_similarity.1} parent=11 // pred_region
          _
        $region32: #{encoder_similarity.1} parent=11 // pred_fallthru
          _
        // Predicated region
        $region33: #{encoder_similarity.1} parent=11 // pred_check
          %p428 = pneg %p232
        $region34: #{encoder_similarity.1} parent=11 // pred_check_branch
          %430 = sbr.rel (%p428) target = $region36
        $region35: #{encoder_similarity.1} parent=11 // pred_region
          _
        $region36: #{encoder_similarity.1} parent=11 // pred_fallthru
          _
        // Predicated region
        $region37: #{encoder_similarity.1} parent=11 // pred_check
          %p431 = pneg %p253
        $region38: #{encoder_similarity.1} parent=11 // pred_check_branch
          %433 = sbr.rel (%p431) target = $region40
        $region39: #{encoder_similarity.1} parent=11 // pred_region
          _
        $region40: #{encoder_similarity.1} parent=11 // pred_fallthru
          _
        // Predicated region
        $region41: #{encoder_similarity.1} parent=11 // pred_check
          %p434 = pneg %p274
        $region42: #{encoder_similarity.1} parent=11 // pred_check_branch
          %436 = sbr.rel (%p434) target = $region44
        $region43: #{encoder_similarity.1} parent=11 // pred_region
          _
        $region44: #{encoder_similarity.1} parent=11 // pred_fallthru
          _
        // Predicated region
        $region45: #{encoder_similarity.1} parent=11 // pred_check
          %p437 = pneg %p295
        $region46: #{encoder_similarity.1} parent=11 // pred_check_branch
          %439 = sbr.rel (%p437) target = $region48
        $region47: #{encoder_similarity.1} parent=11 // pred_region
          _
        $region48: #{encoder_similarity.1} parent=11 // pred_fallthru
          _
        // Predicated region
        $region49: #{encoder_similarity.1} parent=11 // pred_check
          %p440 = pneg %p316
        $region50: #{encoder_similarity.1} parent=11 // pred_check_branch
          %442 = sbr.rel (%p440) target = $region52
        $region51: #{encoder_similarity.1} parent=11 // pred_region
          _
        $region52: #{encoder_similarity.1} parent=11 // pred_fallthru
          _
        // Predicated region
        $region53: #{encoder_similarity.1} parent=11 // pred_check
          %p443 = pneg %p337
        $region54: #{encoder_similarity.1} parent=11 // pred_check_branch
          %445 = sbr.rel (%p443) target = $region56
        $region55: #{encoder_similarity.1} parent=11 // pred_region
          _
        $region56: #{encoder_similarity.1} parent=11 // pred_fallthru
          _
        // Predicated region
        $region57: #{encoder_similarity.1} parent=11 // pred_check
          %p446 = pneg %p358
        $region58: #{encoder_similarity.1} parent=11 // pred_check_branch
          %448 = sbr.rel (%p446) target = $region60
        $region59: #{encoder_similarity.1} parent=11 // pred_region
          _
        $region60: #{encoder_similarity.1} parent=11 // pred_fallthru
          _
      $region12: #{encoder_similarity.1} parent=5 // pred_fallthru
        _
      %p449 = scmp.lt.s32.totalorder %s32, 4
      // Predicated region
      $region61: #{encoder_similarity.1} parent=5 // pred_check
        %p450 = pneg %p449
      $region62: #{encoder_similarity.1} parent=5 // pred_check_branch
        %452 = sbr.rel (%p450) target = $region64
      $region63: #{encoder_similarity.1} parent=5 // pred_region
        // Predicated region
        $region65: #{encoder_similarity.1} parent=63 // pred_check
          %p453 = pneg %p116
        $region66: #{encoder_similarity.1} parent=63 // pred_check_branch
          %455 = sbr.rel (%p453) target = $region68
        $region67: #{encoder_similarity.1} parent=63 // pred_region
          %p456 = scmp.lt.s32.totalorder %s40, 3
          %s457 = scalar_select %p456, %s40, 3
          %s458 = smul.addr %s457, 2
          %s459 = smul.addr %s458, 8
          %s460 = scalar_lea.vmem %s3, %s459
        $region68: #{encoder_similarity.1} parent=63 // pred_fallthru
          _
        // Predicated region
        $region69: #{encoder_similarity.1} parent=63 // pred_check
          %p461 = pneg %p142
        $region70: #{encoder_similarity.1} parent=63 // pred_check_branch
          %463 = sbr.rel (%p461) target = $region72
        $region71: #{encoder_similarity.1} parent=63 // pred_region
          %p464 = scmp.lt.s32.totalorder %s40, 3
          %s465 = scalar_select %p464, %s40, 3
          %s466 = scalar_lea.vmem %s4, %s465
        $region72: #{encoder_similarity.1} parent=63 // pred_fallthru
          _
      $region64: #{encoder_similarity.1} parent=5 // pred_fallthru
        _
      %p467 = scmp.le.s32.totalorder 1, %s32
      %p468 = scmp.lt.s32.totalorder %s32, 5
      %p469 = pnand %p467, %p468
      %p470 = pneg %p469
      // Predicated region
      $region73: #{encoder_similarity.1} parent=5 // pred_check
        _
      $region74: #{encoder_similarity.1} parent=5 // pred_check_branch
        %472 = sbr.rel (%p469) target = $region76
      $region75: #{encoder_similarity.1} parent=5 // pred_region
        %s473 = ssub.s32 %s32, 1
        %s474 = smul.u32 8, %s41
        %p475 = scmp.lt.s32.totalorder %s474, 7
        %s476 = scalar_select %p475, %s474, 7
        %s477 = smul.addr %s476, 2
        %s478 = smul.addr %s477, 8
        %s479 = scalar_lea.vmem %s1, %s478
        %p480 = pneg %p70
        %p481 = pneg %p67
        %s482 = smul.u32 8, %s41
        %p483 = scmp.lt.s32.totalorder %s482, 7
        %s484 = scalar_select %p483, %s482, 7
        %s485 = scalar_lea.vmem %s2, %s484
        %p486 = pneg %p96
        %p487 = pneg %p93
        %p488 = scmp.lt.s32.totalorder %s42, 3
        %s489 = scalar_select %p488, %s42, 3
        %s490 = smul.addr %s489, 2
        %s491 = smul.addr %s490, 8
        %s492 = scalar_lea.vmem %s3, %s491
        %p493 = pneg %p122
        %p494 = pneg %p119
        %p495 = scmp.lt.s32.totalorder %s42, 3
        %s496 = scalar_select %p495, %s42, 3
        %s497 = scalar_lea.vmem %s4, %s496
        %p498 = pneg %p148
        %p499 = pneg %p145
        %p500 = pneg %p169
        %p501 = pneg %p166
        %p502 = pneg %p190
        %p503 = pneg %p187
        %p504 = pneg %p211
        %p505 = pneg %p208
        %p506 = pneg %p232
        %p507 = pneg %p229
        %p508 = pneg %p253
        %p509 = pneg %p250
        %p510 = pneg %p274
        %p511 = pneg %p271
        %p512 = pneg %p295
        %p513 = pneg %p292
        %p514 = pneg %p316
        %p515 = pneg %p313
        %p516 = pneg %p337
        %p517 = pneg %p334
        %p518 = pneg %p358
        %p519 = pneg %p355
        %p520 = pneg %p386
        %p521 = pneg %p383
        %s522 = sand.u32 %s373, 1
        %s523 = scalar_lea.sflag [#allocation6], %s522
        %s524 = sand.u32 %s373, 1
        %s525 = scalar_lea.vmem [#allocation5], %s524
        %s526 = smul.u32 8, %s41
        %p527 = scmp.lt.s32.totalorder %s526, 7
        %s528 = scalar_select %p527, %s526, 7
        %s529 = smul.addr %s528, 2
        %s530 = smul.addr %s529, 8
        %s531 = scalar_lea.vmem %s1, %s530
        %s532 = smul.u32 8, %s41
        %s533 = smul.u32 8, %s41
        %p534 = scmp.lt.s32.totalorder %s533, 7
        %s535 = scalar_select %p534, %s533, 7
        %s536 = scalar_lea.vmem %s2, %s535
        %s537 = smul.u32 8, %s41
        %p538 = scmp.lt.s32.totalorder %s42, 3
        %s539 = scalar_select %p538, %s42, 3
        %s540 = smul.addr %s539, 2
        %s541 = smul.addr %s540, 8
        %s542 = scalar_lea.vmem %s3, %s541
        %p543 = scmp.lt.s32.totalorder %s42, 3
        %s544 = scalar_select %p543, %s42, 3
        %s545 = scalar_lea.vmem %s4, %s544
        %s547 = sld [smem:[#allocation3 + %s42]]
        %v548 = vld [vmem:[%s531] sm:$0xff]
        %v549 = vld [vmem:[%s531 + $0x8] sm:$0xff]
        %v550 = vld [vmem:[%s531 + $0x10] sm:$0xff]
        %v551 = vld [vmem:[%s531 + $0x18] sm:$0xff]
        %v552 = vld [vmem:[%s531 + $0x20] sm:$0xff]
        %v553 = vld [vmem:[%s531 + $0x28] sm:$0xff]
        %v554 = vld [vmem:[%s531 + $0x30] sm:$0xff]
        %v555 = vld [vmem:[%s531 + $0x38] sm:$0xff]
        %v556 = vld [vmem:[%s531 + $0x40] sm:$0xff]
        %v557 = vld [vmem:[%s531 + $0x48] sm:$0xff]
        %v558 = vld [vmem:[%s531 + $0x50] sm:$0xff]
        %v559 = vld [vmem:[%s531 + $0x58] sm:$0xff]
        %v560 = vld [vmem:[%s531 + $0x60] sm:$0xff]
        %v561 = vld [vmem:[%s531 + $0x68] sm:$0xff]
        %v562 = vld [vmem:[%s531 + $0x70] sm:$0xff]
        %v563 = vld [vmem:[%s531 + $0x78] sm:$0xff]
        %v564 = vld [vmem:[%s536] sm:$0x1]
        %v565 = vld [vmem:[%s536 + $0x1] sm:$0x1]
        %v566 = vld [vmem:[%s536 + $0x2] sm:$0x1]
        %v567 = vld [vmem:[%s536 + $0x3] sm:$0x1]
        %v568 = vld [vmem:[%s536 + $0x4] sm:$0x1]
        %v569 = vld [vmem:[%s536 + $0x5] sm:$0x1]
        %v570 = vld [vmem:[%s536 + $0x6] sm:$0x1]
        %v571 = vld [vmem:[%s536 + $0x7] sm:$0x1]
        %v572 = vld [vmem:[%s542] sm:$0xff]
        %v573 = vld [vmem:[%s542 + $0x8] sm:$0xff]
        %v574 = vld [vmem:[%s545] sm:$0x1]
        %v575 = vpack.c.bf16 %v549, %v548
        %v576 = vpack.c.bf16 %v551, %v550
        %v577 = vpack.c.bf16 %v553, %v552
        %v578 = vpack.c.bf16 %v555, %v554
        %v579 = vpack.c.bf16 %v557, %v556
        %v580 = vpack.c.bf16 %v559, %v558
        %v581 = vpack.c.bf16 %v561, %v560
        %v582 = vpack.c.bf16 %v563, %v562
        %v583 = vpack.c.bf16 %v573, %v572
        %vm584 = vcmask 523264
        %v586 = vsel %vm584, %v575, 0
        %v589 = vsel %vm584, %v576, 0
        %v592 = vsel %vm584, %v577, 0
        %v595 = vsel %vm584, %v578, 0
        %v598 = vsel %vm584, %v579, 0
        %v601 = vsel %vm584, %v580, 0
        %v604 = vsel %vm584, %v581, 0
        %v607 = vsel %vm584, %v582, 0
        %v610 = vsel %vm584, %v583, 0
        %612 = vmatprep.subr.bf16.mxu0 0
        %613 = vmatpush1.bf16.xpose.msra.mxu0 %v610
        %614 = vmatprep.subr.bf16.mxu0 0
        %615 = vmatpush1.bf16.xpose.msra.mxu0 0
        %616 = vmatprep.subr.bf16.mxu0 0
        %617 = vmatpush1.bf16.xpose.msra.mxu0 0
        %618 = vmatprep.subr.bf16.mxu0 0
        %619 = vmatpush1.bf16.xpose.msra.mxu0 0
        %620 = vmatprep.subr.bf16.mxu0 0
        %621 = vmatpush1.bf16.xpose.msra.mxu0 0
        %622 = vmatprep.subr.bf16.mxu0 0
        %623 = vmatpush1.bf16.xpose.msra.mxu0 0
        %624 = vmatprep.subr.bf16.mxu0 0
        %625 = vmatpush1.bf16.xpose.msra.mxu0 0
        %626 = vmatprep.subr.bf16.mxu0 0
        %627 = vmatpush1.bf16.xpose.msra.mxu0 0
        %628 = vmatprep.subr.bf16.mxu0 0
        %629 = vmatpush1.bf16.xpose.msra.mxu0 0
        %630 = vmatprep.subr.bf16.mxu0 0
        %631 = vmatpush1.bf16.xpose.msra.mxu0 0
        %632 = vmatprep.subr.bf16.mxu0 0
        %633 = vmatpush1.bf16.xpose.msra.mxu0 0
        %634 = vmatprep.subr.bf16.mxu0 0
        %635 = vmatpush1.bf16.xpose.msra.mxu0 0
        %636 = vmatprep.subr.bf16.mxu0 0
        %637 = vmatpush1.bf16.xpose.msra.mxu0 0
        %638 = vmatprep.subr.bf16.mxu0 0
        %639 = vmatpush1.bf16.xpose.msra.mxu0 0
        %640 = vmatprep.subr.bf16.mxu0 0
        %641 = vmatpush1.bf16.xpose.msra.mxu0 0
        %642 = vmatprep.subr.bf16.mxu0 0
        %643 = vmatpush1.bf16.xpose.msra.mxu0 0
        %644 = vmatprep.mubr.bf16.mxu0 0
        %645 = vmatmul.mubr.bf16.gmra.mrb[0].mxu0 %v586
        %v646 = vpop.f32.mrb[0].mxu0
        %v647 = vadd.f32 0.0, %v646
        %v648 = vpop.f32.mrb[0].mxu0
        %v649 = vpop.f32.mrb[0].mxu0
        %v650 = vadd.f32 0.0, %v649
        %v651 = vpop.f32.mrb[0].mxu0
        %652 = vmatprep.mubr.bf16.mxu0 0
        %653 = vmatmul.mubr.bf16.gmra.mrb[0].mxu0 %v589
        %v654 = vpop.f32.mrb[0].mxu0
        %v655 = vadd.f32 0.0, %v654
        %v656 = vpop.f32.mrb[0].mxu0
        %v657 = vpop.f32.mrb[0].mxu0
        %v658 = vadd.f32 0.0, %v657
        %v659 = vpop.f32.mrb[0].mxu0
        %660 = vmatprep.mubr.bf16.mxu0 0
        %661 = vmatmul.mubr.bf16.gmra.mrb[0].mxu0 %v592
        %v662 = vpop.f32.mrb[0].mxu0
        %v663 = vadd.f32 0.0, %v662
        %v664 = vpop.f32.mrb[0].mxu0
        %v665 = vpop.f32.mrb[0].mxu0
        %v666 = vadd.f32 0.0, %v665
        %v667 = vpop.f32.mrb[0].mxu0
        %668 = vmatprep.mubr.bf16.mxu0 0
        %669 = vmatmul.mubr.bf16.gmra.mrb[0].mxu0 %v595
        %v670 = vpop.f32.mrb[0].mxu0
        %v671 = vadd.f32 0.0, %v670
        %v672 = vpop.f32.mrb[0].mxu0
        %v673 = vpop.f32.mrb[0].mxu0
        %v674 = vadd.f32 0.0, %v673
        %v675 = vpop.f32.mrb[0].mxu0
        %676 = vmatprep.mubr.bf16.mxu0 0
        %677 = vmatmul.mubr.bf16.gmra.mrb[0].mxu0 %v598
        %v678 = vpop.f32.mrb[0].mxu0
        %v679 = vadd.f32 0.0, %v678
        %v680 = vpop.f32.mrb[0].mxu0
        %v681 = vpop.f32.mrb[0].mxu0
        %v682 = vadd.f32 0.0, %v681
        %v683 = vpop.f32.mrb[0].mxu0
        %684 = vmatprep.mubr.bf16.mxu0 0
        %685 = vmatmul.mubr.bf16.gmra.mrb[0].mxu0 %v601
        %v686 = vpop.f32.mrb[0].mxu0
        %v687 = vadd.f32 0.0, %v686
        %v688 = vpop.f32.mrb[0].mxu0
        %v689 = vpop.f32.mrb[0].mxu0
        %v690 = vadd.f32 0.0, %v689
        %v691 = vpop.f32.mrb[0].mxu0
        %692 = vmatprep.mubr.bf16.mxu0 0
        %693 = vmatmul.mubr.bf16.gmra.mrb[0].mxu0 %v604
        %v694 = vpop.f32.mrb[0].mxu0
        %v695 = vadd.f32 0.0, %v694
        %v696 = vpop.f32.mrb[0].mxu0
        %v697 = vpop.f32.mrb[0].mxu0
        %v698 = vadd.f32 0.0, %v697
        %v699 = vpop.f32.mrb[0].mxu0
        %700 = vmatprep.mubr.bf16.mxu0 0
        %701 = vmatmul.mubr.bf16.gmra.mrb[0].mxu0 %v607
        %v702 = vpop.f32.mrb[0].mxu0
        %v703 = vadd.f32 0.0, %v702
        %v704 = vpop.f32.mrb[0].mxu0
        %v705 = vpop.f32.mrb[0].mxu0
        %v706 = vadd.f32 0.0, %v705
        %v707 = vpop.f32.mrb[0].mxu0
        %708 = vdwg.mxu0
        %vm709 = vcmp.ge.f32.partialorder %v647, 0.0
        %vm710 = vcmp.ge.f32.partialorder %v650, 0.0
        %vm711 = vcmp.ge.f32.partialorder %v655, 0.0
        %vm712 = vcmp.ge.f32.partialorder %v658, 0.0
        %vm713 = vcmp.ge.f32.partialorder %v663, 0.0
        %vm714 = vcmp.ge.f32.partialorder %v666, 0.0
        %vm715 = vcmp.ge.f32.partialorder %v671, 0.0
        %vm716 = vcmp.ge.f32.partialorder %v674, 0.0
        %vm717 = vcmp.ge.f32.partialorder %v679, 0.0
        %vm718 = vcmp.ge.f32.partialorder %v682, 0.0
        %vm719 = vcmp.ge.f32.partialorder %v687, 0.0
        %vm720 = vcmp.ge.f32.partialorder %v690, 0.0
        %vm721 = vcmp.ge.f32.partialorder %v695, 0.0
        %vm722 = vcmp.ge.f32.partialorder %v698, 0.0
        %vm723 = vcmp.ge.f32.partialorder %v703, 0.0
        %vm724 = vcmp.ge.f32.partialorder %v706, 0.0
        %v725 = vmul.f32 %v647, 0.1
        %v726 = vmul.f32 %v650, 0.1
        %v727 = vmul.f32 %v655, 0.1
        %v728 = vmul.f32 %v658, 0.1
        %v729 = vmul.f32 %v663, 0.1
        %v730 = vmul.f32 %v666, 0.1
        %v731 = vmul.f32 %v671, 0.1
        %v732 = vmul.f32 %v674, 0.1
        %v733 = vmul.f32 %v679, 0.1
        %v734 = vmul.f32 %v682, 0.1
        %v735 = vmul.f32 %v687, 0.1
        %v736 = vmul.f32 %v690, 0.1
        %v737 = vmul.f32 %v695, 0.1
        %v738 = vmul.f32 %v698, 0.1
        %v739 = vmul.f32 %v703, 0.1
        %v740 = vmul.f32 %v706, 0.1
        %v741 = vsel %vm709, %v647, %v725
        %v742 = vsel %vm710, %v650, %v726
        %v743 = vsel %vm711, %v655, %v727
        %v744 = vsel %vm712, %v658, %v728
        %v745 = vsel %vm713, %v663, %v729
        %v746 = vsel %vm714, %v666, %v730
        %v747 = vsel %vm715, %v671, %v731
        %v748 = vsel %vm716, %v674, %v732
        %v749 = vsel %vm717, %v679, %v733
        %v750 = vsel %vm718, %v682, %v734
        %v751 = vsel %vm719, %v687, %v735
        %v752 = vsel %vm720, %v690, %v736
        %v753 = vsel %vm721, %v695, %v737
        %v754 = vsel %vm722, %v698, %v738
        %v755 = vsel %vm723, %v703, %v739
        %v756 = vsel %vm724, %v706, %v740
        %v757 = vmul.f32 %v741, 9.0
        %v758 = vmul.f32 %v742, 9.0
        %v759 = vmul.f32 %v743, 9.0
        %v760 = vmul.f32 %v744, 9.0
        %v761 = vmul.f32 %v745, 9.0
        %v762 = vmul.f32 %v746, 9.0
        %v763 = vmul.f32 %v747, 9.0
        %v764 = vmul.f32 %v748, 9.0
        %v765 = vmul.f32 %v749, 9.0
        %v766 = vmul.f32 %v750, 9.0
        %v767 = vmul.f32 %v751, 9.0
        %v768 = vmul.f32 %v752, 9.0
        %v769 = vmul.f32 %v753, 9.0
        %v770 = vmul.f32 %v754, 9.0
        %v771 = vmul.f32 %v755, 9.0
        %v772 = vmul.f32 %v756, 9.0
        %vm773 = vcmask 130048
        %v774 = vsel %vm773, %v757, -inf
        %v775 = vsel %vm773, %v758, -inf
        %v776 = vmax.f32 %v774, %v775
        %v777 = vrot.slane %v776, 4
        %v778 = vmax.f32 %v776, %v777
        %v779 = vrot.slane %v778, 2
        %v780 = vmax.f32 %v778, %v779
        %v781 = vrot.slane %v780, 1
        %v782 = vmax.f32 %v780, %v781
        %v783 = vsel %vm773, %v759, -inf
        %v784 = vsel %vm773, %v760, -inf
        %v785 = vmax.f32 %v783, %v784
        %v786 = vrot.slane %v785, 4
        %v787 = vmax.f32 %v785, %v786
        %v788 = vrot.slane %v787, 2
        %v789 = vmax.f32 %v787, %v788
        %v790 = vrot.slane %v789, 1
        %v791 = vmax.f32 %v789, %v790
        %v792 = vsel %vm773, %v761, -inf
        %v793 = vsel %vm773, %v762, -inf
        %v794 = vmax.f32 %v792, %v793
        %v795 = vrot.slane %v794, 4
        %v796 = vmax.f32 %v794, %v795
        %v797 = vrot.slane %v796, 2
        %v798 = vmax.f32 %v796, %v797
        %v799 = vrot.slane %v798, 1
        %v800 = vmax.f32 %v798, %v799
        %v801 = vsel %vm773, %v763, -inf
        %v802 = vsel %vm773, %v764, -inf
        %v803 = vmax.f32 %v801, %v802
        %v804 = vrot.slane %v803, 4
        %v805 = vmax.f32 %v803, %v804
        %v806 = vrot.slane %v805, 2
        %v807 = vmax.f32 %v805, %v806
        %v808 = vrot.slane %v807, 1
        %v809 = vmax.f32 %v807, %v808
        %v810 = vsel %vm773, %v765, -inf
        %v811 = vsel %vm773, %v766, -inf
        %v812 = vmax.f32 %v810, %v811
        %v813 = vrot.slane %v812, 4
        %v814 = vmax.f32 %v812, %v813
        %v815 = vrot.slane %v814, 2
        %v816 = vmax.f32 %v814, %v815
        %v817 = vrot.slane %v816, 1
        %v818 = vmax.f32 %v816, %v817
        %v819 = vsel %vm773, %v767, -inf
        %v820 = vsel %vm773, %v768, -inf
        %v821 = vmax.f32 %v819, %v820
        %v822 = vrot.slane %v821, 4
        %v823 = vmax.f32 %v821, %v822
        %v824 = vrot.slane %v823, 2
        %v825 = vmax.f32 %v823, %v824
        %v826 = vrot.slane %v825, 1
        %v827 = vmax.f32 %v825, %v826
        %v828 = vsel %vm773, %v769, -inf
        %v829 = vsel %vm773, %v770, -inf
        %v830 = vmax.f32 %v828, %v829
        %v831 = vrot.slane %v830, 4
        %v832 = vmax.f32 %v830, %v831
        %v833 = vrot.slane %v832, 2
        %v834 = vmax.f32 %v832, %v833
        %v835 = vrot.slane %v834, 1
        %v836 = vmax.f32 %v834, %v835
        %v837 = vsel %vm773, %v771, -inf
        %v838 = vsel %vm773, %v772, -inf
        %v839 = vmax.f32 %v837, %v838
        %v840 = vrot.slane %v839, 4
        %v841 = vmax.f32 %v839, %v840
        %v842 = vrot.slane %v841, 2
        %v843 = vmax.f32 %v841, %v842
        %v844 = vrot.slane %v843, 1
        %v845 = vmax.f32 %v843, %v844
        %v846 = vsub.f32 %v757, %v782
        %v847 = vsub.f32 %v758, %v782
        %v848 = vsub.f32 %v759, %v791
        %v849 = vsub.f32 %v760, %v791
        %v850 = vsub.f32 %v761, %v800
        %v851 = vsub.f32 %v762, %v800
        %v852 = vsub.f32 %v763, %v809
        %v853 = vsub.f32 %v764, %v809
        %v854 = vsub.f32 %v765, %v818
        %v855 = vsub.f32 %v766, %v818
        %v856 = vsub.f32 %v767, %v827
        %v857 = vsub.f32 %v768, %v827
        %v858 = vsub.f32 %v769, %v836
        %v859 = vsub.f32 %v770, %v836
        %v860 = vsub.f32 %v771, %v845
        %v861 = vsub.f32 %v772, %v845
        %v862 = vmul.f32 %v846, 1.442695
        %v863 = vpow.pop %v862
        %v864 = vmul.f32 %v847, 1.442695
        %v865 = vpow.pop %v864
        %v866 = vmul.f32 %v848, 1.442695
        %v867 = vpow.pop %v866
        %v868 = vmul.f32 %v849, 1.442695
        %v869 = vpow.pop %v868
        %v870 = vmul.f32 %v850, 1.442695
        %v871 = vpow.pop %v870
        %v872 = vmul.f32 %v851, 1.442695
        %v873 = vpow.pop %v872
        %v874 = vmul.f32 %v852, 1.442695
        %v875 = vpow.pop %v874
        %v876 = vmul.f32 %v853, 1.442695
        %v877 = vpow.pop %v876
        %v878 = vmul.f32 %v854, 1.442695
        %v879 = vpow.pop %v878
        %v880 = vmul.f32 %v855, 1.442695
        %v881 = vpow.pop %v880
        %v882 = vmul.f32 %v856, 1.442695
        %v883 = vpow.pop %v882
        %v884 = vmul.f32 %v857, 1.442695
        %v885 = vpow.pop %v884
        %v886 = vmul.f32 %v858, 1.442695
        %v887 = vpow.pop %v886
        %v888 = vmul.f32 %v859, 1.442695
        %v889 = vpow.pop %v888
        %v890 = vmul.f32 %v860, 1.442695
        %v891 = vpow.pop %v890
        %v892 = vmul.f32 %v861, 1.442695
        %v893 = vpow.pop %v892
        %v894 = vsel %vm773, %v863, 0.0
        %v895 = vsel %vm773, %v865, 0.0
        %v896 = vadd.f32 %v894, %v895
        %v897 = vrot.slane %v896, 4
        %v898 = vadd.f32 %v896, %v897
        %v899 = vrot.slane %v898, 2
        %v900 = vadd.f32 %v898, %v899
        %v901 = vrot.slane %v900, 1
        %v902 = vadd.f32 %v900, %v901
        %v903 = vsel %vm773, %v867, 0.0
        %v904 = vsel %vm773, %v869, 0.0
        %v905 = vadd.f32 %v903, %v904
        %v906 = vrot.slane %v905, 4
        %v907 = vadd.f32 %v905, %v906
        %v908 = vrot.slane %v907, 2
        %v909 = vadd.f32 %v907, %v908
        %v910 = vrot.slane %v909, 1
        %v911 = vadd.f32 %v909, %v910
        %v912 = vsel %vm773, %v871, 0.0
        %v913 = vsel %vm773, %v873, 0.0
        %v914 = vadd.f32 %v912, %v913
        %v915 = vrot.slane %v914, 4
        %v916 = vadd.f32 %v914, %v915
        %v917 = vrot.slane %v916, 2
        %v918 = vadd.f32 %v916, %v917
        %v919 = vrot.slane %v918, 1
        %v920 = vadd.f32 %v918, %v919
        %v921 = vsel %vm773, %v875, 0.0
        %v922 = vsel %vm773, %v877, 0.0
        %v923 = vadd.f32 %v921, %v922
        %v924 = vrot.slane %v923, 4
        %v925 = vadd.f32 %v923, %v924
        %v926 = vrot.slane %v925, 2
        %v927 = vadd.f32 %v925, %v926
        %v928 = vrot.slane %v927, 1
        %v929 = vadd.f32 %v927, %v928
        %v930 = vsel %vm773, %v879, 0.0
        %v931 = vsel %vm773, %v881, 0.0
        %v932 = vadd.f32 %v930, %v931
        %v933 = vrot.slane %v932, 4
        %v934 = vadd.f32 %v932, %v933
        %v935 = vrot.slane %v934, 2
        %v936 = vadd.f32 %v934, %v935
        %v937 = vrot.slane %v936, 1
        %v938 = vadd.f32 %v936, %v937
        %v939 = vsel %vm773, %v883, 0.0
        %v940 = vsel %vm773, %v885, 0.0
        %v941 = vadd.f32 %v939, %v940
        %v942 = vrot.slane %v941, 4
        %v943 = vadd.f32 %v941, %v942
        %v944 = vrot.slane %v943, 2
        %v945 = vadd.f32 %v943, %v944
        %v946 = vrot.slane %v945, 1
        %v947 = vadd.f32 %v945, %v946
        %v948 = vsel %vm773, %v887, 0.0
        %v949 = vsel %vm773, %v889, 0.0
        %v950 = vadd.f32 %v948, %v949
        %v951 = vrot.slane %v950, 4
        %v952 = vadd.f32 %v950, %v951
        %v953 = vrot.slane %v952, 2
        %v954 = vadd.f32 %v952, %v953
        %v955 = vrot.slane %v954, 1
        %v956 = vadd.f32 %v954, %v955
        %v957 = vsel %vm773, %v891, 0.0
        %v958 = vsel %vm773, %v893, 0.0
        %v959 = vadd.f32 %v957, %v958
        %v960 = vrot.slane %v959, 4
        %v961 = vadd.f32 %v959, %v960
        %v962 = vrot.slane %v961, 2
        %v963 = vadd.f32 %v961, %v962
        %v964 = vrot.slane %v963, 1
        %v965 = vadd.f32 %v963, %v964
        %v966 = vrcp.pop %v902
        %v967 = vrcp.pop %v911
        %v968 = vrcp.pop %v920
        %v969 = vrcp.pop %v929
        %v970 = vrcp.pop %v938
        %v971 = vrcp.pop %v947
        %v972 = vrcp.pop %v956
        %v973 = vrcp.pop %v965
        %v974 = vmul.f32 %v863, %v966
        %v975 = vmul.f32 %v865, %v966
        %v976 = vmul.f32 %v867, %v967
        %v977 = vmul.f32 %v869, %v967
        %v978 = vmul.f32 %v871, %v968
        %v979 = vmul.f32 %v873, %v968
        %v980 = vmul.f32 %v875, %v969
        %v981 = vmul.f32 %v877, %v969
        %v982 = vmul.f32 %v879, %v970
        %v983 = vmul.f32 %v881, %v970
        %v984 = vmul.f32 %v883, %v971
        %v985 = vmul.f32 %v885, %v971
        %v986 = vmul.f32 %v887, %v972
        %v987 = vmul.f32 %v889, %v972
        %v988 = vmul.f32 %v891, %v973
        %v989 = vmul.f32 %v893, %v973
        %990 = vxpose.xlu0.b32.start [1/16] %v974, 128
        %991 = vxpose.xlu0.b32.cont [2/16] %v975, 128
        %992 = vxpose.xlu0.b32.cont [3/16] 0.0, 128
        %993 = vxpose.xlu0.b32.cont [4/16] 0.0, 128
        %994 = vxpose.xlu0.b32.cont [5/16] 0.0, 128
        %995 = vxpose.xlu0.b32.cont [6/16] 0.0, 128
        %996 = vxpose.xlu0.b32.cont [7/16] 0.0, 128
        %997 = vxpose.xlu0.b32.cont [8/16] 0.0, 128
        %998 = vxpose.xlu0.b32.cont [9/16] 0.0, 128
        %999 = vxpose.xlu0.b32.cont [10/16] 0.0, 128
        %1000 = vxpose.xlu0.b32.cont [11/16] 0.0, 128
        %1001 = vxpose.xlu0.b32.cont [12/16] 0.0, 128
        %1002 = vxpose.xlu0.b32.cont [13/16] 0.0, 128
        %1003 = vxpose.xlu0.b32.cont [14/16] 0.0, 128
        %1004 = vxpose.xlu0.b32.cont [15/16] 0.0, 128
        %1005 = vxpose.xlu0.b32.end [16/16] 0.0, 128
        %v1006 = vpop.trf.xlu0
        %v1007 = vpop.trf.xlu0
        %v1008 = vpop.trf.xlu0
        %v1009 = vpop.trf.xlu0
        %v1010 = vpop.trf.xlu0
        %v1011 = vpop.trf.xlu0
        %v1012 = vpop.trf.xlu0
        %v1013 = vpop.trf.xlu0
        %v1014 = vpop.trf.xlu0
        %v1015 = vpop.trf.xlu0
        %v1016 = vpop.trf.xlu0
        %v1017 = vpop.trf.xlu0
        %v1018 = vpop.trf.xlu0
        %v1019 = vpop.trf.xlu0
        %v1020 = vpop.trf.xlu0
        %v1021 = vpop.trf.xlu0
        %1022 = vxpose.xlu0.b32.start [1/16] %v976, 128
        %1023 = vxpose.xlu0.b32.cont [2/16] %v977, 128
        %1024 = vxpose.xlu0.b32.cont [3/16] 0.0, 128
        %1025 = vxpose.xlu0.b32.cont [4/16] 0.0, 128
        %1026 = vxpose.xlu0.b32.cont [5/16] 0.0, 128
        %1027 = vxpose.xlu0.b32.cont [6/16] 0.0, 128
        %1028 = vxpose.xlu0.b32.cont [7/16] 0.0, 128
        %1029 = vxpose.xlu0.b32.cont [8/16] 0.0, 128
        %1030 = vxpose.xlu0.b32.cont [9/16] 0.0, 128
        %1031 = vxpose.xlu0.b32.cont [10/16] 0.0, 128
        %1032 = vxpose.xlu0.b32.cont [11/16] 0.0, 128
        %1033 = vxpose.xlu0.b32.cont [12/16] 0.0, 128
        %1034 = vxpose.xlu0.b32.cont [13/16] 0.0, 128
        %1035 = vxpose.xlu0.b32.cont [14/16] 0.0, 128
        %1036 = vxpose.xlu0.b32.cont [15/16] 0.0, 128
        %1037 = vxpose.xlu0.b32.end [16/16] 0.0, 128
        %v1038 = vpop.trf.xlu0
        %v1039 = vpop.trf.xlu0
        %v1040 = vpop.trf.xlu0
        %v1041 = vpop.trf.xlu0
        %v1042 = vpop.trf.xlu0
        %v1043 = vpop.trf.xlu0
        %v1044 = vpop.trf.xlu0
        %v1045 = vpop.trf.xlu0
        %v1046 = vpop.trf.xlu0
        %v1047 = vpop.trf.xlu0
        %v1048 = vpop.trf.xlu0
        %v1049 = vpop.trf.xlu0
        %v1050 = vpop.trf.xlu0
        %v1051 = vpop.trf.xlu0
        %v1052 = vpop.trf.xlu0
        %v1053 = vpop.trf.xlu0
        %1054 = vxpose.xlu0.b32.start [1/16] %v978, 128
        %1055 = vxpose.xlu0.b32.cont [2/16] %v979, 128
        %1056 = vxpose.xlu0.b32.cont [3/16] 0.0, 128
        %1057 = vxpose.xlu0.b32.cont [4/16] 0.0, 128
        %1058 = vxpose.xlu0.b32.cont [5/16] 0.0, 128
        %1059 = vxpose.xlu0.b32.cont [6/16] 0.0, 128
        %1060 = vxpose.xlu0.b32.cont [7/16] 0.0, 128
        %1061 = vxpose.xlu0.b32.cont [8/16] 0.0, 128
        %1062 = vxpose.xlu0.b32.cont [9/16] 0.0, 128
        %1063 = vxpose.xlu0.b32.cont [10/16] 0.0, 128
        %1064 = vxpose.xlu0.b32.cont [11/16] 0.0, 128
        %1065 = vxpose.xlu0.b32.cont [12/16] 0.0, 128
        %1066 = vxpose.xlu0.b32.cont [13/16] 0.0, 128
        %1067 = vxpose.xlu0.b32.cont [14/16] 0.0, 128
        %1068 = vxpose.xlu0.b32.cont [15/16] 0.0, 128
        %1069 = vxpose.xlu0.b32.end [16/16] 0.0, 128
        %v1070 = vpop.trf.xlu0
        %v1071 = vpop.trf.xlu0
        %v1072 = vpop.trf.xlu0
        %v1073 = vpop.trf.xlu0
        %v1074 = vpop.trf.xlu0
        %v1075 = vpop.trf.xlu0
        %v1076 = vpop.trf.xlu0
        %v1077 = vpop.trf.xlu0
        %v1078 = vpop.trf.xlu0
        %v1079 = vpop.trf.xlu0
        %v1080 = vpop.trf.xlu0
        %v1081 = vpop.trf.xlu0
        %v1082 = vpop.trf.xlu0
        %v1083 = vpop.trf.xlu0
        %v1084 = vpop.trf.xlu0
        %v1085 = vpop.trf.xlu0
        %1086 = vxpose.xlu0.b32.start [1/16] %v980, 128
        %1087 = vxpose.xlu0.b32.cont [2/16] %v981, 128
        %1088 = vxpose.xlu0.b32.cont [3/16] 0.0, 128
        %1089 = vxpose.xlu0.b32.cont [4/16] 0.0, 128
        %1090 = vxpose.xlu0.b32.cont [5/16] 0.0, 128
        %1091 = vxpose.xlu0.b32.cont [6/16] 0.0, 128
        %1092 = vxpose.xlu0.b32.cont [7/16] 0.0, 128
        %1093 = vxpose.xlu0.b32.cont [8/16] 0.0, 128
        %1094 = vxpose.xlu0.b32.cont [9/16] 0.0, 128
        %1095 = vxpose.xlu0.b32.cont [10/16] 0.0, 128
        %1096 = vxpose.xlu0.b32.cont [11/16] 0.0, 128
        %1097 = vxpose.xlu0.b32.cont [12/16] 0.0, 128
        %1098 = vxpose.xlu0.b32.cont [13/16] 0.0, 128
        %1099 = vxpose.xlu0.b32.cont [14/16] 0.0, 128
        %1100 = vxpose.xlu0.b32.cont [15/16] 0.0, 128
        %1101 = vxpose.xlu0.b32.end [16/16] 0.0, 128
        %v1102 = vpop.trf.xlu0
        %v1103 = vpop.trf.xlu0
        %v1104 = vpop.trf.xlu0
        %v1105 = vpop.trf.xlu0
        %v1106 = vpop.trf.xlu0
        %v1107 = vpop.trf.xlu0
        %v1108 = vpop.trf.xlu0
        %v1109 = vpop.trf.xlu0
        %v1110 = vpop.trf.xlu0
        %v1111 = vpop.trf.xlu0
        %v1112 = vpop.trf.xlu0
        %v1113 = vpop.trf.xlu0
        %v1114 = vpop.trf.xlu0
        %v1115 = vpop.trf.xlu0
        %v1116 = vpop.trf.xlu0
        %v1117 = vpop.trf.xlu0
        %1118 = vxpose.xlu0.b32.start [1/16] %v982, 128
        %1119 = vxpose.xlu0.b32.cont [2/16] %v983, 128
        %1120 = vxpose.xlu0.b32.cont [3/16] 0.0, 128
        %1121 = vxpose.xlu0.b32.cont [4/16] 0.0, 128
        %1122 = vxpose.xlu0.b32.cont [5/16] 0.0, 128
        %1123 = vxpose.xlu0.b32.cont [6/16] 0.0, 128
        %1124 = vxpose.xlu0.b32.cont [7/16] 0.0, 128
        %1125 = vxpose.xlu0.b32.cont [8/16] 0.0, 128
        %1126 = vxpose.xlu0.b32.cont [9/16] 0.0, 128
        %1127 = vxpose.xlu0.b32.cont [10/16] 0.0, 128
        %1128 = vxpose.xlu0.b32.cont [11/16] 0.0, 128
        %1129 = vxpose.xlu0.b32.cont [12/16] 0.0, 128
        %1130 = vxpose.xlu0.b32.cont [13/16] 0.0, 128
        %1131 = vxpose.xlu0.b32.cont [14/16] 0.0, 128
        %1132 = vxpose.xlu0.b32.cont [15/16] 0.0, 128
        %1133 = vxpose.xlu0.b32.end [16/16] 0.0, 128
        %v1134 = vpop.trf.xlu0
        %v1135 = vpop.trf.xlu0
        %v1136 = vpop.trf.xlu0
        %v1137 = vpop.trf.xlu0
        %v1138 = vpop.trf.xlu0
        %v1139 = vpop.trf.xlu0
        %v1140 = vpop.trf.xlu0
        %v1141 = vpop.trf.xlu0
        %v1142 = vpop.trf.xlu0
        %v1143 = vpop.trf.xlu0
        %v1144 = vpop.trf.xlu0
        %v1145 = vpop.trf.xlu0
        %v1146 = vpop.trf.xlu0
        %v1147 = vpop.trf.xlu0
        %v1148 = vpop.trf.xlu0
        %v1149 = vpop.trf.xlu0
        %1150 = vxpose.xlu0.b32.start [1/16] %v984, 128
        %1151 = vxpose.xlu0.b32.cont [2/16] %v985, 128
        %1152 = vxpose.xlu0.b32.cont [3/16] 0.0, 128
        %1153 = vxpose.xlu0.b32.cont [4/16] 0.0, 128
        %1154 = vxpose.xlu0.b32.cont [5/16] 0.0, 128
        %1155 = vxpose.xlu0.b32.cont [6/16] 0.0, 128
        %1156 = vxpose.xlu0.b32.cont [7/16] 0.0, 128
        %1157 = vxpose.xlu0.b32.cont [8/16] 0.0, 128
        %1158 = vxpose.xlu0.b32.cont [9/16] 0.0, 128
        %1159 = vxpose.xlu0.b32.cont [10/16] 0.0, 128
        %1160 = vxpose.xlu0.b32.cont [11/16] 0.0, 128
        %1161 = vxpose.xlu0.b32.cont [12/16] 0.0, 128
        %1162 = vxpose.xlu0.b32.cont [13/16] 0.0, 128
        %1163 = vxpose.xlu0.b32.cont [14/16] 0.0, 128
        %1164 = vxpose.xlu0.b32.cont [15/16] 0.0, 128
        %1165 = vxpose.xlu0.b32.end [16/16] 0.0, 128
        %v1166 = vpop.trf.xlu0
        %v1167 = vpop.trf.xlu0
        %v1168 = vpop.trf.xlu0
        %v1169 = vpop.trf.xlu0
        %v1170 = vpop.trf.xlu0
        %v1171 = vpop.trf.xlu0
        %v1172 = vpop.trf.xlu0
        %v1173 = vpop.trf.xlu0
        %v1174 = vpop.trf.xlu0
        %v1175 = vpop.trf.xlu0
        %v1176 = vpop.trf.xlu0
        %v1177 = vpop.trf.xlu0
        %v1178 = vpop.trf.xlu0
        %v1179 = vpop.trf.xlu0
        %v1180 = vpop.trf.xlu0
        %v1181 = vpop.trf.xlu0
        %1182 = vxpose.xlu0.b32.start [1/16] %v986, 128
        %1183 = vxpose.xlu0.b32.cont [2/16] %v987, 128
        %1184 = vxpose.xlu0.b32.cont [3/16] 0.0, 128
        %1185 = vxpose.xlu0.b32.cont [4/16] 0.0, 128
        %1186 = vxpose.xlu0.b32.cont [5/16] 0.0, 128
        %1187 = vxpose.xlu0.b32.cont [6/16] 0.0, 128
        %1188 = vxpose.xlu0.b32.cont [7/16] 0.0, 128
        %1189 = vxpose.xlu0.b32.cont [8/16] 0.0, 128
        %1190 = vxpose.xlu0.b32.cont [9/16] 0.0, 128
        %1191 = vxpose.xlu0.b32.cont [10/16] 0.0, 128
        %1192 = vxpose.xlu0.b32.cont [11/16] 0.0, 128
        %1193 = vxpose.xlu0.b32.cont [12/16] 0.0, 128
        %1194 = vxpose.xlu0.b32.cont [13/16] 0.0, 128
        %1195 = vxpose.xlu0.b32.cont [14/16] 0.0, 128
        %1196 = vxpose.xlu0.b32.cont [15/16] 0.0, 128
        %1197 = vxpose.xlu0.b32.end [16/16] 0.0, 128
        %v1198 = vpop.trf.xlu0
        %v1199 = vpop.trf.xlu0
        %v1200 = vpop.trf.xlu0
        %v1201 = vpop.trf.xlu0
        %v1202 = vpop.trf.xlu0
        %v1203 = vpop.trf.xlu0
        %v1204 = vpop.trf.xlu0
        %v1205 = vpop.trf.xlu0
        %v1206 = vpop.trf.xlu0
        %v1207 = vpop.trf.xlu0
        %v1208 = vpop.trf.xlu0
        %v1209 = vpop.trf.xlu0
        %v1210 = vpop.trf.xlu0
        %v1211 = vpop.trf.xlu0
        %v1212 = vpop.trf.xlu0
        %v1213 = vpop.trf.xlu0
        %1214 = vxpose.xlu0.b32.start [1/16] %v988, 128
        %1215 = vxpose.xlu0.b32.cont [2/16] %v989, 128
        %1216 = vxpose.xlu0.b32.cont [3/16] 0.0, 128
        %1217 = vxpose.xlu0.b32.cont [4/16] 0.0, 128
        %1218 = vxpose.xlu0.b32.cont [5/16] 0.0, 128
        %1219 = vxpose.xlu0.b32.cont [6/16] 0.0, 128
        %1220 = vxpose.xlu0.b32.cont [7/16] 0.0, 128
        %1221 = vxpose.xlu0.b32.cont [8/16] 0.0, 128
        %1222 = vxpose.xlu0.b32.cont [9/16] 0.0, 128
        %1223 = vxpose.xlu0.b32.cont [10/16] 0.0, 128
        %1224 = vxpose.xlu0.b32.cont [11/16] 0.0, 128
        %1225 = vxpose.xlu0.b32.cont [12/16] 0.0, 128
        %1226 = vxpose.xlu0.b32.cont [13/16] 0.0, 128
        %1227 = vxpose.xlu0.b32.cont [14/16] 0.0, 128
        %1228 = vxpose.xlu0.b32.cont [15/16] 0.0, 128
        %1229 = vxpose.xlu0.b32.end [16/16] 0.0, 128
        %v1230 = vpop.trf.xlu0
        %v1231 = vpop.trf.xlu0
        %v1232 = vpop.trf.xlu0
        %v1233 = vpop.trf.xlu0
        %v1234 = vpop.trf.xlu0
        %v1235 = vpop.trf.xlu0
        %v1236 = vpop.trf.xlu0
        %v1237 = vpop.trf.xlu0
        %v1238 = vpop.trf.xlu0
        %v1239 = vpop.trf.xlu0
        %v1240 = vpop.trf.xlu0
        %v1241 = vpop.trf.xlu0
        %v1242 = vpop.trf.xlu0
        %v1243 = vpop.trf.xlu0
        %v1244 = vpop.trf.xlu0
        %v1245 = vpop.trf.xlu0
        %v1246 = vpack.c.bf16 %v1007, %v1006
        %v1247 = vpack.c.bf16 %v1039, %v1038
        %v1248 = vpack.c.bf16 %v1071, %v1070
        %v1249 = vpack.c.bf16 %v1103, %v1102
        %v1250 = vpack.c.bf16 %v1135, %v1134
        %v1251 = vpack.c.bf16 %v1167, %v1166
        %v1252 = vpack.c.bf16 %v1199, %v1198
        %v1253 = vpack.c.bf16 %v1231, %v1230
        %v1255 = vsel %vm773, %v1246, 0
        %1257 = vmatprep.subr.bf16.mxu0 0
        %1258 = vmatpush1.bf16.msra.mxu0 %v575
        %1259 = vmatprep.subr.bf16.mxu0 0
        %1260 = vmatpush1.bf16.msra.mxu0 0
        %1261 = vmatprep.subr.bf16.mxu0 0
        %1262 = vmatpush1.bf16.msra.mxu0 0
        %1263 = vmatprep.subr.bf16.mxu0 0
        %1264 = vmatpush1.bf16.msra.mxu0 0
        %1265 = vmatprep.subr.bf16.mxu0 0
        %1266 = vmatpush1.bf16.msra.mxu0 0
        %1267 = vmatprep.subr.bf16.mxu0 0
        %1268 = vmatpush1.bf16.msra.mxu0 0
        %1269 = vmatprep.subr.bf16.mxu0 0
        %1270 = vmatpush1.bf16.msra.mxu0 0
        %1271 = vmatprep.subr.bf16.mxu0 0
        %1272 = vmatpush1.bf16.msra.mxu0 0
        %1273 = vmatprep.subr.bf16.mxu0 0
        %1274 = vmatpush1.bf16.msra.mxu0 0
        %1275 = vmatprep.subr.bf16.mxu0 0
        %1276 = vmatpush1.bf16.msra.mxu0 0
        %1277 = vmatprep.subr.bf16.mxu0 0
        %1278 = vmatpush1.bf16.msra.mxu0 0
        %1279 = vmatprep.subr.bf16.mxu0 0
        %1280 = vmatpush1.bf16.msra.mxu0 0
        %1281 = vmatprep.subr.bf16.mxu0 0
        %1282 = vmatpush1.bf16.msra.mxu0 0
        %1283 = vmatprep.subr.bf16.mxu0 0
        %1284 = vmatpush1.bf16.msra.mxu0 0
        %1285 = vmatprep.subr.bf16.mxu0 0
        %1286 = vmatpush1.bf16.msra.mxu0 0
        %1287 = vmatprep.subr.bf16.mxu0 0
        %1288 = vmatpush1.bf16.msra.mxu0 0
        %1289 = vmatprep.mubr.bf16.mxu0 0
        %1290 = vmatmul.mubr.bf16.gmra.mrb[0].mxu0 %v1255
        %v1291 = vpop.f32.mrb[0].mxu0
        %v1292 = vadd.f32 0.0, %v1291
        %v1293 = vpop.f32.mrb[0].mxu0
        %v1294 = vpop.f32.mrb[0].mxu0
        %v1295 = vadd.f32 0.0, %v1294
        %v1296 = vpop.f32.mrb[0].mxu0
        %1297 = vdwg.mxu0
        %v1299 = vsel %vm773, %v1247, 0
        %1301 = vmatprep.subr.bf16.mxu0 0
        %1302 = vmatpush1.bf16.msra.mxu0 %v576
        %1303 = vmatprep.subr.bf16.mxu0 0
        %1304 = vmatpush1.bf16.msra.mxu0 0
        %1305 = vmatprep.subr.bf16.mxu0 0
        %1306 = vmatpush1.bf16.msra.mxu0 0
        %1307 = vmatprep.subr.bf16.mxu0 0
        %1308 = vmatpush1.bf16.msra.mxu0 0
        %1309 = vmatprep.subr.bf16.mxu0 0
        %1310 = vmatpush1.bf16.msra.mxu0 0
        %1311 = vmatprep.subr.bf16.mxu0 0
        %1312 = vmatpush1.bf16.msra.mxu0 0
        %1313 = vmatprep.subr.bf16.mxu0 0
        %1314 = vmatpush1.bf16.msra.mxu0 0
        %1315 = vmatprep.subr.bf16.mxu0 0
        %1316 = vmatpush1.bf16.msra.mxu0 0
        %1317 = vmatprep.subr.bf16.mxu0 0
        %1318 = vmatpush1.bf16.msra.mxu0 0
        %1319 = vmatprep.subr.bf16.mxu0 0
        %1320 = vmatpush1.bf16.msra.mxu0 0
        %1321 = vmatprep.subr.bf16.mxu0 0
        %1322 = vmatpush1.bf16.msra.mxu0 0
        %1323 = vmatprep.subr.bf16.mxu0 0
        %1324 = vmatpush1.bf16.msra.mxu0 0
        %1325 = vmatprep.subr.bf16.mxu0 0
        %1326 = vmatpush1.bf16.msra.mxu0 0
        %1327 = vmatprep.subr.bf16.mxu0 0
        %1328 = vmatpush1.bf16.msra.mxu0 0
        %1329 = vmatprep.subr.bf16.mxu0 0
        %1330 = vmatpush1.bf16.msra.mxu0 0
        %1331 = vmatprep.subr.bf16.mxu0 0
        %1332 = vmatpush1.bf16.msra.mxu0 0
        %1333 = vmatprep.mubr.bf16.mxu0 0
        %1334 = vmatmul.mubr.bf16.gmra.mrb[0].mxu0 %v1299
        %v1335 = vpop.f32.mrb[0].mxu0
        %v1336 = vadd.f32 0.0, %v1335
        %v1337 = vpop.f32.mrb[0].mxu0
        %v1338 = vpop.f32.mrb[0].mxu0
        %v1339 = vadd.f32 0.0, %v1338
        %v1340 = vpop.f32.mrb[0].mxu0
        %1341 = vdwg.mxu0
        %v1343 = vsel %vm773, %v1248, 0
        %1345 = vmatprep.subr.bf16.mxu0 0
        %1346 = vmatpush1.bf16.msra.mxu0 %v577
        %1347 = vmatprep.subr.bf16.mxu0 0
        %1348 = vmatpush1.bf16.msra.mxu0 0
        %1349 = vmatprep.subr.bf16.mxu0 0
        %1350 = vmatpush1.bf16.msra.mxu0 0
        %1351 = vmatprep.subr.bf16.mxu0 0
        %1352 = vmatpush1.bf16.msra.mxu0 0
        %1353 = vmatprep.subr.bf16.mxu0 0
        %1354 = vmatpush1.bf16.msra.mxu0 0
        %1355 = vmatprep.subr.bf16.mxu0 0
        %1356 = vmatpush1.bf16.msra.mxu0 0
        %1357 = vmatprep.subr.bf16.mxu0 0
        %1358 = vmatpush1.bf16.msra.mxu0 0
        %1359 = vmatprep.subr.bf16.mxu0 0
        %1360 = vmatpush1.bf16.msra.mxu0 0
        %1361 = vmatprep.subr.bf16.mxu0 0
        %1362 = vmatpush1.bf16.msra.mxu0 0
        %1363 = vmatprep.subr.bf16.mxu0 0
        %1364 = vmatpush1.bf16.msra.mxu0 0
        %1365 = vmatprep.subr.bf16.mxu0 0
        %1366 = vmatpush1.bf16.msra.mxu0 0
        %1367 = vmatprep.subr.bf16.mxu0 0
        %1368 = vmatpush1.bf16.msra.mxu0 0
        %1369 = vmatprep.subr.bf16.mxu0 0
        %1370 = vmatpush1.bf16.msra.mxu0 0
        %1371 = vmatprep.subr.bf16.mxu0 0
        %1372 = vmatpush1.bf16.msra.mxu0 0
        %1373 = vmatprep.subr.bf16.mxu0 0
        %1374 = vmatpush1.bf16.msra.mxu0 0
        %1375 = vmatprep.subr.bf16.mxu0 0
        %1376 = vmatpush1.bf16.msra.mxu0 0
        %1377 = vmatprep.mubr.bf16.mxu0 0
        %1378 = vmatmul.mubr.bf16.gmra.mrb[0].mxu0 %v1343
        %v1379 = vpop.f32.mrb[0].mxu0
        %v1380 = vadd.f32 0.0, %v1379
        %v1381 = vpop.f32.mrb[0].mxu0
        %v1382 = vpop.f32.mrb[0].mxu0
        %v1383 = vadd.f32 0.0, %v1382
        %v1384 = vpop.f32.mrb[0].mxu0
        %1385 = vdwg.mxu0
        %v1387 = vsel %vm773, %v1249, 0
        %1389 = vmatprep.subr.bf16.mxu0 0
        %1390 = vmatpush1.bf16.msra.mxu0 %v578
        %1391 = vmatprep.subr.bf16.mxu0 0
        %1392 = vmatpush1.bf16.msra.mxu0 0
        %1393 = vmatprep.subr.bf16.mxu0 0
        %1394 = vmatpush1.bf16.msra.mxu0 0
        %1395 = vmatprep.subr.bf16.mxu0 0
        %1396 = vmatpush1.bf16.msra.mxu0 0
        %1397 = vmatprep.subr.bf16.mxu0 0
        %1398 = vmatpush1.bf16.msra.mxu0 0
        %1399 = vmatprep.subr.bf16.mxu0 0
        %1400 = vmatpush1.bf16.msra.mxu0 0
        %1401 = vmatprep.subr.bf16.mxu0 0
        %1402 = vmatpush1.bf16.msra.mxu0 0
        %1403 = vmatprep.subr.bf16.mxu0 0
        %1404 = vmatpush1.bf16.msra.mxu0 0
        %1405 = vmatprep.subr.bf16.mxu0 0
        %1406 = vmatpush1.bf16.msra.mxu0 0
        %1407 = vmatprep.subr.bf16.mxu0 0
        %1408 = vmatpush1.bf16.msra.mxu0 0
        %1409 = vmatprep.subr.bf16.mxu0 0
        %1410 = vmatpush1.bf16.msra.mxu0 0
        %1411 = vmatprep.subr.bf16.mxu0 0
        %1412 = vmatpush1.bf16.msra.mxu0 0
        %1413 = vmatprep.subr.bf16.mxu0 0
        %1414 = vmatpush1.bf16.msra.mxu0 0
        %1415 = vmatprep.subr.bf16.mxu0 0
        %1416 = vmatpush1.bf16.msra.mxu0 0
        %1417 = vmatprep.subr.bf16.mxu0 0
        %1418 = vmatpush1.bf16.msra.mxu0 0
        %1419 = vmatprep.subr.bf16.mxu0 0
        %1420 = vmatpush1.bf16.msra.mxu0 0
        %1421 = vmatprep.mubr.bf16.mxu0 0
        %1422 = vmatmul.mubr.bf16.gmra.mrb[0].mxu0 %v1387
        %v1423 = vpop.f32.mrb[0].mxu0
        %v1424 = vadd.f32 0.0, %v1423
        %v1425 = vpop.f32.mrb[0].mxu0
        %v1426 = vpop.f32.mrb[0].mxu0
        %v1427 = vadd.f32 0.0, %v1426
        %v1428 = vpop.f32.mrb[0].mxu0
        %1429 = vdwg.mxu0
        %v1431 = vsel %vm773, %v1250, 0
        %1433 = vmatprep.subr.bf16.mxu0 0
        %1434 = vmatpush1.bf16.msra.mxu0 %v579
        %1435 = vmatprep.subr.bf16.mxu0 0
        %1436 = vmatpush1.bf16.msra.mxu0 0
        %1437 = vmatprep.subr.bf16.mxu0 0
        %1438 = vmatpush1.bf16.msra.mxu0 0
        %1439 = vmatprep.subr.bf16.mxu0 0
        %1440 = vmatpush1.bf16.msra.mxu0 0
        %1441 = vmatprep.subr.bf16.mxu0 0
        %1442 = vmatpush1.bf16.msra.mxu0 0
        %1443 = vmatprep.subr.bf16.mxu0 0
        %1444 = vmatpush1.bf16.msra.mxu0 0
        %1445 = vmatprep.subr.bf16.mxu0 0
        %1446 = vmatpush1.bf16.msra.mxu0 0
        %1447 = vmatprep.subr.bf16.mxu0 0
        %1448 = vmatpush1.bf16.msra.mxu0 0
        %1449 = vmatprep.subr.bf16.mxu0 0
        %1450 = vmatpush1.bf16.msra.mxu0 0
        %1451 = vmatprep.subr.bf16.mxu0 0
        %1452 = vmatpush1.bf16.msra.mxu0 0
        %1453 = vmatprep.subr.bf16.mxu0 0
        %1454 = vmatpush1.bf16.msra.mxu0 0
        %1455 = vmatprep.subr.bf16.mxu0 0
        %1456 = vmatpush1.bf16.msra.mxu0 0
        %1457 = vmatprep.subr.bf16.mxu0 0
        %1458 = vmatpush1.bf16.msra.mxu0 0
        %1459 = vmatprep.subr.bf16.mxu0 0
        %1460 = vmatpush1.bf16.msra.mxu0 0
        %1461 = vmatprep.subr.bf16.mxu0 0
        %1462 = vmatpush1.bf16.msra.mxu0 0
        %1463 = vmatprep.subr.bf16.mxu0 0
        %1464 = vmatpush1.bf16.msra.mxu0 0
        %1465 = vmatprep.mubr.bf16.mxu0 0
        %1466 = vmatmul.mubr.bf16.gmra.mrb[0].mxu0 %v1431
        %v1467 = vpop.f32.mrb[0].mxu0
        %v1468 = vadd.f32 0.0, %v1467
        %v1469 = vpop.f32.mrb[0].mxu0
        %v1470 = vpop.f32.mrb[0].mxu0
        %v1471 = vadd.f32 0.0, %v1470
        %v1472 = vpop.f32.mrb[0].mxu0
        %1473 = vdwg.mxu0
        %v1475 = vsel %vm773, %v1251, 0
        %1477 = vmatprep.subr.bf16.mxu0 0
        %1478 = vmatpush1.bf16.msra.mxu0 %v580
        %1479 = vmatprep.subr.bf16.mxu0 0
        %1480 = vmatpush1.bf16.msra.mxu0 0
        %1481 = vmatprep.subr.bf16.mxu0 0
        %1482 = vmatpush1.bf16.msra.mxu0 0
        %1483 = vmatprep.subr.bf16.mxu0 0
        %1484 = vmatpush1.bf16.msra.mxu0 0
        %1485 = vmatprep.subr.bf16.mxu0 0
        %1486 = vmatpush1.bf16.msra.mxu0 0
        %1487 = vmatprep.subr.bf16.mxu0 0
        %1488 = vmatpush1.bf16.msra.mxu0 0
        %1489 = vmatprep.subr.bf16.mxu0 0
        %1490 = vmatpush1.bf16.msra.mxu0 0
        %1491 = vmatprep.subr.bf16.mxu0 0
        %1492 = vmatpush1.bf16.msra.mxu0 0
        %1493 = vmatprep.subr.bf16.mxu0 0
        %1494 = vmatpush1.bf16.msra.mxu0 0
        %1495 = vmatprep.subr.bf16.mxu0 0
        %1496 = vmatpush1.bf16.msra.mxu0 0
        %1497 = vmatprep.subr.bf16.mxu0 0
        %1498 = vmatpush1.bf16.msra.mxu0 0
        %1499 = vmatprep.subr.bf16.mxu0 0
        %1500 = vmatpush1.bf16.msra.mxu0 0
        %1501 = vmatprep.subr.bf16.mxu0 0
        %1502 = vmatpush1.bf16.msra.mxu0 0
        %1503 = vmatprep.subr.bf16.mxu0 0
        %1504 = vmatpush1.bf16.msra.mxu0 0
        %1505 = vmatprep.subr.bf16.mxu0 0
        %1506 = vmatpush1.bf16.msra.mxu0 0
        %1507 = vmatprep.subr.bf16.mxu0 0
        %1508 = vmatpush1.bf16.msra.mxu0 0
        %1509 = vmatprep.mubr.bf16.mxu0 0
        %1510 = vmatmul.mubr.bf16.gmra.mrb[0].mxu0 %v1475
        %v1511 = vpop.f32.mrb[0].mxu0
        %v1512 = vadd.f32 0.0, %v1511
        %v1513 = vpop.f32.mrb[0].mxu0
        %v1514 = vpop.f32.mrb[0].mxu0
        %v1515 = vadd.f32 0.0, %v1514
        %v1516 = vpop.f32.mrb[0].mxu0
        %1517 = vdwg.mxu0
        %v1519 = vsel %vm773, %v1252, 0
        %1521 = vmatprep.subr.bf16.mxu0 0
        %1522 = vmatpush1.bf16.msra.mxu0 %v581
        %1523 = vmatprep.subr.bf16.mxu0 0
        %1524 = vmatpush1.bf16.msra.mxu0 0
        %1525 = vmatprep.subr.bf16.mxu0 0
        %1526 = vmatpush1.bf16.msra.mxu0 0
        %1527 = vmatprep.subr.bf16.mxu0 0
        %1528 = vmatpush1.bf16.msra.mxu0 0
        %1529 = vmatprep.subr.bf16.mxu0 0
        %1530 = vmatpush1.bf16.msra.mxu0 0
        %1531 = vmatprep.subr.bf16.mxu0 0
        %1532 = vmatpush1.bf16.msra.mxu0 0
        %1533 = vmatprep.subr.bf16.mxu0 0
        %1534 = vmatpush1.bf16.msra.mxu0 0
        %1535 = vmatprep.subr.bf16.mxu0 0
        %1536 = vmatpush1.bf16.msra.mxu0 0
        %1537 = vmatprep.subr.bf16.mxu0 0
        %1538 = vmatpush1.bf16.msra.mxu0 0
        %1539 = vmatprep.subr.bf16.mxu0 0
        %1540 = vmatpush1.bf16.msra.mxu0 0
        %1541 = vmatprep.subr.bf16.mxu0 0
        %1542 = vmatpush1.bf16.msra.mxu0 0
        %1543 = vmatprep.subr.bf16.mxu0 0
        %1544 = vmatpush1.bf16.msra.mxu0 0
        %1545 = vmatprep.subr.bf16.mxu0 0
        %1546 = vmatpush1.bf16.msra.mxu0 0
        %1547 = vmatprep.subr.bf16.mxu0 0
        %1548 = vmatpush1.bf16.msra.mxu0 0
        %1549 = vmatprep.subr.bf16.mxu0 0
        %1550 = vmatpush1.bf16.msra.mxu0 0
        %1551 = vmatprep.subr.bf16.mxu0 0
        %1552 = vmatpush1.bf16.msra.mxu0 0
        %1553 = vmatprep.mubr.bf16.mxu0 0
        %1554 = vmatmul.mubr.bf16.gmra.mrb[0].mxu0 %v1519
        %v1555 = vpop.f32.mrb[0].mxu0
        %v1556 = vadd.f32 0.0, %v1555
        %v1557 = vpop.f32.mrb[0].mxu0
        %v1558 = vpop.f32.mrb[0].mxu0
        %v1559 = vadd.f32 0.0, %v1558
        %v1560 = vpop.f32.mrb[0].mxu0
        %1561 = vdwg.mxu0
        %v1563 = vsel %vm773, %v1253, 0
        %1565 = vmatprep.subr.bf16.mxu0 0
        %1566 = vmatpush1.bf16.msra.mxu0 %v582
        %1567 = vmatprep.subr.bf16.mxu0 0
        %1568 = vmatpush1.bf16.msra.mxu0 0
        %1569 = vmatprep.subr.bf16.mxu0 0
        %1570 = vmatpush1.bf16.msra.mxu0 0
        %1571 = vmatprep.subr.bf16.mxu0 0
        %1572 = vmatpush1.bf16.msra.mxu0 0
        %1573 = vmatprep.subr.bf16.mxu0 0
        %1574 = vmatpush1.bf16.msra.mxu0 0
        %1575 = vmatprep.subr.bf16.mxu0 0
        %1576 = vmatpush1.bf16.msra.mxu0 0
        %1577 = vmatprep.subr.bf16.mxu0 0
        %1578 = vmatpush1.bf16.msra.mxu0 0
        %1579 = vmatprep.subr.bf16.mxu0 0
        %1580 = vmatpush1.bf16.msra.mxu0 0
        %1581 = vmatprep.subr.bf16.mxu0 0
        %1582 = vmatpush1.bf16.msra.mxu0 0
        %1583 = vmatprep.subr.bf16.mxu0 0
        %1584 = vmatpush1.bf16.msra.mxu0 0
        %1585 = vmatprep.subr.bf16.mxu0 0
        %1586 = vmatpush1.bf16.msra.mxu0 0
        %1587 = vmatprep.subr.bf16.mxu0 0
        %1588 = vmatpush1.bf16.msra.mxu0 0
        %1589 = vmatprep.subr.bf16.mxu0 0
        %1590 = vmatpush1.bf16.msra.mxu0 0
        %1591 = vmatprep.subr.bf16.mxu0 0
        %1592 = vmatpush1.bf16.msra.mxu0 0
        %1593 = vmatprep.subr.bf16.mxu0 0
        %1594 = vmatpush1.bf16.msra.mxu0 0
        %1595 = vmatprep.subr.bf16.mxu0 0
        %1596 = vmatpush1.bf16.msra.mxu0 0
        %1597 = vmatprep.mubr.bf16.mxu0 0
        %1598 = vmatmul.mubr.bf16.gmra.mrb[0].mxu0 %v1563
        %v1599 = vpop.f32.mrb[0].mxu0
        %v1600 = vadd.f32 0.0, %v1599
        %v1601 = vpop.f32.mrb[0].mxu0
        %v1602 = vpop.f32.mrb[0].mxu0
        %v1603 = vadd.f32 0.0, %v1602
        %v1604 = vpop.f32.mrb[0].mxu0
        %1605 = vdwg.mxu0
        %v1606 = vsub.f32 %v1292, %v572
        %v1607 = vsub.f32 %v1295, %v573
        %v1608 = vsub.f32 %v1336, %v572
        %v1609 = vsub.f32 %v1339, %v573
        %v1610 = vsub.f32 %v1380, %v572
        %v1611 = vsub.f32 %v1383, %v573
        %v1612 = vsub.f32 %v1424, %v572
        %v1613 = vsub.f32 %v1427, %v573
        %v1614 = vsub.f32 %v1468, %v572
        %v1615 = vsub.f32 %v1471, %v573
        %v1616 = vsub.f32 %v1512, %v572
        %v1617 = vsub.f32 %v1515, %v573
        %v1618 = vsub.f32 %v1556, %v572
        %v1619 = vsub.f32 %v1559, %v573
        %v1620 = vsub.f32 %v1600, %v572
        %v1621 = vsub.f32 %v1603, %v573
        %v1622 = vmul.f32 %v1606, %v1606
        %v1623 = vmul.f32 %v1607, %v1607
        %v1624 = vmul.f32 %v1608, %v1608
        %v1625 = vmul.f32 %v1609, %v1609
        %v1626 = vmul.f32 %v1610, %v1610
        %v1627 = vmul.f32 %v1611, %v1611
        %v1628 = vmul.f32 %v1612, %v1612
        %v1629 = vmul.f32 %v1613, %v1613
        %v1630 = vmul.f32 %v1614, %v1614
        %v1631 = vmul.f32 %v1615, %v1615
        %v1632 = vmul.f32 %v1616, %v1616
        %v1633 = vmul.f32 %v1617, %v1617
        %v1634 = vmul.f32 %v1618, %v1618
        %v1635 = vmul.f32 %v1619, %v1619
        %v1636 = vmul.f32 %v1620, %v1620
        %v1637 = vmul.f32 %v1621, %v1621
        %v1638 = vpack.c.bf16 %v1623, %v1622
        %v1639 = vpack.c.bf16 %v1625, %v1624
        %v1640 = vpack.c.bf16 %v1627, %v1626
        %v1641 = vpack.c.bf16 %v1629, %v1628
        %v1642 = vpack.c.bf16 %v1631, %v1630
        %v1643 = vpack.c.bf16 %v1633, %v1632
        %v1644 = vpack.c.bf16 %v1635, %v1634
        %v1645 = vpack.c.bf16 %v1637, %v1636
        %v1646 = vld [vmem:[%s5] sm:$0xf]
        %v1647 = vld [vmem:[%s5 + $0x4] sm:$0xf]
        %v1648 = vld [vmem:[%s5 + $0x8] sm:$0xf]
        %v1649 = vld [vmem:[%s5 + $0xc] sm:$0xf]
        %v1650 = vld [vmem:[%s5 + $0x10] sm:$0xf]
        %v1651 = vld [vmem:[%s5 + $0x14] sm:$0xf]
        %v1652 = vld [vmem:[%s5 + $0x18] sm:$0xf]
        %v1653 = vld [vmem:[%s5 + $0x1c] sm:$0xf]
        %v1654 = vld [vmem:[%s6] sm:$0x1]
        %v1656 = vlaneseq
        %v1657 = vshrl.u32 %v1656, 7
        %v1658 = vsub.s32 0, %v1657
        %v1659 = vrot.slane %v1654, %v1658
        %v1669 = vunpack.c.l.b16 %v1646
        %v1670 = vunpack.c.l.b16 %v1647
        %v1671 = vunpack.c.l.b16 %v1648
        %v1672 = vunpack.c.l.b16 %v1649
        %v1673 = vunpack.c.l.b16 %v1650
        %v1674 = vunpack.c.l.b16 %v1651
        %v1675 = vunpack.c.l.b16 %v1652
        %v1676 = vunpack.c.l.b16 %v1653
        %v1677 = vpack.c.b16 %v1670, %v1669
        %v1678 = vpack.c.b16 %v1672, %v1671
        %v1679 = vpack.c.b16 %v1674, %v1673
        %v1680 = vpack.c.b16 %v1676, %v1675
        %v1686 = vsel %vm584, %v1638, 0
        %v1689 = vsel %vm584, %v1639, 0
        %v1692 = vsel %vm584, %v1640, 0
        %v1695 = vsel %vm584, %v1641, 0
        %v1698 = vsel %vm584, %v1642, 0
        %v1701 = vsel %vm584, %v1643, 0
        %v1704 = vsel %vm584, %v1644, 0
        %v1707 = vsel %vm584, %v1645, 0
        %1709 = vmatprep.subr.bf16.mxu0 0
        %1710 = vmatpush1.bf16.msra.mxu0 %v1677
        %1711 = vmatprep.subr.bf16.mxu0 0
        %1712 = vmatpush1.bf16.msra.mxu0 %v1678
        %1713 = vmatprep.subr.bf16.mxu0 0
        %1714 = vmatpush1.bf16.msra.mxu0 %v1679
        %1715 = vmatprep.subr.bf16.mxu0 0
        %1716 = vmatpush1.bf16.msra.mxu0 %v1680
        %1717 = vmatprep.subr.bf16.mxu0 0
        %1718 = vmatpush1.bf16.msra.mxu0 0
        %1719 = vmatprep.subr.bf16.mxu0 0
        %1720 = vmatpush1.bf16.msra.mxu0 0
        %1721 = vmatprep.subr.bf16.mxu0 0
        %1722 = vmatpush1.bf16.msra.mxu0 0
        %1723 = vmatprep.subr.bf16.mxu0 0
        %1724 = vmatpush1.bf16.msra.mxu0 0
        %1725 = vmatprep.subr.bf16.mxu0 0
        %1726 = vmatpush1.bf16.msra.mxu0 0
        %1727 = vmatprep.subr.bf16.mxu0 0
        %1728 = vmatpush1.bf16.msra.mxu0 0
        %1729 = vmatprep.subr.bf16.mxu0 0
        %1730 = vmatpush1.bf16.msra.mxu0 0
        %1731 = vmatprep.subr.bf16.mxu0 0
        %1732 = vmatpush1.bf16.msra.mxu0 0
        %1733 = vmatprep.subr.bf16.mxu0 0
        %1734 = vmatpush1.bf16.msra.mxu0 0
        %1735 = vmatprep.subr.bf16.mxu0 0
        %1736 = vmatpush1.bf16.msra.mxu0 0
        %1737 = vmatprep.subr.bf16.mxu0 0
        %1738 = vmatpush1.bf16.msra.mxu0 0
        %1739 = vmatprep.subr.bf16.mxu0 0
        %1740 = vmatpush1.bf16.msra.mxu0 0
        %1741 = vmatprep.mubr.bf16.mxu0 0
        %1742 = vmatmul.mubr.bf16.gmra.mrb[0].mxu0 %v1686
        %v1743 = vpop.f32.mrb[0].mxu0
        %v1744 = vadd.f32 %v1659, %v1743
        %v1745 = vpop.f32.mrb[0].mxu0
        %v1746 = vpop.f32.mrb[0].mxu0
        %v1747 = vadd.f32 %v1659, %v1746
        %v1748 = vpop.f32.mrb[0].mxu0
        %1749 = vmatprep.mubr.bf16.mxu0 0
        %1750 = vmatmul.mubr.bf16.gmra.mrb[0].mxu0 %v1689
        %v1751 = vpop.f32.mrb[0].mxu0
        %v1752 = vadd.f32 %v1659, %v1751
        %v1753 = vpop.f32.mrb[0].mxu0
        %v1754 = vpop.f32.mrb[0].mxu0
        %v1755 = vadd.f32 %v1659, %v1754
        %v1756 = vpop.f32.mrb[0].mxu0
        %1757 = vmatprep.mubr.bf16.mxu0 0
        %1758 = vmatmul.mubr.bf16.gmra.mrb[0].mxu0 %v1692
        %v1759 = vpop.f32.mrb[0].mxu0
        %v1760 = vadd.f32 %v1659, %v1759
        %v1761 = vpop.f32.mrb[0].mxu0
        %v1762 = vpop.f32.mrb[0].mxu0
        %v1763 = vadd.f32 %v1659, %v1762
        %v1764 = vpop.f32.mrb[0].mxu0
        %1765 = vmatprep.mubr.bf16.mxu0 0
        %1766 = vmatmul.mubr.bf16.gmra.mrb[0].mxu0 %v1695
        %v1767 = vpop.f32.mrb[0].mxu0
        %v1768 = vadd.f32 %v1659, %v1767
        %v1769 = vpop.f32.mrb[0].mxu0
        %v1770 = vpop.f32.mrb[0].mxu0
        %v1771 = vadd.f32 %v1659, %v1770
        %v1772 = vpop.f32.mrb[0].mxu0
        %1773 = vmatprep.mubr.bf16.mxu0 0
        %1774 = vmatmul.mubr.bf16.gmra.mrb[0].mxu0 %v1698
        %v1775 = vpop.f32.mrb[0].mxu0
        %v1776 = vadd.f32 %v1659, %v1775
        %v1777 = vpop.f32.mrb[0].mxu0
        %v1778 = vpop.f32.mrb[0].mxu0
        %v1779 = vadd.f32 %v1659, %v1778
        %v1780 = vpop.f32.mrb[0].mxu0
        %1781 = vmatprep.mubr.bf16.mxu0 0
        %1782 = vmatmul.mubr.bf16.gmra.mrb[0].mxu0 %v1701
        %v1783 = vpop.f32.mrb[0].mxu0
        %v1784 = vadd.f32 %v1659, %v1783
        %v1785 = vpop.f32.mrb[0].mxu0
        %v1786 = vpop.f32.mrb[0].mxu0
        %v1787 = vadd.f32 %v1659, %v1786
        %v1788 = vpop.f32.mrb[0].mxu0
        %1789 = vmatprep.mubr.bf16.mxu0 0
        %1790 = vmatmul.mubr.bf16.gmra.mrb[0].mxu0 %v1704
        %v1791 = vpop.f32.mrb[0].mxu0
        %v1792 = vadd.f32 %v1659, %v1791
        %v1793 = vpop.f32.mrb[0].mxu0
        %v1794 = vpop.f32.mrb[0].mxu0
        %v1795 = vadd.f32 %v1659, %v1794
        %v1796 = vpop.f32.mrb[0].mxu0
        %1797 = vmatprep.mubr.bf16.mxu0 0
        %1798 = vmatmul.mubr.bf16.gmra.mrb[0].mxu0 %v1707
        %v1799 = vpop.f32.mrb[0].mxu0
        %v1800 = vadd.f32 %v1659, %v1799
        %v1801 = vpop.f32.mrb[0].mxu0
        %v1802 = vpop.f32.mrb[0].mxu0
        %v1803 = vadd.f32 %v1659, %v1802
        %v1804 = vpop.f32.mrb[0].mxu0
        %1805 = vdwg.mxu0
        %v1807 = vlaneseq
        %v1808 = vshrl.u32 %v1807, 7
        %v1809 = vsub.s32 0, %v1808
        %v1810 = vrot.slane %v574, %v1809
        %v1811 = vcombine.high %v1810, %v1810
        %v1813 = vunpack.c.l.s4 1966171168
        %v1814 = vunpack.c.0.s8 %v1813
        %v1815 = vlaneseq
        %v1816 = vshrl.u32 %v1815, 7
        %v1817 = vsub.s32 %v1814, %v1816
        %v1818 = vrot.slane %v1810, %v1817
        %v1820 = vunpack.c.l.s4 1966171168
        %v1821 = vunpack.c.0.s8 %v1820
        %v1822 = vlaneseq
        %v1823 = vshrl.u32 %v1822, 7
        %v1824 = vsub.s32 %v1821, %v1823
        %v1825 = vrot.slane %v1811, %v1824
        %v1826 = vcombine.high %v1818, %v1818
        %v1827 = vcombine.high %v1825, %v1825
        %v1829 = vunpack.c.l.s4 1966171168
        %v1830 = vunpack.c.0.s8 %v1829
        %v1831 = vlaneseq
        %v1832 = vshrl.u32 %v1831, 7
        %v1833 = vsub.s32 %v1830, %v1832
        %v1834 = vrot.slane %v1818, %v1833
        %v1836 = vunpack.c.l.s4 1966171168
        %v1837 = vunpack.c.0.s8 %v1836
        %v1838 = vlaneseq
        %v1839 = vshrl.u32 %v1838, 7
        %v1840 = vsub.s32 %v1837, %v1839
        %v1841 = vrot.slane %v1825, %v1840
        %v1843 = vunpack.c.l.s4 1966171168
        %v1844 = vunpack.c.0.s8 %v1843
        %v1845 = vlaneseq
        %v1846 = vshrl.u32 %v1845, 7
        %v1847 = vsub.s32 %v1844, %v1846
        %v1848 = vrot.slane %v1826, %v1847
        %v1850 = vunpack.c.l.s4 1966171168
        %v1851 = vunpack.c.0.s8 %v1850
        %v1852 = vlaneseq
        %v1853 = vshrl.u32 %v1852, 7
        %v1854 = vsub.s32 %v1851, %v1853
        %v1855 = vrot.slane %v1827, %v1854
        %v1856 = vcombine.high %v1834, %v1834
        %v1857 = vcombine.high %v1841, %v1841
        %v1858 = vcombine.high %v1848, %v1848
        %v1859 = vcombine.high %v1855, %v1855
        %v1868 = vsub.f32 %v564, %v1834
        %v1869 = vsub.f32 %v565, %v1848
        %v1870 = vsub.f32 %v566, %v1856
        %v1871 = vsub.f32 %v567, %v1858
        %v1872 = vsub.f32 %v568, %v1841
        %v1873 = vsub.f32 %v569, %v1855
        %v1874 = vsub.f32 %v570, %v1857
        %v1875 = vsub.f32 %v571, %v1859
        %v1876 = vmul.f32 %v1868, %v1868
        %v1877 = vmul.f32 %v1869, %v1869
        %v1878 = vmul.f32 %v1870, %v1870
        %v1879 = vmul.f32 %v1871, %v1871
        %v1880 = vmul.f32 %v1872, %v1872
        %v1881 = vmul.f32 %v1873, %v1873
        %v1882 = vmul.f32 %v1874, %v1874
        %v1883 = vmul.f32 %v1875, %v1875
        %v1884 = vpack.c.bf16 %v1876, %v1876
        %v1885 = vpack.c.bf16 %v1877, %v1877
        %v1886 = vpack.c.bf16 %v1878, %v1878
        %v1887 = vpack.c.bf16 %v1879, %v1879
        %v1888 = vpack.c.bf16 %v1880, %v1880
        %v1889 = vpack.c.bf16 %v1881, %v1881
        %v1890 = vpack.c.bf16 %v1882, %v1882
        %v1891 = vpack.c.bf16 %v1883, %v1883
        %v1892 = vld [vmem:[%s7] sm:$0xf]
        %v1893 = vld [vmem:[%s7 + $0x4] sm:$0xf]
        %v1894 = vld [vmem:[%s7 + $0x8] sm:$0xf]
        %v1895 = vld [vmem:[%s7 + $0xc] sm:$0xf]
        %v1896 = vld [vmem:[%s7 + $0x10] sm:$0xf]
        %v1897 = vld [vmem:[%s7 + $0x14] sm:$0xf]
        %v1898 = vld [vmem:[%s7 + $0x18] sm:$0xf]
        %v1899 = vld [vmem:[%s7 + $0x1c] sm:$0xf]
        %v1900 = vld [vmem:[%s8] sm:$0x1]
        %v1902 = vlaneseq
        %v1903 = vshrl.u32 %v1902, 7
        %v1904 = vsub.s32 0, %v1903
        %v1905 = vrot.slane %v1900, %v1904
        %v1915 = vunpack.c.l.b16 %v1884
        %v1916 = vunpack.c.l.b16 %v1885
        %v1917 = vunpack.c.l.b16 %v1886
        %v1918 = vunpack.c.l.b16 %v1887
        %v1919 = vunpack.c.l.b16 %v1888
        %v1920 = vunpack.c.l.b16 %v1889
        %v1921 = vunpack.c.l.b16 %v1890
        %v1922 = vunpack.c.l.b16 %v1891
        %v1923 = vrot.slane %v1916, 7
        %vm1924 = vcmask 1041409
        %v1925 = vsel %vm1924, %v1923, %v1915
        %v1926 = vrot.slane %v1917, 6
        %vm1927 = vcmask 1042434
        %v1928 = vsel %vm1927, %v1926, %v1925
        %v1929 = vrot.slane %v1918, 5
        %vm1930 = vcmask 1043459
        %v1931 = vsel %vm1930, %v1929, %v1928
        %v1932 = vrot.slane %v1919, 4
        %vm1933 = vcmask 1044484
        %v1934 = vsel %vm1933, %v1932, %v1931
        %v1935 = vrot.slane %v1920, 3
        %vm1936 = vcmask 1045509
        %v1937 = vsel %vm1936, %v1935, %v1934
        %v1938 = vrot.slane %v1921, 2
        %vm1939 = vcmask 1046534
        %v1940 = vsel %vm1939, %v1938, %v1937
        %v1941 = vrot.slane %v1922, 1
        %vm1942 = vcmask 1047559
        %v1943 = vsel %vm1942, %v1941, %v1940
        %v1944 = vpack.c.b16 %v1943, %v1943
        %v1953 = vunpack.c.l.b16 %v1892
        %v1954 = vunpack.c.l.b16 %v1893
        %v1955 = vunpack.c.l.b16 %v1894
        %v1956 = vunpack.c.l.b16 %v1895
        %v1957 = vunpack.c.l.b16 %v1896
        %v1958 = vunpack.c.l.b16 %v1897
        %v1959 = vunpack.c.l.b16 %v1898
        %v1960 = vunpack.c.l.b16 %v1899
        %v1961 = vpack.c.b16 %v1954, %v1953
        %v1962 = vpack.c.b16 %v1956, %v1955
        %v1963 = vpack.c.b16 %v1958, %v1957
        %v1964 = vpack.c.b16 %v1960, %v1959
        %v1970 = vsel %vm584, %v1944, 0
        %1972 = vmatprep.subr.bf16.mxu0 0
        %1973 = vmatpush1.bf16.msra.mxu0 %v1961
        %1974 = vmatprep.subr.bf16.mxu0 0
        %1975 = vmatpush1.bf16.msra.mxu0 %v1962
        %1976 = vmatprep.subr.bf16.mxu0 0
        %1977 = vmatpush1.bf16.msra.mxu0 %v1963
        %1978 = vmatprep.subr.bf16.mxu0 0
        %1979 = vmatpush1.bf16.msra.mxu0 %v1964
        %1980 = vmatprep.subr.bf16.mxu0 0
        %1981 = vmatpush1.bf16.msra.mxu0 0
        %1982 = vmatprep.subr.bf16.mxu0 0
        %1983 = vmatpush1.bf16.msra.mxu0 0
        %1984 = vmatprep.subr.bf16.mxu0 0
        %1985 = vmatpush1.bf16.msra.mxu0 0
        %1986 = vmatprep.subr.bf16.mxu0 0
        %1987 = vmatpush1.bf16.msra.mxu0 0
        %1988 = vmatprep.subr.bf16.mxu0 0
        %1989 = vmatpush1.bf16.msra.mxu0 0
        %1990 = vmatprep.subr.bf16.mxu0 0
        %1991 = vmatpush1.bf16.msra.mxu0 0
        %1992 = vmatprep.subr.bf16.mxu0 0
        %1993 = vmatpush1.bf16.msra.mxu0 0
        %1994 = vmatprep.subr.bf16.mxu0 0
        %1995 = vmatpush1.bf16.msra.mxu0 0
        %1996 = vmatprep.subr.bf16.mxu0 0
        %1997 = vmatpush1.bf16.msra.mxu0 0
        %1998 = vmatprep.subr.bf16.mxu0 0
        %1999 = vmatpush1.bf16.msra.mxu0 0
        %2000 = vmatprep.subr.bf16.mxu0 0
        %2001 = vmatpush1.bf16.msra.mxu0 0
        %2002 = vmatprep.subr.bf16.mxu0 0
        %2003 = vmatpush1.bf16.msra.mxu0 0
        %2004 = vmatprep.mubr.bf16.mxu0 0
        %2005 = vmatmul.mubr.bf16.gmra.mrb[0].mxu0 %v1970
        %v2006 = vpop.f32.mrb[0].mxu0
        %v2007 = vadd.f32 %v1905, %v2006
        %v2008 = vpop.f32.mrb[0].mxu0
        %v2009 = vpop.f32.mrb[0].mxu0
        %v2010 = vpop.f32.mrb[0].mxu0
        %2011 = vdwg.mxu0
        %v2012 = vlaneseq
        %v2013 = vshrl.u32 %v2012, 7
        %vm2014 = vcmp.eq.s32.totalorder %v2013, 0
        %v2016 = vcombine.high %v2007, %v2007
        %v2018 = vunpack.c.l.s4 1966171168
        %v2019 = vunpack.c.0.s8 %v2018
        %v2020 = vlaneseq
        %v2021 = vshrl.u32 %v2020, 7
        %v2022 = vsub.s32 %v2019, %v2021
        %v2023 = vrot.slane %v2007, %v2022
        %v2025 = vunpack.c.l.s4 1966171168
        %v2026 = vunpack.c.0.s8 %v2025
        %v2027 = vlaneseq
        %v2028 = vshrl.u32 %v2027, 7
        %v2029 = vsub.s32 %v2026, %v2028
        %v2030 = vrot.slane %v2016, %v2029
        %v2031 = vcombine.high %v2023, %v2023
        %v2032 = vcombine.high %v2030, %v2030
        %v2034 = vunpack.c.l.s4 1966171168
        %v2035 = vunpack.c.0.s8 %v2034
        %v2036 = vlaneseq
        %v2037 = vshrl.u32 %v2036, 7
        %v2038 = vsub.s32 %v2035, %v2037
        %v2039 = vrot.slane %v2023, %v2038
        %v2041 = vunpack.c.l.s4 1966171168
        %v2042 = vunpack.c.0.s8 %v2041
        %v2043 = vlaneseq
        %v2044 = vshrl.u32 %v2043, 7
        %v2045 = vsub.s32 %v2042, %v2044
        %v2046 = vrot.slane %v2030, %v2045
        %v2048 = vunpack.c.l.s4 1966171168
        %v2049 = vunpack.c.0.s8 %v2048
        %v2050 = vlaneseq
        %v2051 = vshrl.u32 %v2050, 7
        %v2052 = vsub.s32 %v2049, %v2051
        %v2053 = vrot.slane %v2031, %v2052
        %v2055 = vunpack.c.l.s4 1966171168
        %v2056 = vunpack.c.0.s8 %v2055
        %v2057 = vlaneseq
        %v2058 = vshrl.u32 %v2057, 7
        %v2059 = vsub.s32 %v2056, %v2058
        %v2060 = vrot.slane %v2032, %v2059
        %v2061 = vcombine.high %v2039, %v2039
        %v2062 = vcombine.high %v2046, %v2046
        %v2063 = vcombine.high %v2053, %v2053
        %v2064 = vcombine.high %v2060, %v2060
        %v2065 = vlaneseq
        %v2066 = vshrl.u32 %v2065, 7
        %v2067 = vsub.s32 0, %v2066
        %v2068 = vrot.slane %v2039, %v2067
        %v2069 = vlaneseq
        %v2070 = vshrl.u32 %v2069, 7
        %v2071 = vsub.s32 0, %v2070
        %v2072 = vrot.slane %v2053, %v2071
        %v2073 = vlaneseq
        %v2074 = vshrl.u32 %v2073, 7
        %v2075 = vsub.s32 0, %v2074
        %v2076 = vrot.slane %v2061, %v2075
        %v2077 = vlaneseq
        %v2078 = vshrl.u32 %v2077, 7
        %v2079 = vsub.s32 0, %v2078
        %v2080 = vrot.slane %v2063, %v2079
        %v2081 = vlaneseq
        %v2082 = vshrl.u32 %v2081, 7
        %v2083 = vsub.s32 0, %v2082
        %v2084 = vrot.slane %v2046, %v2083
        %v2085 = vlaneseq
        %v2086 = vshrl.u32 %v2085, 7
        %v2087 = vsub.s32 0, %v2086
        %v2088 = vrot.slane %v2060, %v2087
        %v2089 = vlaneseq
        %v2090 = vshrl.u32 %v2089, 7
        %v2091 = vsub.s32 0, %v2090
        %v2092 = vrot.slane %v2062, %v2091
        %v2093 = vlaneseq
        %v2094 = vshrl.u32 %v2093, 7
        %v2095 = vsub.s32 0, %v2094
        %v2096 = vrot.slane %v2064, %v2095
        %v2105 = vsel %vm2014, %v2068, 0.0
        %v2106 = vsel %vm2014, %v2072, 0.0
        %v2107 = vsel %vm2014, %v2076, 0.0
        %v2108 = vsel %vm2014, %v2080, 0.0
        %v2109 = vsel %vm2014, %v2084, 0.0
        %v2110 = vsel %vm2014, %v2088, 0.0
        %v2111 = vsel %vm2014, %v2092, 0.0
        %v2112 = vsel %vm2014, %v2096, 0.0
        %v2113 = vlaneseq
        %v2114 = vand.u32 %v2113, 127
        %vm2115 = vcmp.eq.s32.totalorder %v2114, 0
        %vm2116 = vcmp.ge.s32.totalorder %v2114, 8
        %s2117 = sadd.s32 %s547, 8
        %v2118 = vstv %s2117
        %vm2119 = vcmp.lt.s32.totalorder %v2114, %v2118
        %vm2120 = vmand %vm2116, %vm2119
        %vm2121 = vmor %vm2115, %vm2120
        %v2122 = vpack.c.bf16 %v1744, %v2105
        %v2123 = vpack.c.bf16 %v1747, %v1747
        %v2124 = vpack.c.bf16 %v1752, %v2106
        %v2125 = vpack.c.bf16 %v1755, %v1755
        %v2126 = vpack.c.bf16 %v1760, %v2107
        %v2127 = vpack.c.bf16 %v1763, %v1763
        %v2128 = vpack.c.bf16 %v1768, %v2108
        %v2129 = vpack.c.bf16 %v1771, %v1771
        %v2130 = vpack.c.bf16 %v1776, %v2109
        %v2131 = vpack.c.bf16 %v1779, %v1779
        %v2132 = vpack.c.bf16 %v1784, %v2110
        %v2133 = vpack.c.bf16 %v1787, %v1787
        %v2134 = vpack.c.bf16 %v1792, %v2111
        %v2135 = vpack.c.bf16 %v1795, %v1795
        %v2136 = vpack.c.bf16 %v1800, %v2112
        %v2137 = vpack.c.bf16 %v1803, %v1803
        %v2154 = vunpack.c.l.b16 %v2122
        %v2155 = vunpack.c.h.b16 %v2122
        %v2156 = vunpack.c.l.b16 %v2123
        %v2157 = vunpack.c.l.b16 %v2124
        %v2158 = vunpack.c.h.b16 %v2124
        %v2159 = vunpack.c.l.b16 %v2125
        %v2160 = vunpack.c.l.b16 %v2126
        %v2161 = vunpack.c.h.b16 %v2126
        %v2162 = vunpack.c.l.b16 %v2127
        %v2163 = vunpack.c.l.b16 %v2128
        %v2164 = vunpack.c.h.b16 %v2128
        %v2165 = vunpack.c.l.b16 %v2129
        %v2166 = vunpack.c.l.b16 %v2130
        %v2167 = vunpack.c.h.b16 %v2130
        %v2168 = vunpack.c.l.b16 %v2131
        %v2169 = vunpack.c.l.b16 %v2132
        %v2170 = vunpack.c.h.b16 %v2132
        %v2171 = vunpack.c.l.b16 %v2133
        %v2172 = vunpack.c.l.b16 %v2134
        %v2173 = vunpack.c.h.b16 %v2134
        %v2174 = vunpack.c.l.b16 %v2135
        %v2175 = vunpack.c.l.b16 %v2136
        %v2176 = vunpack.c.h.b16 %v2136
        %v2177 = vunpack.c.l.b16 %v2137
        %v2178 = vld [vmem:[%s9] sm:$0xf]
        %v2179 = vld [vmem:[%s9 + $0x4] sm:$0xf]
        %v2180 = vld [vmem:[%s9 + $0x8] sm:$0xf]
        %v2181 = vld [vmem:[%s9 + $0xc] sm:$0xf]
        %v2182 = vld [vmem:[%s10] sm:$0x1]
        %v2183 = vlaneseq
        %v2184 = vshrl.u32 %v2183, 7
        %v2185 = vsub.s32 0, %v2184
        %v2186 = vrot.slane %v2182, %v2185
        %v2187 = vpack.c.b16 %v2155, %v2154
        %v2188 = vpack.c.b16 %v2157, %v2156
        %v2189 = vpack.c.b16 %v2159, %v2158
        %v2190 = vpack.c.b16 %v2161, %v2160
        %v2191 = vpack.c.b16 %v2163, %v2162
        %v2192 = vpack.c.b16 %v2165, %v2164
        %v2193 = vpack.c.b16 %v2167, %v2166
        %v2194 = vpack.c.b16 %v2169, %v2168
        %v2195 = vpack.c.b16 %v2171, %v2170
        %v2196 = vpack.c.b16 %v2173, %v2172
        %v2197 = vpack.c.b16 %v2175, %v2174
        %v2198 = vpack.c.b16 %v2177, %v2176
        %v2203 = vunpack.c.l.b16 %v2178
        %v2204 = vunpack.c.l.b16 %v2179
        %v2205 = vunpack.c.l.b16 %v2180
        %v2206 = vunpack.c.l.b16 %v2181
        %v2207 = vpack.c.b16 %v2204, %v2203
        %v2208 = vpack.c.b16 %v2206, %v2205
        %vm2211 = vcmask 261120
        %v2213 = vsel %vm2211, %v2187, 0
        %v2216 = vsel %vm2211, %v2188, 0
        %v2219 = vsel %vm2211, %v2189, 0
        %v2222 = vsel %vm2211, %v2190, 0
        %v2225 = vsel %vm2211, %v2191, 0
        %v2228 = vsel %vm2211, %v2192, 0
        %v2231 = vsel %vm2211, %v2193, 0
        %v2234 = vsel %vm2211, %v2194, 0
        %v2237 = vsel %vm2211, %v2195, 0
        %v2240 = vsel %vm2211, %v2196, 0
        %v2243 = vsel %vm2211, %v2197, 0
        %v2246 = vsel %vm2211, %v2198, 0
        %2248 = vmatprep.subr.bf16.mxu0 0
        %2249 = vmatpush1.bf16.msra.mxu0 %v2207
        %2250 = vmatprep.subr.bf16.mxu0 0
        %2251 = vmatpush1.bf16.msra.mxu0 %v2208
        %2252 = vmatprep.subr.bf16.mxu0 0
        %2253 = vmatpush1.bf16.msra.mxu0 0
        %2254 = vmatprep.subr.bf16.mxu0 0
        %2255 = vmatpush1.bf16.msra.mxu0 0
        %2256 = vmatprep.subr.bf16.mxu0 0
        %2257 = vmatpush1.bf16.msra.mxu0 0
        %2258 = vmatprep.subr.bf16.mxu0 0
        %2259 = vmatpush1.bf16.msra.mxu0 0
        %2260 = vmatprep.subr.bf16.mxu0 0
        %2261 = vmatpush1.bf16.msra.mxu0 0
        %2262 = vmatprep.subr.bf16.mxu0 0
        %2263 = vmatpush1.bf16.msra.mxu0 0
        %2264 = vmatprep.subr.bf16.mxu0 0
        %2265 = vmatpush1.bf16.msra.mxu0 0
        %2266 = vmatprep.subr.bf16.mxu0 0
        %2267 = vmatpush1.bf16.msra.mxu0 0
        %2268 = vmatprep.subr.bf16.mxu0 0
        %2269 = vmatpush1.bf16.msra.mxu0 0
        %2270 = vmatprep.subr.bf16.mxu0 0
        %2271 = vmatpush1.bf16.msra.mxu0 0
        %2272 = vmatprep.subr.bf16.mxu0 0
        %2273 = vmatpush1.bf16.msra.mxu0 0
        %2274 = vmatprep.subr.bf16.mxu0 0
        %2275 = vmatpush1.bf16.msra.mxu0 0
        %2276 = vmatprep.subr.bf16.mxu0 0
        %2277 = vmatpush1.bf16.msra.mxu0 0
        %2278 = vmatprep.subr.bf16.mxu0 0
        %2279 = vmatpush1.bf16.msra.mxu0 0
        %2280 = vmatprep.mubr.bf16.mxu0 0
        %2281 = vmatmul.mubr.bf16.gmra.mrb[0].mxu0 %v2213
        %v2282 = vpop.f32.mrb[0].mxu0
        %v2283 = vadd.f32 %v2186, %v2282
        %v2284 = vpop.f32.mrb[0].mxu0
        %v2285 = vpop.f32.mrb[0].mxu0
        %v2286 = vadd.f32 %v2186, %v2285
        %v2287 = vpop.f32.mrb[0].mxu0
        %2288 = vmatprep.mubr.bf16.mxu0 0
        %2289 = vmatmul.mubr.bf16.gmra.mrb[0].mxu0 %v2216
        %v2290 = vpop.f32.mrb[0].mxu0
        %v2291 = vadd.f32 %v2186, %v2290
        %v2292 = vpop.f32.mrb[0].mxu0
        %v2293 = vpop.f32.mrb[0].mxu0
        %v2294 = vadd.f32 %v2186, %v2293
        %v2295 = vpop.f32.mrb[0].mxu0
        %2296 = vmatprep.mubr.bf16.mxu0 0
        %2297 = vmatmul.mubr.bf16.gmra.mrb[0].mxu0 %v2219
        %v2298 = vpop.f32.mrb[0].mxu0
        %v2299 = vadd.f32 %v2186, %v2298
        %v2300 = vpop.f32.mrb[0].mxu0
        %v2301 = vpop.f32.mrb[0].mxu0
        %v2302 = vadd.f32 %v2186, %v2301
        %v2303 = vpop.f32.mrb[0].mxu0
        %2304 = vmatprep.mubr.bf16.mxu0 0
        %2305 = vmatmul.mubr.bf16.gmra.mrb[0].mxu0 %v2222
        %v2306 = vpop.f32.mrb[0].mxu0
        %v2307 = vadd.f32 %v2186, %v2306
        %v2308 = vpop.f32.mrb[0].mxu0
        %v2309 = vpop.f32.mrb[0].mxu0
        %v2310 = vadd.f32 %v2186, %v2309
        %v2311 = vpop.f32.mrb[0].mxu0
        %2312 = vmatprep.mubr.bf16.mxu0 0
        %2313 = vmatmul.mubr.bf16.gmra.mrb[0].mxu0 %v2225
        %v2314 = vpop.f32.mrb[0].mxu0
        %v2315 = vadd.f32 %v2186, %v2314
        %v2316 = vpop.f32.mrb[0].mxu0
        %v2317 = vpop.f32.mrb[0].mxu0
        %v2318 = vadd.f32 %v2186, %v2317
        %v2319 = vpop.f32.mrb[0].mxu0
        %2320 = vmatprep.mubr.bf16.mxu0 0
        %2321 = vmatmul.mubr.bf16.gmra.mrb[0].mxu0 %v2228
        %v2322 = vpop.f32.mrb[0].mxu0
        %v2323 = vadd.f32 %v2186, %v2322
        %v2324 = vpop.f32.mrb[0].mxu0
        %v2325 = vpop.f32.mrb[0].mxu0
        %v2326 = vadd.f32 %v2186, %v2325
        %v2327 = vpop.f32.mrb[0].mxu0
        %2328 = vmatprep.mubr.bf16.mxu0 0
        %2329 = vmatmul.mubr.bf16.gmra.mrb[0].mxu0 %v2231
        %v2330 = vpop.f32.mrb[0].mxu0
        %v2331 = vadd.f32 %v2186, %v2330
        %v2332 = vpop.f32.mrb[0].mxu0
        %v2333 = vpop.f32.mrb[0].mxu0
        %v2334 = vadd.f32 %v2186, %v2333
        %v2335 = vpop.f32.mrb[0].mxu0
        %2336 = vmatprep.mubr.bf16.mxu0 0
        %2337 = vmatmul.mubr.bf16.gmra.mrb[0].mxu0 %v2234
        %v2338 = vpop.f32.mrb[0].mxu0
        %v2339 = vadd.f32 %v2186, %v2338
        %v2340 = vpop.f32.mrb[0].mxu0
        %v2341 = vpop.f32.mrb[0].mxu0
        %v2342 = vadd.f32 %v2186, %v2341
        %v2343 = vpop.f32.mrb[0].mxu0
        %2344 = vmatprep.mubr.bf16.mxu0 0
        %2345 = vmatmul.mubr.bf16.gmra.mrb[0].mxu0 %v2237
        %v2346 = vpop.f32.mrb[0].mxu0
        %v2347 = vadd.f32 %v2186, %v2346
        %v2348 = vpop.f32.mrb[0].mxu0
        %v2349 = vpop.f32.mrb[0].mxu0
        %v2350 = vadd.f32 %v2186, %v2349
        %v2351 = vpop.f32.mrb[0].mxu0
        %2352 = vmatprep.mubr.bf16.mxu0 0
        %2353 = vmatmul.mubr.bf16.gmra.mrb[0].mxu0 %v2240
        %v2354 = vpop.f32.mrb[0].mxu0
        %v2355 = vadd.f32 %v2186, %v2354
        %v2356 = vpop.f32.mrb[0].mxu0
        %v2357 = vpop.f32.mrb[0].mxu0
        %v2358 = vadd.f32 %v2186, %v2357
        %v2359 = vpop.f32.mrb[0].mxu0
        %2360 = vmatprep.mubr.bf16.mxu0 0
        %2361 = vmatmul.mubr.bf16.gmra.mrb[0].mxu0 %v2243
        %v2362 = vpop.f32.mrb[0].mxu0
        %v2363 = vadd.f32 %v2186, %v2362
        %v2364 = vpop.f32.mrb[0].mxu0
        %v2365 = vpop.f32.mrb[0].mxu0
        %v2366 = vadd.f32 %v2186, %v2365
        %v2367 = vpop.f32.mrb[0].mxu0
        %2368 = vmatprep.mubr.bf16.mxu0 0
        %2369 = vmatmul.mubr.bf16.gmra.mrb[0].mxu0 %v2246
        %v2370 = vpop.f32.mrb[0].mxu0
        %v2371 = vadd.f32 %v2186, %v2370
        %v2372 = vpop.f32.mrb[0].mxu0
        %v2373 = vpop.f32.mrb[0].mxu0
        %v2374 = vadd.f32 %v2186, %v2373
        %v2375 = vpop.f32.mrb[0].mxu0
        %2376 = vdwg.mxu0
        %v2377 = vpack.c.bf16 %v2286, %v2283
        %v2378 = vpack.c.bf16 %v2291, %v2291
        %v2379 = vpack.c.bf16 %v2299, %v2294
        %v2380 = vpack.c.bf16 %v2302, %v2302
        %v2381 = vpack.c.bf16 %v2310, %v2307
        %v2382 = vpack.c.bf16 %v2315, %v2315
        %v2383 = vpack.c.bf16 %v2323, %v2318
        %v2384 = vpack.c.bf16 %v2326, %v2326
        %v2385 = vpack.c.bf16 %v2334, %v2331
        %v2386 = vpack.c.bf16 %v2339, %v2339
        %v2387 = vpack.c.bf16 %v2347, %v2342
        %v2388 = vpack.c.bf16 %v2350, %v2350
        %v2389 = vpack.c.bf16 %v2358, %v2355
        %v2390 = vpack.c.bf16 %v2363, %v2363
        %v2391 = vpack.c.bf16 %v2371, %v2366
        %v2392 = vpack.c.bf16 %v2374, %v2374
        %2395 = vrot.lane.b32.xlu0 %v2377, 96
        %v2396 = vpop.permute.xlu0 %2395
        %2397 = vrot.lane.b32.xlu0 %v2378, 96
        %v2398 = vpop.permute.xlu0 %2397
        %v2400 = vsel %vm2211, %v2377, 0
        %v2403 = vsel %vm2211, %v2378, 0
        %v2406 = vsel %vm2211, %v2396, 0
        %v2409 = vsel %vm2211, %v2398, 0
        %2411 = vmatprep.subr.bf16.mxu0 0
        %2412 = vmatpush1.bf16.xpose.msra.mxu0 %v2406
        %2413 = vmatprep.subr.bf16.mxu0 0
        %2414 = vmatpush1.bf16.xpose.msra.mxu0 %v2409
        %2415 = vmatprep.subr.bf16.mxu0 0
        %2416 = vmatpush1.bf16.xpose.msra.mxu0 0
        %2417 = vmatprep.subr.bf16.mxu0 0
        %2418 = vmatpush1.bf16.xpose.msra.mxu0 0
        %2419 = vmatprep.subr.bf16.mxu0 0
        %2420 = vmatpush1.bf16.xpose.msra.mxu0 0
        %2421 = vmatprep.subr.bf16.mxu0 0
        %2422 = vmatpush1.bf16.xpose.msra.mxu0 0
        %2423 = vmatprep.subr.bf16.mxu0 0
        %2424 = vmatpush1.bf16.xpose.msra.mxu0 0
        %2425 = vmatprep.subr.bf16.mxu0 0
        %2426 = vmatpush1.bf16.xpose.msra.mxu0 0
        %2427 = vmatprep.subr.bf16.mxu0 0
        %2428 = vmatpush1.bf16.xpose.msra.mxu0 0
        %2429 = vmatprep.subr.bf16.mxu0 0
        %2430 = vmatpush1.bf16.xpose.msra.mxu0 0
        %2431 = vmatprep.subr.bf16.mxu0 0
        %2432 = vmatpush1.bf16.xpose.msra.mxu0 0
        %2433 = vmatprep.subr.bf16.mxu0 0
        %2434 = vmatpush1.bf16.xpose.msra.mxu0 0
        %2435 = vmatprep.subr.bf16.mxu0 0
        %2436 = vmatpush1.bf16.xpose.msra.mxu0 0
        %2437 = vmatprep.subr.bf16.mxu0 0
        %2438 = vmatpush1.bf16.xpose.msra.mxu0 0
        %2439 = vmatprep.subr.bf16.mxu0 0
        %2440 = vmatpush1.bf16.xpose.msra.mxu0 0
        %2441 = vmatprep.subr.bf16.mxu0 0
        %2442 = vmatpush1.bf16.xpose.msra.mxu0 0
        %2443 = vmatprep.mubr.bf16.mxu0 0
        %2444 = vmatmul.mubr.bf16.gmra.mrb[0].mxu0 %v2400
        %v2445 = vpop.f32.mrb[0].mxu0
        %v2446 = vadd.f32 0.0, %v2445
        %v2447 = vpop.f32.mrb[0].mxu0
        %v2448 = vpop.f32.mrb[0].mxu0
        %v2449 = vadd.f32 0.0, %v2448
        %v2450 = vpop.f32.mrb[0].mxu0
        %2451 = vmatprep.mubr.bf16.mxu0 0
        %2452 = vmatmul.mubr.bf16.gmra.mrb[0].mxu0 %v2403
        %v2453 = vpop.f32.mrb[0].mxu0
        %v2454 = vadd.f32 0.0, %v2453
        %v2455 = vpop.f32.mrb[0].mxu0
        %v2456 = vpop.f32.mrb[0].mxu0
        %v2457 = vpop.f32.mrb[0].mxu0
        %2458 = vdwg.mxu0
        %2461 = vrot.lane.b32.xlu0 %v2379, 96
        %v2462 = vpop.permute.xlu0 %2461
        %2463 = vrot.lane.b32.xlu0 %v2380, 96
        %v2464 = vpop.permute.xlu0 %2463
        %v2466 = vsel %vm2211, %v2379, 0
        %v2469 = vsel %vm2211, %v2380, 0
        %v2472 = vsel %vm2211, %v2462, 0
        %v2475 = vsel %vm2211, %v2464, 0
        %2477 = vmatprep.subr.bf16.mxu0 0
        %2478 = vmatpush1.bf16.xpose.msra.mxu0 %v2472
        %2479 = vmatprep.subr.bf16.mxu0 0
        %2480 = vmatpush1.bf16.xpose.msra.mxu0 %v2475
        %2481 = vmatprep.subr.bf16.mxu0 0
        %2482 = vmatpush1.bf16.xpose.msra.mxu0 0
        %2483 = vmatprep.subr.bf16.mxu0 0
        %2484 = vmatpush1.bf16.xpose.msra.mxu0 0
        %2485 = vmatprep.subr.bf16.mxu0 0
        %2486 = vmatpush1.bf16.xpose.msra.mxu0 0
        %2487 = vmatprep.subr.bf16.mxu0 0
        %2488 = vmatpush1.bf16.xpose.msra.mxu0 0
        %2489 = vmatprep.subr.bf16.mxu0 0
        %2490 = vmatpush1.bf16.xpose.msra.mxu0 0
        %2491 = vmatprep.subr.bf16.mxu0 0
        %2492 = vmatpush1.bf16.xpose.msra.mxu0 0
        %2493 = vmatprep.subr.bf16.mxu0 0
        %2494 = vmatpush1.bf16.xpose.msra.mxu0 0
        %2495 = vmatprep.subr.bf16.mxu0 0
        %2496 = vmatpush1.bf16.xpose.msra.mxu0 0
        %2497 = vmatprep.subr.bf16.mxu0 0
        %2498 = vmatpush1.bf16.xpose.msra.mxu0 0
        %2499 = vmatprep.subr.bf16.mxu0 0
        %2500 = vmatpush1.bf16.xpose.msra.mxu0 0
        %2501 = vmatprep.subr.bf16.mxu0 0
        %2502 = vmatpush1.bf16.xpose.msra.mxu0 0
        %2503 = vmatprep.subr.bf16.mxu0 0
        %2504 = vmatpush1.bf16.xpose.msra.mxu0 0
        %2505 = vmatprep.subr.bf16.mxu0 0
        %2506 = vmatpush1.bf16.xpose.msra.mxu0 0
        %2507 = vmatprep.subr.bf16.mxu0 0
        %2508 = vmatpush1.bf16.xpose.msra.mxu0 0
        %2509 = vmatprep.mubr.bf16.mxu0 0
        %2510 = vmatmul.mubr.bf16.gmra.mrb[0].mxu0 %v2466
        %v2511 = vpop.f32.mrb[0].mxu0
        %v2512 = vadd.f32 0.0, %v2511
        %v2513 = vpop.f32.mrb[0].mxu0
        %v2514 = vpop.f32.mrb[0].mxu0
        %v2515 = vadd.f32 0.0, %v2514
        %v2516 = vpop.f32.mrb[0].mxu0
        %2517 = vmatprep.mubr.bf16.mxu0 0
        %2518 = vmatmul.mubr.bf16.gmra.mrb[0].mxu0 %v2469
        %v2519 = vpop.f32.mrb[0].mxu0
        %v2520 = vadd.f32 0.0, %v2519
        %v2521 = vpop.f32.mrb[0].mxu0
        %v2522 = vpop.f32.mrb[0].mxu0
        %v2523 = vpop.f32.mrb[0].mxu0
        %2524 = vdwg.mxu0
        %2527 = vrot.lane.b32.xlu0 %v2381, 96
        %v2528 = vpop.permute.xlu0 %2527
        %2529 = vrot.lane.b32.xlu0 %v2382, 96
        %v2530 = vpop.permute.xlu0 %2529
        %v2532 = vsel %vm2211, %v2381, 0
        %v2535 = vsel %vm2211, %v2382, 0
        %v2538 = vsel %vm2211, %v2528, 0
        %v2541 = vsel %vm2211, %v2530, 0
        %2543 = vmatprep.subr.bf16.mxu0 0
        %2544 = vmatpush1.bf16.xpose.msra.mxu0 %v2538
        %2545 = vmatprep.subr.bf16.mxu0 0
        %2546 = vmatpush1.bf16.xpose.msra.mxu0 %v2541
        %2547 = vmatprep.subr.bf16.mxu0 0
        %2548 = vmatpush1.bf16.xpose.msra.mxu0 0
        %2549 = vmatprep.subr.bf16.mxu0 0
        %2550 = vmatpush1.bf16.xpose.msra.mxu0 0
        %2551 = vmatprep.subr.bf16.mxu0 0
        %2552 = vmatpush1.bf16.xpose.msra.mxu0 0
        %2553 = vmatprep.subr.bf16.mxu0 0
        %2554 = vmatpush1.bf16.xpose.msra.mxu0 0
        %2555 = vmatprep.subr.bf16.mxu0 0
        %2556 = vmatpush1.bf16.xpose.msra.mxu0 0
        %2557 = vmatprep.subr.bf16.mxu0 0
        %2558 = vmatpush1.bf16.xpose.msra.mxu0 0
        %2559 = vmatprep.subr.bf16.mxu0 0
        %2560 = vmatpush1.bf16.xpose.msra.mxu0 0
        %2561 = vmatprep.subr.bf16.mxu0 0
        %2562 = vmatpush1.bf16.xpose.msra.mxu0 0
        %2563 = vmatprep.subr.bf16.mxu0 0
        %2564 = vmatpush1.bf16.xpose.msra.mxu0 0
        %2565 = vmatprep.subr.bf16.mxu0 0
        %2566 = vmatpush1.bf16.xpose.msra.mxu0 0
        %2567 = vmatprep.subr.bf16.mxu0 0
        %2568 = vmatpush1.bf16.xpose.msra.mxu0 0
        %2569 = vmatprep.subr.bf16.mxu0 0
        %2570 = vmatpush1.bf16.xpose.msra.mxu0 0
        %2571 = vmatprep.subr.bf16.mxu0 0
        %2572 = vmatpush1.bf16.xpose.msra.mxu0 0
        %2573 = vmatprep.subr.bf16.mxu0 0
        %2574 = vmatpush1.bf16.xpose.msra.mxu0 0
        %2575 = vmatprep.mubr.bf16.mxu0 0
        %2576 = vmatmul.mubr.bf16.gmra.mrb[0].mxu0 %v2532
        %v2577 = vpop.f32.mrb[0].mxu0
        %v2578 = vadd.f32 0.0, %v2577
        %v2579 = vpop.f32.mrb[0].mxu0
        %v2580 = vpop.f32.mrb[0].mxu0
        %v2581 = vadd.f32 0.0, %v2580
        %v2582 = vpop.f32.mrb[0].mxu0
        %2583 = vmatprep.mubr.bf16.mxu0 0
        %2584 = vmatmul.mubr.bf16.gmra.mrb[0].mxu0 %v2535
        %v2585 = vpop.f32.mrb[0].mxu0
        %v2586 = vadd.f32 0.0, %v2585
        %v2587 = vpop.f32.mrb[0].mxu0
        %v2588 = vpop.f32.mrb[0].mxu0
        %v2589 = vpop.f32.mrb[0].mxu0
        %2590 = vdwg.mxu0
        %2593 = vrot.lane.b32.xlu0 %v2383, 96
        %v2594 = vpop.permute.xlu0 %2593
        %2595 = vrot.lane.b32.xlu0 %v2384, 96
        %v2596 = vpop.permute.xlu0 %2595
        %v2598 = vsel %vm2211, %v2383, 0
        %v2601 = vsel %vm2211, %v2384, 0
        %v2604 = vsel %vm2211, %v2594, 0
        %v2607 = vsel %vm2211, %v2596, 0
        %2609 = vmatprep.subr.bf16.mxu0 0
        %2610 = vmatpush1.bf16.xpose.msra.mxu0 %v2604
        %2611 = vmatprep.subr.bf16.mxu0 0
        %2612 = vmatpush1.bf16.xpose.msra.mxu0 %v2607
        %2613 = vmatprep.subr.bf16.mxu0 0
        %2614 = vmatpush1.bf16.xpose.msra.mxu0 0
        %2615 = vmatprep.subr.bf16.mxu0 0
        %2616 = vmatpush1.bf16.xpose.msra.mxu0 0
        %2617 = vmatprep.subr.bf16.mxu0 0
        %2618 = vmatpush1.bf16.xpose.msra.mxu0 0
        %2619 = vmatprep.subr.bf16.mxu0 0
        %2620 = vmatpush1.bf16.xpose.msra.mxu0 0
        %2621 = vmatprep.subr.bf16.mxu0 0
        %2622 = vmatpush1.bf16.xpose.msra.mxu0 0
        %2623 = vmatprep.subr.bf16.mxu0 0
        %2624 = vmatpush1.bf16.xpose.msra.mxu0 0
        %2625 = vmatprep.subr.bf16.mxu0 0
        %2626 = vmatpush1.bf16.xpose.msra.mxu0 0
        %2627 = vmatprep.subr.bf16.mxu0 0
        %2628 = vmatpush1.bf16.xpose.msra.mxu0 0
        %2629 = vmatprep.subr.bf16.mxu0 0
        %2630 = vmatpush1.bf16.xpose.msra.mxu0 0
        %2631 = vmatprep.subr.bf16.mxu0 0
        %2632 = vmatpush1.bf16.xpose.msra.mxu0 0
        %2633 = vmatprep.subr.bf16.mxu0 0
        %2634 = vmatpush1.bf16.xpose.msra.mxu0 0
        %2635 = vmatprep.subr.bf16.mxu0 0
        %2636 = vmatpush1.bf16.xpose.msra.mxu0 0
        %2637 = vmatprep.subr.bf16.mxu0 0
        %2638 = vmatpush1.bf16.xpose.msra.mxu0 0
        %2639 = vmatprep.subr.bf16.mxu0 0
        %2640 = vmatpush1.bf16.xpose.msra.mxu0 0
        %2641 = vmatprep.mubr.bf16.mxu0 0
        %2642 = vmatmul.mubr.bf16.gmra.mrb[0].mxu0 %v2598
        %v2643 = vpop.f32.mrb[0].mxu0
        %v2644 = vadd.f32 0.0, %v2643
        %v2645 = vpop.f32.mrb[0].mxu0
        %v2646 = vpop.f32.mrb[0].mxu0
        %v2647 = vadd.f32 0.0, %v2646
        %v2648 = vpop.f32.mrb[0].mxu0
        %2649 = vmatprep.mubr.bf16.mxu0 0
        %2650 = vmatmul.mubr.bf16.gmra.mrb[0].mxu0 %v2601
        %v2651 = vpop.f32.mrb[0].mxu0
        %v2652 = vadd.f32 0.0, %v2651
        %v2653 = vpop.f32.mrb[0].mxu0
        %v2654 = vpop.f32.mrb[0].mxu0
        %v2655 = vpop.f32.mrb[0].mxu0
        %2656 = vdwg.mxu0
        %2659 = vrot.lane.b32.xlu0 %v2385, 96
        %v2660 = vpop.permute.xlu0 %2659
        %2661 = vrot.lane.b32.xlu0 %v2386, 96
        %v2662 = vpop.permute.xlu0 %2661
        %v2664 = vsel %vm2211, %v2385, 0
        %v2667 = vsel %vm2211, %v2386, 0
        %v2670 = vsel %vm2211, %v2660, 0
        %v2673 = vsel %vm2211, %v2662, 0
        %2675 = vmatprep.subr.bf16.mxu0 0
        %2676 = vmatpush1.bf16.xpose.msra.mxu0 %v2670
        %2677 = vmatprep.subr.bf16.mxu0 0
        %2678 = vmatpush1.bf16.xpose.msra.mxu0 %v2673
        %2679 = vmatprep.subr.bf16.mxu0 0
        %2680 = vmatpush1.bf16.xpose.msra.mxu0 0
        %2681 = vmatprep.subr.bf16.mxu0 0
        %2682 = vmatpush1.bf16.xpose.msra.mxu0 0
        %2683 = vmatprep.subr.bf16.mxu0 0
        %2684 = vmatpush1.bf16.xpose.msra.mxu0 0
        %2685 = vmatprep.subr.bf16.mxu0 0
        %2686 = vmatpush1.bf16.xpose.msra.mxu0 0
        %2687 = vmatprep.subr.bf16.mxu0 0
        %2688 = vmatpush1.bf16.xpose.msra.mxu0 0
        %2689 = vmatprep.subr.bf16.mxu0 0
        %2690 = vmatpush1.bf16.xpose.msra.mxu0 0
        %2691 = vmatprep.subr.bf16.mxu0 0
        %2692 = vmatpush1.bf16.xpose.msra.mxu0 0
        %2693 = vmatprep.subr.bf16.mxu0 0
        %2694 = vmatpush1.bf16.xpose.msra.mxu0 0
        %2695 = vmatprep.subr.bf16.mxu0 0
        %2696 = vmatpush1.bf16.xpose.msra.mxu0 0
        %2697 = vmatprep.subr.bf16.mxu0 0
        %2698 = vmatpush1.bf16.xpose.msra.mxu0 0
        %2699 = vmatprep.subr.bf16.mxu0 0
        %2700 = vmatpush1.bf16.xpose.msra.mxu0 0
        %2701 = vmatprep.subr.bf16.mxu0 0
        %2702 = vmatpush1.bf16.xpose.msra.mxu0 0
        %2703 = vmatprep.subr.bf16.mxu0 0
        %2704 = vmatpush1.bf16.xpose.msra.mxu0 0
        %2705 = vmatprep.subr.bf16.mxu0 0
        %2706 = vmatpush1.bf16.xpose.msra.mxu0 0
        %2707 = vmatprep.mubr.bf16.mxu0 0
        %2708 = vmatmul.mubr.bf16.gmra.mrb[0].mxu0 %v2664
        %v2709 = vpop.f32.mrb[0].mxu0
        %v2710 = vadd.f32 0.0, %v2709
        %v2711 = vpop.f32.mrb[0].mxu0
        %v2712 = vpop.f32.mrb[0].mxu0
        %v2713 = vadd.f32 0.0, %v2712
        %v2714 = vpop.f32.mrb[0].mxu0
        %2715 = vmatprep.mubr.bf16.mxu0 0
        %2716 = vmatmul.mubr.bf16.gmra.mrb[0].mxu0 %v2667
        %v2717 = vpop.f32.mrb[0].mxu0
        %v2718 = vadd.f32 0.0, %v2717
        %v2719 = vpop.f32.mrb[0].mxu0
        %v2720 = vpop.f32.mrb[0].mxu0
        %v2721 = vpop.f32.mrb[0].mxu0
        %2722 = vdwg.mxu0
        %2725 = vrot.lane.b32.xlu0 %v2387, 96
        %v2726 = vpop.permute.xlu0 %2725
        %2727 = vrot.lane.b32.xlu0 %v2388, 96
        %v2728 = vpop.permute.xlu0 %2727
        %v2730 = vsel %vm2211, %v2387, 0
        %v2733 = vsel %vm2211, %v2388, 0
        %v2736 = vsel %vm2211, %v2726, 0
        %v2739 = vsel %vm2211, %v2728, 0
        %2741 = vmatprep.subr.bf16.mxu0 0
        %2742 = vmatpush1.bf16.xpose.msra.mxu0 %v2736
        %2743 = vmatprep.subr.bf16.mxu0 0
        %2744 = vmatpush1.bf16.xpose.msra.mxu0 %v2739
        %2745 = vmatprep.subr.bf16.mxu0 0
        %2746 = vmatpush1.bf16.xpose.msra.mxu0 0
        %2747 = vmatprep.subr.bf16.mxu0 0
        %2748 = vmatpush1.bf16.xpose.msra.mxu0 0
        %2749 = vmatprep.subr.bf16.mxu0 0
        %2750 = vmatpush1.bf16.xpose.msra.mxu0 0
        %2751 = vmatprep.subr.bf16.mxu0 0
        %2752 = vmatpush1.bf16.xpose.msra.mxu0 0
        %2753 = vmatprep.subr.bf16.mxu0 0
        %2754 = vmatpush1.bf16.xpose.msra.mxu0 0
        %2755 = vmatprep.subr.bf16.mxu0 0
        %2756 = vmatpush1.bf16.xpose.msra.mxu0 0
        %2757 = vmatprep.subr.bf16.mxu0 0
        %2758 = vmatpush1.bf16.xpose.msra.mxu0 0
        %2759 = vmatprep.subr.bf16.mxu0 0
        %2760 = vmatpush1.bf16.xpose.msra.mxu0 0
        %2761 = vmatprep.subr.bf16.mxu0 0
        %2762 = vmatpush1.bf16.xpose.msra.mxu0 0
        %2763 = vmatprep.subr.bf16.mxu0 0
        %2764 = vmatpush1.bf16.xpose.msra.mxu0 0
        %2765 = vmatprep.subr.bf16.mxu0 0
        %2766 = vmatpush1.bf16.xpose.msra.mxu0 0
        %2767 = vmatprep.subr.bf16.mxu0 0
        %2768 = vmatpush1.bf16.xpose.msra.mxu0 0
        %2769 = vmatprep.subr.bf16.mxu0 0
        %2770 = vmatpush1.bf16.xpose.msra.mxu0 0
        %2771 = vmatprep.subr.bf16.mxu0 0
        %2772 = vmatpush1.bf16.xpose.msra.mxu0 0
        %2773 = vmatprep.mubr.bf16.mxu0 0
        %2774 = vmatmul.mubr.bf16.gmra.mrb[0].mxu0 %v2730
        %v2775 = vpop.f32.mrb[0].mxu0
        %v2776 = vadd.f32 0.0, %v2775
        %v2777 = vpop.f32.mrb[0].mxu0
        %v2778 = vpop.f32.mrb[0].mxu0
        %v2779 = vadd.f32 0.0, %v2778
        %v2780 = vpop.f32.mrb[0].mxu0
        %2781 = vmatprep.mubr.bf16.mxu0 0
        %2782 = vmatmul.mubr.bf16.gmra.mrb[0].mxu0 %v2733
        %v2783 = vpop.f32.mrb[0].mxu0
        %v2784 = vadd.f32 0.0, %v2783
        %v2785 = vpop.f32.mrb[0].mxu0
        %v2786 = vpop.f32.mrb[0].mxu0
        %v2787 = vpop.f32.mrb[0].mxu0
        %2788 = vdwg.mxu0
        %2791 = vrot.lane.b32.xlu0 %v2389, 96
        %v2792 = vpop.permute.xlu0 %2791
        %2793 = vrot.lane.b32.xlu0 %v2390, 96
        %v2794 = vpop.permute.xlu0 %2793
        %v2796 = vsel %vm2211, %v2389, 0
        %v2799 = vsel %vm2211, %v2390, 0
        %v2802 = vsel %vm2211, %v2792, 0
        %v2805 = vsel %vm2211, %v2794, 0
        %2807 = vmatprep.subr.bf16.mxu0 0
        %2808 = vmatpush1.bf16.xpose.msra.mxu0 %v2802
        %2809 = vmatprep.subr.bf16.mxu0 0
        %2810 = vmatpush1.bf16.xpose.msra.mxu0 %v2805
        %2811 = vmatprep.subr.bf16.mxu0 0
        %2812 = vmatpush1.bf16.xpose.msra.mxu0 0
        %2813 = vmatprep.subr.bf16.mxu0 0
        %2814 = vmatpush1.bf16.xpose.msra.mxu0 0
        %2815 = vmatprep.subr.bf16.mxu0 0
        %2816 = vmatpush1.bf16.xpose.msra.mxu0 0
        %2817 = vmatprep.subr.bf16.mxu0 0
        %2818 = vmatpush1.bf16.xpose.msra.mxu0 0
        %2819 = vmatprep.subr.bf16.mxu0 0
        %2820 = vmatpush1.bf16.xpose.msra.mxu0 0
        %2821 = vmatprep.subr.bf16.mxu0 0
        %2822 = vmatpush1.bf16.xpose.msra.mxu0 0
        %2823 = vmatprep.subr.bf16.mxu0 0
        %2824 = vmatpush1.bf16.xpose.msra.mxu0 0
        %2825 = vmatprep.subr.bf16.mxu0 0
        %2826 = vmatpush1.bf16.xpose.msra.mxu0 0
        %2827 = vmatprep.subr.bf16.mxu0 0
        %2828 = vmatpush1.bf16.xpose.msra.mxu0 0
        %2829 = vmatprep.subr.bf16.mxu0 0
        %2830 = vmatpush1.bf16.xpose.msra.mxu0 0
        %2831 = vmatprep.subr.bf16.mxu0 0
        %2832 = vmatpush1.bf16.xpose.msra.mxu0 0
        %2833 = vmatprep.subr.bf16.mxu0 0
        %2834 = vmatpush1.bf16.xpose.msra.mxu0 0
        %2835 = vmatprep.subr.bf16.mxu0 0
        %2836 = vmatpush1.bf16.xpose.msra.mxu0 0
        %2837 = vmatprep.subr.bf16.mxu0 0
        %2838 = vmatpush1.bf16.xpose.msra.mxu0 0
        %2839 = vmatprep.mubr.bf16.mxu0 0
        %2840 = vmatmul.mubr.bf16.gmra.mrb[0].mxu0 %v2796
        %v2841 = vpop.f32.mrb[0].mxu0
        %v2842 = vadd.f32 0.0, %v2841
        %v2843 = vpop.f32.mrb[0].mxu0
        %v2844 = vpop.f32.mrb[0].mxu0
        %v2845 = vadd.f32 0.0, %v2844
        %v2846 = vpop.f32.mrb[0].mxu0
        %2847 = vmatprep.mubr.bf16.mxu0 0
        %2848 = vmatmul.mubr.bf16.gmra.mrb[0].mxu0 %v2799
        %v2849 = vpop.f32.mrb[0].mxu0
        %v2850 = vadd.f32 0.0, %v2849
        %v2851 = vpop.f32.mrb[0].mxu0
        %v2852 = vpop.f32.mrb[0].mxu0
        %v2853 = vpop.f32.mrb[0].mxu0
        %2854 = vdwg.mxu0
        %2857 = vrot.lane.b32.xlu0 %v2391, 96
        %v2858 = vpop.permute.xlu0 %2857
        %2859 = vrot.lane.b32.xlu0 %v2392, 96
        %v2860 = vpop.permute.xlu0 %2859
        %v2862 = vsel %vm2211, %v2391, 0
        %v2865 = vsel %vm2211, %v2392, 0
        %v2868 = vsel %vm2211, %v2858, 0
        %v2871 = vsel %vm2211, %v2860, 0
        %2873 = vmatprep.subr.bf16.mxu0 0
        %2874 = vmatpush1.bf16.xpose.msra.mxu0 %v2868
        %2875 = vmatprep.subr.bf16.mxu0 0
        %2876 = vmatpush1.bf16.xpose.msra.mxu0 %v2871
        %2877 = vmatprep.subr.bf16.mxu0 0
        %2878 = vmatpush1.bf16.xpose.msra.mxu0 0
        %2879 = vmatprep.subr.bf16.mxu0 0
        %2880 = vmatpush1.bf16.xpose.msra.mxu0 0
        %2881 = vmatprep.subr.bf16.mxu0 0
        %2882 = vmatpush1.bf16.xpose.msra.mxu0 0
        %2883 = vmatprep.subr.bf16.mxu0 0
        %2884 = vmatpush1.bf16.xpose.msra.mxu0 0
        %2885 = vmatprep.subr.bf16.mxu0 0
        %2886 = vmatpush1.bf16.xpose.msra.mxu0 0
        %2887 = vmatprep.subr.bf16.mxu0 0
        %2888 = vmatpush1.bf16.xpose.msra.mxu0 0
        %2889 = vmatprep.subr.bf16.mxu0 0
        %2890 = vmatpush1.bf16.xpose.msra.mxu0 0
        %2891 = vmatprep.subr.bf16.mxu0 0
        %2892 = vmatpush1.bf16.xpose.msra.mxu0 0
        %2893 = vmatprep.subr.bf16.mxu0 0
        %2894 = vmatpush1.bf16.xpose.msra.mxu0 0
        %2895 = vmatprep.subr.bf16.mxu0 0
        %2896 = vmatpush1.bf16.xpose.msra.mxu0 0
        %2897 = vmatprep.subr.bf16.mxu0 0
        %2898 = vmatpush1.bf16.xpose.msra.mxu0 0
        %2899 = vmatprep.subr.bf16.mxu0 0
        %2900 = vmatpush1.bf16.xpose.msra.mxu0 0
        %2901 = vmatprep.subr.bf16.mxu0 0
        %2902 = vmatpush1.bf16.xpose.msra.mxu0 0
        %2903 = vmatprep.subr.bf16.mxu0 0
        %2904 = vmatpush1.bf16.xpose.msra.mxu0 0
        %2905 = vmatprep.mubr.bf16.mxu0 0
        %2906 = vmatmul.mubr.bf16.gmra.mrb[0].mxu0 %v2862
        %v2907 = vpop.f32.mrb[0].mxu0
        %v2908 = vadd.f32 0.0, %v2907
        %v2909 = vpop.f32.mrb[0].mxu0
        %v2910 = vpop.f32.mrb[0].mxu0
        %v2911 = vadd.f32 0.0, %v2910
        %v2912 = vpop.f32.mrb[0].mxu0
        %2913 = vmatprep.mubr.bf16.mxu0 0
        %2914 = vmatmul.mubr.bf16.gmra.mrb[0].mxu0 %v2865
        %v2915 = vpop.f32.mrb[0].mxu0
        %v2916 = vadd.f32 0.0, %v2915
        %v2917 = vpop.f32.mrb[0].mxu0
        %v2918 = vpop.f32.mrb[0].mxu0
        %v2919 = vpop.f32.mrb[0].mxu0
        %2920 = vdwg.mxu0
        %v2921 = vsel %vm2121, 1, 0
        %vm2922 = vcmp.eq.s32.totalorder %v2921, 1
        %v2923 = vsel %vm2922, %v2446, -1e+30
        %v2924 = vsel %vm2922, %v2449, -1e+30
        %v2925 = vsel %vm2922, %v2454, -1e+30
        %v2926 = vsel %vm2922, %v2512, -1e+30
        %v2927 = vsel %vm2922, %v2515, -1e+30
        %v2928 = vsel %vm2922, %v2520, -1e+30
        %v2929 = vsel %vm2922, %v2578, -1e+30
        %v2930 = vsel %vm2922, %v2581, -1e+30
        %v2931 = vsel %vm2922, %v2586, -1e+30
        %v2932 = vsel %vm2922, %v2644, -1e+30
        %v2933 = vsel %vm2922, %v2647, -1e+30
        %v2934 = vsel %vm2922, %v2652, -1e+30
        %v2935 = vsel %vm2922, %v2710, -1e+30
        %v2936 = vsel %vm2922, %v2713, -1e+30
        %v2937 = vsel %vm2922, %v2718, -1e+30
        %v2938 = vsel %vm2922, %v2776, -1e+30
        %v2939 = vsel %vm2922, %v2779, -1e+30
        %v2940 = vsel %vm2922, %v2784, -1e+30
        %v2941 = vsel %vm2922, %v2842, -1e+30
        %v2942 = vsel %vm2922, %v2845, -1e+30
        %v2943 = vsel %vm2922, %v2850, -1e+30
        %v2944 = vsel %vm2922, %v2908, -1e+30
        %v2945 = vsel %vm2922, %v2911, -1e+30
        %v2946 = vsel %vm2922, %v2916, -1e+30
        %vm2947 = vcmask 195584
        %v2948 = vsel %vm2947, %v2923, -inf
        %2949 = vmax.xlane.f32.xlu0 %v2948
        %v2950 = vpop.xlane.xlu0 %2949
        %v2951 = vsel %vm2947, %v2924, -inf
        %2952 = vmax.xlane.f32.xlu0 %v2951
        %v2953 = vpop.xlane.xlu0 %2952
        %v2954 = vsel %vm2947, %v2925, -inf
        %2955 = vmax.xlane.f32.xlu0 %v2954
        %v2956 = vpop.xlane.xlu0 %2955
        %v2957 = vsel %vm2947, %v2926, -inf
        %2958 = vmax.xlane.f32.xlu0 %v2957
        %v2959 = vpop.xlane.xlu0 %2958
        %v2960 = vsel %vm2947, %v2927, -inf
        %2961 = vmax.xlane.f32.xlu0 %v2960
        %v2962 = vpop.xlane.xlu0 %2961
        %v2963 = vsel %vm2947, %v2928, -inf
        %2964 = vmax.xlane.f32.xlu0 %v2963
        %v2965 = vpop.xlane.xlu0 %2964
        %v2966 = vsel %vm2947, %v2929, -inf
        %2967 = vmax.xlane.f32.xlu0 %v2966
        %v2968 = vpop.xlane.xlu0 %2967
        %v2969 = vsel %vm2947, %v2930, -inf
        %2970 = vmax.xlane.f32.xlu0 %v2969
        %v2971 = vpop.xlane.xlu0 %2970
        %v2972 = vsel %vm2947, %v2931, -inf
        %2973 = vmax.xlane.f32.xlu0 %v2972
        %v2974 = vpop.xlane.xlu0 %2973
        %v2975 = vsel %vm2947, %v2932, -inf
        %2976 = vmax.xlane.f32.xlu0 %v2975
        %v2977 = vpop.xlane.xlu0 %2976
        %v2978 = vsel %vm2947, %v2933, -inf
        %2979 = vmax.xlane.f32.xlu0 %v2978
        %v2980 = vpop.xlane.xlu0 %2979
        %v2981 = vsel %vm2947, %v2934, -inf
        %2982 = vmax.xlane.f32.xlu0 %v2981
        %v2983 = vpop.xlane.xlu0 %2982
        %v2984 = vsel %vm2947, %v2935, -inf
        %2985 = vmax.xlane.f32.xlu0 %v2984
        %v2986 = vpop.xlane.xlu0 %2985
        %v2987 = vsel %vm2947, %v2936, -inf
        %2988 = vmax.xlane.f32.xlu0 %v2987
        %v2989 = vpop.xlane.xlu0 %2988
        %v2990 = vsel %vm2947, %v2937, -inf
        %2991 = vmax.xlane.f32.xlu0 %v2990
        %v2992 = vpop.xlane.xlu0 %2991
        %v2993 = vsel %vm2947, %v2938, -inf
        %2994 = vmax.xlane.f32.xlu0 %v2993
        %v2995 = vpop.xlane.xlu0 %2994
        %v2996 = vsel %vm2947, %v2939, -inf
        %2997 = vmax.xlane.f32.xlu0 %v2996
        %v2998 = vpop.xlane.xlu0 %2997
        %v2999 = vsel %vm2947, %v2940, -inf
        %3000 = vmax.xlane.f32.xlu0 %v2999
        %v3001 = vpop.xlane.xlu0 %3000
        %v3002 = vsel %vm2947, %v2941, -inf
        %3003 = vmax.xlane.f32.xlu0 %v3002
        %v3004 = vpop.xlane.xlu0 %3003
        %v3005 = vsel %vm2947, %v2942, -inf
        %3006 = vmax.xlane.f32.xlu0 %v3005
        %v3007 = vpop.xlane.xlu0 %3006
        %v3008 = vsel %vm2947, %v2943, -inf
        %3009 = vmax.xlane.f32.xlu0 %v3008
        %v3010 = vpop.xlane.xlu0 %3009
        %v3011 = vsel %vm2947, %v2944, -inf
        %3012 = vmax.xlane.f32.xlu0 %v3011
        %v3013 = vpop.xlane.xlu0 %3012
        %v3014 = vsel %vm2947, %v2945, -inf
        %3015 = vmax.xlane.f32.xlu0 %v3014
        %v3016 = vpop.xlane.xlu0 %3015
        %v3017 = vsel %vm2947, %v2946, -inf
        %3018 = vmax.xlane.f32.xlu0 %v3017
        %v3019 = vpop.xlane.xlu0 %3018
        %v3020 = vsub.f32 %v2923, %v2950
        %v3021 = vsub.f32 %v2924, %v2953
        %v3022 = vsub.f32 %v2925, %v2956
        %v3023 = vsub.f32 %v2926, %v2959
        %v3024 = vsub.f32 %v2927, %v2962
        %v3025 = vsub.f32 %v2928, %v2965
        %v3026 = vsub.f32 %v2929, %v2968
        %v3027 = vsub.f32 %v2930, %v2971
        %v3028 = vsub.f32 %v2931, %v2974
        %v3029 = vsub.f32 %v2932, %v2977
        %v3030 = vsub.f32 %v2933, %v2980
        %v3031 = vsub.f32 %v2934, %v2983
        %v3032 = vsub.f32 %v2935, %v2986
        %v3033 = vsub.f32 %v2936, %v2989
        %v3034 = vsub.f32 %v2937, %v2992
        %v3035 = vsub.f32 %v2938, %v2995
        %v3036 = vsub.f32 %v2939, %v2998
        %v3037 = vsub.f32 %v2940, %v3001
        %v3038 = vsub.f32 %v2941, %v3004
        %v3039 = vsub.f32 %v2942, %v3007
        %v3040 = vsub.f32 %v2943, %v3010
        %v3041 = vsub.f32 %v2944, %v3013
        %v3042 = vsub.f32 %v2945, %v3016
        %v3043 = vsub.f32 %v2946, %v3019
        %v3044 = vmul.f32 %v3020, 1.442695
        %v3045 = vpow.pop %v3044
        %v3046 = vmul.f32 %v3021, 1.442695
        %v3047 = vpow.pop %v3046
        %v3048 = vmul.f32 %v3022, 1.442695
        %v3049 = vpow.pop %v3048
        %v3050 = vmul.f32 %v3023, 1.442695
        %v3051 = vpow.pop %v3050
        %v3052 = vmul.f32 %v3024, 1.442695
        %v3053 = vpow.pop %v3052
        %v3054 = vmul.f32 %v3025, 1.442695
        %v3055 = vpow.pop %v3054
        %v3056 = vmul.f32 %v3026, 1.442695
        %v3057 = vpow.pop %v3056
        %v3058 = vmul.f32 %v3027, 1.442695
        %v3059 = vpow.pop %v3058
        %v3060 = vmul.f32 %v3028, 1.442695
        %v3061 = vpow.pop %v3060
        %v3062 = vmul.f32 %v3029, 1.442695
        %v3063 = vpow.pop %v3062
        %v3064 = vmul.f32 %v3030, 1.442695
        %v3065 = vpow.pop %v3064
        %v3066 = vmul.f32 %v3031, 1.442695
        %v3067 = vpow.pop %v3066
        %v3068 = vmul.f32 %v3032, 1.442695
        %v3069 = vpow.pop %v3068
        %v3070 = vmul.f32 %v3033, 1.442695
        %v3071 = vpow.pop %v3070
        %v3072 = vmul.f32 %v3034, 1.442695
        %v3073 = vpow.pop %v3072
        %v3074 = vmul.f32 %v3035, 1.442695
        %v3075 = vpow.pop %v3074
        %v3076 = vmul.f32 %v3036, 1.442695
        %v3077 = vpow.pop %v3076
        %v3078 = vmul.f32 %v3037, 1.442695
        %v3079 = vpow.pop %v3078
        %v3080 = vmul.f32 %v3038, 1.442695
        %v3081 = vpow.pop %v3080
        %v3082 = vmul.f32 %v3039, 1.442695
        %v3083 = vpow.pop %v3082
        %v3084 = vmul.f32 %v3040, 1.442695
        %v3085 = vpow.pop %v3084
        %v3086 = vmul.f32 %v3041, 1.442695
        %v3087 = vpow.pop %v3086
        %v3088 = vmul.f32 %v3042, 1.442695
        %v3089 = vpow.pop %v3088
        %v3090 = vmul.f32 %v3043, 1.442695
        %v3091 = vpow.pop %v3090
        %v3092 = vsel %vm2947, %v3045, 0.0
        %3093 = vadd.xlane.f32.xlu0 %v3092
        %v3094 = vpop.xlane.xlu0 %3093
        %v3095 = vsel %vm2947, %v3047, 0.0
        %3096 = vadd.xlane.f32.xlu0 %v3095
        %v3097 = vpop.xlane.xlu0 %3096
        %v3098 = vsel %vm2947, %v3049, 0.0
        %3099 = vadd.xlane.f32.xlu0 %v3098
        %v3100 = vpop.xlane.xlu0 %3099
        %v3101 = vsel %vm2947, %v3051, 0.0
        %3102 = vadd.xlane.f32.xlu0 %v3101
        %v3103 = vpop.xlane.xlu0 %3102
        %v3104 = vsel %vm2947, %v3053, 0.0
        %3105 = vadd.xlane.f32.xlu0 %v3104
        %v3106 = vpop.xlane.xlu0 %3105
        %v3107 = vsel %vm2947, %v3055, 0.0
        %3108 = vadd.xlane.f32.xlu0 %v3107
        %v3109 = vpop.xlane.xlu0 %3108
        %v3110 = vsel %vm2947, %v3057, 0.0
        %3111 = vadd.xlane.f32.xlu0 %v3110
        %v3112 = vpop.xlane.xlu0 %3111
        %v3113 = vsel %vm2947, %v3059, 0.0
        %3114 = vadd.xlane.f32.xlu0 %v3113
        %v3115 = vpop.xlane.xlu0 %3114
        %v3116 = vsel %vm2947, %v3061, 0.0
        %3117 = vadd.xlane.f32.xlu0 %v3116
        %v3118 = vpop.xlane.xlu0 %3117
        %v3119 = vsel %vm2947, %v3063, 0.0
        %3120 = vadd.xlane.f32.xlu0 %v3119
        %v3121 = vpop.xlane.xlu0 %3120
        %v3122 = vsel %vm2947, %v3065, 0.0
        %3123 = vadd.xlane.f32.xlu0 %v3122
        %v3124 = vpop.xlane.xlu0 %3123
        %v3125 = vsel %vm2947, %v3067, 0.0
        %3126 = vadd.xlane.f32.xlu0 %v3125
        %v3127 = vpop.xlane.xlu0 %3126
        %v3128 = vsel %vm2947, %v3069, 0.0
        %3129 = vadd.xlane.f32.xlu0 %v3128
        %v3130 = vpop.xlane.xlu0 %3129
        %v3131 = vsel %vm2947, %v3071, 0.0
        %3132 = vadd.xlane.f32.xlu0 %v3131
        %v3133 = vpop.xlane.xlu0 %3132
        %v3134 = vsel %vm2947, %v3073, 0.0
        %3135 = vadd.xlane.f32.xlu0 %v3134
        %v3136 = vpop.xlane.xlu0 %3135
        %v3137 = vsel %vm2947, %v3075, 0.0
        %3138 = vadd.xlane.f32.xlu0 %v3137
        %v3139 = vpop.xlane.xlu0 %3138
        %v3140 = vsel %vm2947, %v3077, 0.0
        %3141 = vadd.xlane.f32.xlu0 %v3140
        %v3142 = vpop.xlane.xlu0 %3141
        %v3143 = vsel %vm2947, %v3079, 0.0
        %3144 = vadd.xlane.f32.xlu0 %v3143
        %v3145 = vpop.xlane.xlu0 %3144
        %v3146 = vsel %vm2947, %v3081, 0.0
        %3147 = vadd.xlane.f32.xlu0 %v3146
        %v3148 = vpop.xlane.xlu0 %3147
        %v3149 = vsel %vm2947, %v3083, 0.0
        %3150 = vadd.xlane.f32.xlu0 %v3149
        %v3151 = vpop.xlane.xlu0 %3150
        %v3152 = vsel %vm2947, %v3085, 0.0
        %3153 = vadd.xlane.f32.xlu0 %v3152
        %v3154 = vpop.xlane.xlu0 %3153
        %v3155 = vsel %vm2947, %v3087, 0.0
        %3156 = vadd.xlane.f32.xlu0 %v3155
        %v3157 = vpop.xlane.xlu0 %3156
        %v3158 = vsel %vm2947, %v3089, 0.0
        %3159 = vadd.xlane.f32.xlu0 %v3158
        %v3160 = vpop.xlane.xlu0 %3159
        %v3161 = vsel %vm2947, %v3091, 0.0
        %3162 = vadd.xlane.f32.xlu0 %v3161
        %v3163 = vpop.xlane.xlu0 %3162
        %v3164 = vrcp.pop %v3094
        %v3165 = vrcp.pop %v3097
        %v3166 = vrcp.pop %v3100
        %v3167 = vrcp.pop %v3103
        %v3168 = vrcp.pop %v3106
        %v3169 = vrcp.pop %v3109
        %v3170 = vrcp.pop %v3112
        %v3171 = vrcp.pop %v3115
        %v3172 = vrcp.pop %v3118
        %v3173 = vrcp.pop %v3121
        %v3174 = vrcp.pop %v3124
        %v3175 = vrcp.pop %v3127
        %v3176 = vrcp.pop %v3130
        %v3177 = vrcp.pop %v3133
        %v3178 = vrcp.pop %v3136
        %v3179 = vrcp.pop %v3139
        %v3180 = vrcp.pop %v3142
        %v3181 = vrcp.pop %v3145
        %v3182 = vrcp.pop %v3148
        %v3183 = vrcp.pop %v3151
        %v3184 = vrcp.pop %v3154
        %v3185 = vrcp.pop %v3157
        %v3186 = vrcp.pop %v3160
        %v3187 = vrcp.pop %v3163
        %v3188 = vmul.f32 %v3045, %v3164
        %v3189 = vmul.f32 %v3047, %v3165
        %v3190 = vmul.f32 %v3049, %v3166
        %v3191 = vmul.f32 %v3051, %v3167
        %v3192 = vmul.f32 %v3053, %v3168
        %v3193 = vmul.f32 %v3055, %v3169
        %v3194 = vmul.f32 %v3057, %v3170
        %v3195 = vmul.f32 %v3059, %v3171
        %v3196 = vmul.f32 %v3061, %v3172
        %v3197 = vmul.f32 %v3063, %v3173
        %v3198 = vmul.f32 %v3065, %v3174
        %v3199 = vmul.f32 %v3067, %v3175
        %v3200 = vmul.f32 %v3069, %v3176
        %v3201 = vmul.f32 %v3071, %v3177
        %v3202 = vmul.f32 %v3073, %v3178
        %v3203 = vmul.f32 %v3075, %v3179
        %v3204 = vmul.f32 %v3077, %v3180
        %v3205 = vmul.f32 %v3079, %v3181
        %v3206 = vmul.f32 %v3081, %v3182
        %v3207 = vmul.f32 %v3083, %v3183
        %v3208 = vmul.f32 %v3085, %v3184
        %v3209 = vmul.f32 %v3087, %v3185
        %v3210 = vmul.f32 %v3089, %v3186
        %v3211 = vmul.f32 %v3091, %v3187
        %v3212 = vpack.c.bf16 %v3189, %v3188
        %v3213 = vpack.c.bf16 %v3190, %v3190
        %v3214 = vpack.c.bf16 %v3192, %v3191
        %v3215 = vpack.c.bf16 %v3193, %v3193
        %v3216 = vpack.c.bf16 %v3195, %v3194
        %v3217 = vpack.c.bf16 %v3196, %v3196
        %v3218 = vpack.c.bf16 %v3198, %v3197
        %v3219 = vpack.c.bf16 %v3199, %v3199
        %v3220 = vpack.c.bf16 %v3201, %v3200
        %v3221 = vpack.c.bf16 %v3202, %v3202
        %v3222 = vpack.c.bf16 %v3204, %v3203
        %v3223 = vpack.c.bf16 %v3205, %v3205
        %v3224 = vpack.c.bf16 %v3207, %v3206
        %v3225 = vpack.c.bf16 %v3208, %v3208
        %v3226 = vpack.c.bf16 %v3210, %v3209
        %v3227 = vpack.c.bf16 %v3211, %v3211
        %v3229 = vsel %vm2947, %v3212, 0
        %v3232 = vsel %vm2947, %v3213, 0
        %vm3234 = vcmask 1043456
        %v3236 = vsel %vm3234, %v2123, 0
        %3238 = vmatprep.subr.bf16.mxu0 0
        %3239 = vmatpush1.bf16.msra.mxu0 %v2122
        %3240 = vmatprep.subr.bf16.mxu0 0
        %3241 = vmatpush1.bf16.msra.mxu0 %v3236
        %3242 = vmatprep.subr.bf16.mxu0 0
        %3243 = vmatpush1.bf16.msra.mxu0 0
        %3244 = vmatprep.subr.bf16.mxu0 0
        %3245 = vmatpush1.bf16.msra.mxu0 0
        %3246 = vmatprep.subr.bf16.mxu0 0
        %3247 = vmatpush1.bf16.msra.mxu0 0
        %3248 = vmatprep.subr.bf16.mxu0 0
        %3249 = vmatpush1.bf16.msra.mxu0 0
        %3250 = vmatprep.subr.bf16.mxu0 0
        %3251 = vmatpush1.bf16.msra.mxu0 0
        %3252 = vmatprep.subr.bf16.mxu0 0
        %3253 = vmatpush1.bf16.msra.mxu0 0
        %3254 = vmatprep.subr.bf16.mxu0 0
        %3255 = vmatpush1.bf16.msra.mxu0 0
        %3256 = vmatprep.subr.bf16.mxu0 0
        %3257 = vmatpush1.bf16.msra.mxu0 0
        %3258 = vmatprep.subr.bf16.mxu0 0
        %3259 = vmatpush1.bf16.msra.mxu0 0
        %3260 = vmatprep.subr.bf16.mxu0 0
        %3261 = vmatpush1.bf16.msra.mxu0 0
        %3262 = vmatprep.subr.bf16.mxu0 0
        %3263 = vmatpush1.bf16.msra.mxu0 0
        %3264 = vmatprep.subr.bf16.mxu0 0
        %3265 = vmatpush1.bf16.msra.mxu0 0
        %3266 = vmatprep.subr.bf16.mxu0 0
        %3267 = vmatpush1.bf16.msra.mxu0 0
        %3268 = vmatprep.subr.bf16.mxu0 0
        %3269 = vmatpush1.bf16.msra.mxu0 0
        %3270 = vmatprep.mubr.bf16.mxu0 0
        %3271 = vmatmul.mubr.bf16.gmra.mrb[0].mxu0 %v3229
        %v3272 = vpop.f32.mrb[0].mxu0
        %v3273 = vadd.f32 0.0, %v3272
        %v3274 = vpop.f32.mrb[0].mxu0
        %v3275 = vpop.f32.mrb[0].mxu0
        %v3276 = vadd.f32 0.0, %v3275
        %v3277 = vpop.f32.mrb[0].mxu0
        %3278 = vmatprep.mubr.bf16.mxu0 0
        %3279 = vmatmul.mubr.bf16.gmra.mrb[0].mxu0 %v3232
        %v3280 = vpop.f32.mrb[0].mxu0
        %v3281 = vadd.f32 0.0, %v3280
        %v3282 = vpop.f32.mrb[0].mxu0
        %v3283 = vpop.f32.mrb[0].mxu0
        %v3284 = vpop.f32.mrb[0].mxu0
        %3285 = vdwg.mxu0
        %v3287 = vsel %vm2947, %v3214, 0
        %v3290 = vsel %vm2947, %v3215, 0
        %v3293 = vsel %vm3234, %v2125, 0
        %3295 = vmatprep.subr.bf16.mxu0 0
        %3296 = vmatpush1.bf16.msra.mxu0 %v2124
        %3297 = vmatprep.subr.bf16.mxu0 0
        %3298 = vmatpush1.bf16.msra.mxu0 %v3293
        %3299 = vmatprep.subr.bf16.mxu0 0
        %3300 = vmatpush1.bf16.msra.mxu0 0
        %3301 = vmatprep.subr.bf16.mxu0 0
        %3302 = vmatpush1.bf16.msra.mxu0 0
        %3303 = vmatprep.subr.bf16.mxu0 0
        %3304 = vmatpush1.bf16.msra.mxu0 0
        %3305 = vmatprep.subr.bf16.mxu0 0
        %3306 = vmatpush1.bf16.msra.mxu0 0
        %3307 = vmatprep.subr.bf16.mxu0 0
        %3308 = vmatpush1.bf16.msra.mxu0 0
        %3309 = vmatprep.subr.bf16.mxu0 0
        %3310 = vmatpush1.bf16.msra.mxu0 0
        %3311 = vmatprep.subr.bf16.mxu0 0
        %3312 = vmatpush1.bf16.msra.mxu0 0
        %3313 = vmatprep.subr.bf16.mxu0 0
        %3314 = vmatpush1.bf16.msra.mxu0 0
        %3315 = vmatprep.subr.bf16.mxu0 0
        %3316 = vmatpush1.bf16.msra.mxu0 0
        %3317 = vmatprep.subr.bf16.mxu0 0
        %3318 = vmatpush1.bf16.msra.mxu0 0
        %3319 = vmatprep.subr.bf16.mxu0 0
        %3320 = vmatpush1.bf16.msra.mxu0 0
        %3321 = vmatprep.subr.bf16.mxu0 0
        %3322 = vmatpush1.bf16.msra.mxu0 0
        %3323 = vmatprep.subr.bf16.mxu0 0
        %3324 = vmatpush1.bf16.msra.mxu0 0
        %3325 = vmatprep.subr.bf16.mxu0 0
        %3326 = vmatpush1.bf16.msra.mxu0 0
        %3327 = vmatprep.mubr.bf16.mxu0 0
        %3328 = vmatmul.mubr.bf16.gmra.mrb[0].mxu0 %v3287
        %v3329 = vpop.f32.mrb[0].mxu0
        %v3330 = vadd.f32 0.0, %v3329
        %v3331 = vpop.f32.mrb[0].mxu0
        %v3332 = vpop.f32.mrb[0].mxu0
        %v3333 = vadd.f32 0.0, %v3332
        %v3334 = vpop.f32.mrb[0].mxu0
        %3335 = vmatprep.mubr.bf16.mxu0 0
        %3336 = vmatmul.mubr.bf16.gmra.mrb[0].mxu0 %v3290
        %v3337 = vpop.f32.mrb[0].mxu0
        %v3338 = vadd.f32 0.0, %v3337
        %v3339 = vpop.f32.mrb[0].mxu0
        %v3340 = vpop.f32.mrb[0].mxu0
        %v3341 = vpop.f32.mrb[0].mxu0
        %3342 = vdwg.mxu0
        %v3344 = vsel %vm2947, %v3216, 0
        %v3347 = vsel %vm2947, %v3217, 0
        %v3350 = vsel %vm3234, %v2127, 0
        %3352 = vmatprep.subr.bf16.mxu0 0
        %3353 = vmatpush1.bf16.msra.mxu0 %v2126
        %3354 = vmatprep.subr.bf16.mxu0 0
        %3355 = vmatpush1.bf16.msra.mxu0 %v3350
        %3356 = vmatprep.subr.bf16.mxu0 0
        %3357 = vmatpush1.bf16.msra.mxu0 0
        %3358 = vmatprep.subr.bf16.mxu0 0
        %3359 = vmatpush1.bf16.msra.mxu0 0
        %3360 = vmatprep.subr.bf16.mxu0 0
        %3361 = vmatpush1.bf16.msra.mxu0 0
        %3362 = vmatprep.subr.bf16.mxu0 0
        %3363 = vmatpush1.bf16.msra.mxu0 0
        %3364 = vmatprep.subr.bf16.mxu0 0
        %3365 = vmatpush1.bf16.msra.mxu0 0
        %3366 = vmatprep.subr.bf16.mxu0 0
        %3367 = vmatpush1.bf16.msra.mxu0 0
        %3368 = vmatprep.subr.bf16.mxu0 0
        %3369 = vmatpush1.bf16.msra.mxu0 0
        %3370 = vmatprep.subr.bf16.mxu0 0
        %3371 = vmatpush1.bf16.msra.mxu0 0
        %3372 = vmatprep.subr.bf16.mxu0 0
        %3373 = vmatpush1.bf16.msra.mxu0 0
        %3374 = vmatprep.subr.bf16.mxu0 0
        %3375 = vmatpush1.bf16.msra.mxu0 0
        %3376 = vmatprep.subr.bf16.mxu0 0
        %3377 = vmatpush1.bf16.msra.mxu0 0
        %3378 = vmatprep.subr.bf16.mxu0 0
        %3379 = vmatpush1.bf16.msra.mxu0 0
        %3380 = vmatprep.subr.bf16.mxu0 0
        %3381 = vmatpush1.bf16.msra.mxu0 0
        %3382 = vmatprep.subr.bf16.mxu0 0
        %3383 = vmatpush1.bf16.msra.mxu0 0
        %3384 = vmatprep.mubr.bf16.mxu0 0
        %3385 = vmatmul.mubr.bf16.gmra.mrb[0].mxu0 %v3344
        %v3386 = vpop.f32.mrb[0].mxu0
        %v3387 = vadd.f32 0.0, %v3386
        %v3388 = vpop.f32.mrb[0].mxu0
        %v3389 = vpop.f32.mrb[0].mxu0
        %v3390 = vadd.f32 0.0, %v3389
        %v3391 = vpop.f32.mrb[0].mxu0
        %3392 = vmatprep.mubr.bf16.mxu0 0
        %3393 = vmatmul.mubr.bf16.gmra.mrb[0].mxu0 %v3347
        %v3394 = vpop.f32.mrb[0].mxu0
        %v3395 = vadd.f32 0.0, %v3394
        %v3396 = vpop.f32.mrb[0].mxu0
        %v3397 = vpop.f32.mrb[0].mxu0
        %v3398 = vpop.f32.mrb[0].mxu0
        %3399 = vdwg.mxu0
        %v3401 = vsel %vm2947, %v3218, 0
        %v3404 = vsel %vm2947, %v3219, 0
        %v3407 = vsel %vm3234, %v2129, 0
        %3409 = vmatprep.subr.bf16.mxu0 0
        %3410 = vmatpush1.bf16.msra.mxu0 %v2128
        %3411 = vmatprep.subr.bf16.mxu0 0
        %3412 = vmatpush1.bf16.msra.mxu0 %v3407
        %3413 = vmatprep.subr.bf16.mxu0 0
        %3414 = vmatpush1.bf16.msra.mxu0 0
        %3415 = vmatprep.subr.bf16.mxu0 0
        %3416 = vmatpush1.bf16.msra.mxu0 0
        %3417 = vmatprep.subr.bf16.mxu0 0
        %3418 = vmatpush1.bf16.msra.mxu0 0
        %3419 = vmatprep.subr.bf16.mxu0 0
        %3420 = vmatpush1.bf16.msra.mxu0 0
        %3421 = vmatprep.subr.bf16.mxu0 0
        %3422 = vmatpush1.bf16.msra.mxu0 0
        %3423 = vmatprep.subr.bf16.mxu0 0
        %3424 = vmatpush1.bf16.msra.mxu0 0
        %3425 = vmatprep.subr.bf16.mxu0 0
        %3426 = vmatpush1.bf16.msra.mxu0 0
        %3427 = vmatprep.subr.bf16.mxu0 0
        %3428 = vmatpush1.bf16.msra.mxu0 0
        %3429 = vmatprep.subr.bf16.mxu0 0
        %3430 = vmatpush1.bf16.msra.mxu0 0
        %3431 = vmatprep.subr.bf16.mxu0 0
        %3432 = vmatpush1.bf16.msra.mxu0 0
        %3433 = vmatprep.subr.bf16.mxu0 0
        %3434 = vmatpush1.bf16.msra.mxu0 0
        %3435 = vmatprep.subr.bf16.mxu0 0
        %3436 = vmatpush1.bf16.msra.mxu0 0
        %3437 = vmatprep.subr.bf16.mxu0 0
        %3438 = vmatpush1.bf16.msra.mxu0 0
        %3439 = vmatprep.subr.bf16.mxu0 0
        %3440 = vmatpush1.bf16.msra.mxu0 0
        %3441 = vmatprep.mubr.bf16.mxu0 0
        %3442 = vmatmul.mubr.bf16.gmra.mrb[0].mxu0 %v3401
        %v3443 = vpop.f32.mrb[0].mxu0
        %v3444 = vadd.f32 0.0, %v3443
        %v3445 = vpop.f32.mrb[0].mxu0
        %v3446 = vpop.f32.mrb[0].mxu0
        %v3447 = vadd.f32 0.0, %v3446
        %v3448 = vpop.f32.mrb[0].mxu0
        %3449 = vmatprep.mubr.bf16.mxu0 0
        %3450 = vmatmul.mubr.bf16.gmra.mrb[0].mxu0 %v3404
        %v3451 = vpop.f32.mrb[0].mxu0
        %v3452 = vadd.f32 0.0, %v3451
        %v3453 = vpop.f32.mrb[0].mxu0
        %v3454 = vpop.f32.mrb[0].mxu0
        %v3455 = vpop.f32.mrb[0].mxu0
        %3456 = vdwg.mxu0
        %v3458 = vsel %vm2947, %v3220, 0
        %v3461 = vsel %vm2947, %v3221, 0
        %v3464 = vsel %vm3234, %v2131, 0
        %3466 = vmatprep.subr.bf16.mxu0 0
        %3467 = vmatpush1.bf16.msra.mxu0 %v2130
        %3468 = vmatprep.subr.bf16.mxu0 0
        %3469 = vmatpush1.bf16.msra.mxu0 %v3464
        %3470 = vmatprep.subr.bf16.mxu0 0
        %3471 = vmatpush1.bf16.msra.mxu0 0
        %3472 = vmatprep.subr.bf16.mxu0 0
        %3473 = vmatpush1.bf16.msra.mxu0 0
        %3474 = vmatprep.subr.bf16.mxu0 0
        %3475 = vmatpush1.bf16.msra.mxu0 0
        %3476 = vmatprep.subr.bf16.mxu0 0
        %3477 = vmatpush1.bf16.msra.mxu0 0
        %3478 = vmatprep.subr.bf16.mxu0 0
        %3479 = vmatpush1.bf16.msra.mxu0 0
        %3480 = vmatprep.subr.bf16.mxu0 0
        %3481 = vmatpush1.bf16.msra.mxu0 0
        %3482 = vmatprep.subr.bf16.mxu0 0
        %3483 = vmatpush1.bf16.msra.mxu0 0
        %3484 = vmatprep.subr.bf16.mxu0 0
        %3485 = vmatpush1.bf16.msra.mxu0 0
        %3486 = vmatprep.subr.bf16.mxu0 0
        %3487 = vmatpush1.bf16.msra.mxu0 0
        %3488 = vmatprep.subr.bf16.mxu0 0
        %3489 = vmatpush1.bf16.msra.mxu0 0
        %3490 = vmatprep.subr.bf16.mxu0 0
        %3491 = vmatpush1.bf16.msra.mxu0 0
        %3492 = vmatprep.subr.bf16.mxu0 0
        %3493 = vmatpush1.bf16.msra.mxu0 0
        %3494 = vmatprep.subr.bf16.mxu0 0
        %3495 = vmatpush1.bf16.msra.mxu0 0
        %3496 = vmatprep.subr.bf16.mxu0 0
        %3497 = vmatpush1.bf16.msra.mxu0 0
        %3498 = vmatprep.mubr.bf16.mxu0 0
        %3499 = vmatmul.mubr.bf16.gmra.mrb[0].mxu0 %v3458
        %v3500 = vpop.f32.mrb[0].mxu0
        %v3501 = vadd.f32 0.0, %v3500
        %v3502 = vpop.f32.mrb[0].mxu0
        %v3503 = vpop.f32.mrb[0].mxu0
        %v3504 = vadd.f32 0.0, %v3503
        %v3505 = vpop.f32.mrb[0].mxu0
        %3506 = vmatprep.mubr.bf16.mxu0 0
        %3507 = vmatmul.mubr.bf16.gmra.mrb[0].mxu0 %v3461
        %v3508 = vpop.f32.mrb[0].mxu0
        %v3509 = vadd.f32 0.0, %v3508
        %v3510 = vpop.f32.mrb[0].mxu0
        %v3511 = vpop.f32.mrb[0].mxu0
        %v3512 = vpop.f32.mrb[0].mxu0
        %3513 = vdwg.mxu0
        %v3515 = vsel %vm2947, %v3222, 0
        %v3518 = vsel %vm2947, %v3223, 0
        %v3521 = vsel %vm3234, %v2133, 0
        %3523 = vmatprep.subr.bf16.mxu0 0
        %3524 = vmatpush1.bf16.msra.mxu0 %v2132
        %3525 = vmatprep.subr.bf16.mxu0 0
        %3526 = vmatpush1.bf16.msra.mxu0 %v3521
        %3527 = vmatprep.subr.bf16.mxu0 0
        %3528 = vmatpush1.bf16.msra.mxu0 0
        %3529 = vmatprep.subr.bf16.mxu0 0
        %3530 = vmatpush1.bf16.msra.mxu0 0
        %3531 = vmatprep.subr.bf16.mxu0 0
        %3532 = vmatpush1.bf16.msra.mxu0 0
        %3533 = vmatprep.subr.bf16.mxu0 0
        %3534 = vmatpush1.bf16.msra.mxu0 0
        %3535 = vmatprep.subr.bf16.mxu0 0
        %3536 = vmatpush1.bf16.msra.mxu0 0
        %3537 = vmatprep.subr.bf16.mxu0 0
        %3538 = vmatpush1.bf16.msra.mxu0 0
        %3539 = vmatprep.subr.bf16.mxu0 0
        %3540 = vmatpush1.bf16.msra.mxu0 0
        %3541 = vmatprep.subr.bf16.mxu0 0
        %3542 = vmatpush1.bf16.msra.mxu0 0
        %3543 = vmatprep.subr.bf16.mxu0 0
        %3544 = vmatpush1.bf16.msra.mxu0 0
        %3545 = vmatprep.subr.bf16.mxu0 0
        %3546 = vmatpush1.bf16.msra.mxu0 0
        %3547 = vmatprep.subr.bf16.mxu0 0
        %3548 = vmatpush1.bf16.msra.mxu0 0
        %3549 = vmatprep.subr.bf16.mxu0 0
        %3550 = vmatpush1.bf16.msra.mxu0 0
        %3551 = vmatprep.subr.bf16.mxu0 0
        %3552 = vmatpush1.bf16.msra.mxu0 0
        %3553 = vmatprep.subr.bf16.mxu0 0
        %3554 = vmatpush1.bf16.msra.mxu0 0
        %3555 = vmatprep.mubr.bf16.mxu0 0
        %3556 = vmatmul.mubr.bf16.gmra.mrb[0].mxu0 %v3515
        %v3557 = vpop.f32.mrb[0].mxu0
        %v3558 = vadd.f32 0.0, %v3557
        %v3559 = vpop.f32.mrb[0].mxu0
        %v3560 = vpop.f32.mrb[0].mxu0
        %v3561 = vadd.f32 0.0, %v3560
        %v3562 = vpop.f32.mrb[0].mxu0
        %3563 = vmatprep.mubr.bf16.mxu0 0
        %3564 = vmatmul.mubr.bf16.gmra.mrb[0].mxu0 %v3518
        %v3565 = vpop.f32.mrb[0].mxu0
        %v3566 = vadd.f32 0.0, %v3565
        %v3567 = vpop.f32.mrb[0].mxu0
        %v3568 = vpop.f32.mrb[0].mxu0
        %v3569 = vpop.f32.mrb[0].mxu0
        %3570 = vdwg.mxu0
        %v3572 = vsel %vm2947, %v3224, 0
        %v3575 = vsel %vm2947, %v3225, 0
        %v3578 = vsel %vm3234, %v2135, 0
        %3580 = vmatprep.subr.bf16.mxu0 0
        %3581 = vmatpush1.bf16.msra.mxu0 %v2134
        %3582 = vmatprep.subr.bf16.mxu0 0
        %3583 = vmatpush1.bf16.msra.mxu0 %v3578
        %3584 = vmatprep.subr.bf16.mxu0 0
        %3585 = vmatpush1.bf16.msra.mxu0 0
        %3586 = vmatprep.subr.bf16.mxu0 0
        %3587 = vmatpush1.bf16.msra.mxu0 0
        %3588 = vmatprep.subr.bf16.mxu0 0
        %3589 = vmatpush1.bf16.msra.mxu0 0
        %3590 = vmatprep.subr.bf16.mxu0 0
        %3591 = vmatpush1.bf16.msra.mxu0 0
        %3592 = vmatprep.subr.bf16.mxu0 0
        %3593 = vmatpush1.bf16.msra.mxu0 0
        %3594 = vmatprep.subr.bf16.mxu0 0
        %3595 = vmatpush1.bf16.msra.mxu0 0
        %3596 = vmatprep.subr.bf16.mxu0 0
        %3597 = vmatpush1.bf16.msra.mxu0 0
        %3598 = vmatprep.subr.bf16.mxu0 0
        %3599 = vmatpush1.bf16.msra.mxu0 0
        %3600 = vmatprep.subr.bf16.mxu0 0
        %3601 = vmatpush1.bf16.msra.mxu0 0
        %3602 = vmatprep.subr.bf16.mxu0 0
        %3603 = vmatpush1.bf16.msra.mxu0 0
        %3604 = vmatprep.subr.bf16.mxu0 0
        %3605 = vmatpush1.bf16.msra.mxu0 0
        %3606 = vmatprep.subr.bf16.mxu0 0
        %3607 = vmatpush1.bf16.msra.mxu0 0
        %3608 = vmatprep.subr.bf16.mxu0 0
        %3609 = vmatpush1.bf16.msra.mxu0 0
        %3610 = vmatprep.subr.bf16.mxu0 0
        %3611 = vmatpush1.bf16.msra.mxu0 0
        %3612 = vmatprep.mubr.bf16.mxu0 0
        %3613 = vmatmul.mubr.bf16.gmra.mrb[0].mxu0 %v3572
        %v3614 = vpop.f32.mrb[0].mxu0
        %v3615 = vadd.f32 0.0, %v3614
        %v3616 = vpop.f32.mrb[0].mxu0
        %v3617 = vpop.f32.mrb[0].mxu0
        %v3618 = vadd.f32 0.0, %v3617
        %v3619 = vpop.f32.mrb[0].mxu0
        %3620 = vmatprep.mubr.bf16.mxu0 0
        %3621 = vmatmul.mubr.bf16.gmra.mrb[0].mxu0 %v3575
        %v3622 = vpop.f32.mrb[0].mxu0
        %v3623 = vadd.f32 0.0, %v3622
        %v3624 = vpop.f32.mrb[0].mxu0
        %v3625 = vpop.f32.mrb[0].mxu0
        %v3626 = vpop.f32.mrb[0].mxu0
        %3627 = vdwg.mxu0
        %v3629 = vsel %vm2947, %v3226, 0
        %v3632 = vsel %vm2947, %v3227, 0
        %v3635 = vsel %vm3234, %v2137, 0
        %3637 = vmatprep.subr.bf16.mxu0 0
        %3638 = vmatpush1.bf16.msra.mxu0 %v2136
        %3639 = vmatprep.subr.bf16.mxu0 0
        %3640 = vmatpush1.bf16.msra.mxu0 %v3635
        %3641 = vmatprep.subr.bf16.mxu0 0
        %3642 = vmatpush1.bf16.msra.mxu0 0
        %3643 = vmatprep.subr.bf16.mxu0 0
        %3644 = vmatpush1.bf16.msra.mxu0 0
        %3645 = vmatprep.subr.bf16.mxu0 0
        %3646 = vmatpush1.bf16.msra.mxu0 0
        %3647 = vmatprep.subr.bf16.mxu0 0
        %3648 = vmatpush1.bf16.msra.mxu0 0
        %3649 = vmatprep.subr.bf16.mxu0 0
        %3650 = vmatpush1.bf16.msra.mxu0 0
        %3651 = vmatprep.subr.bf16.mxu0 0
        %3652 = vmatpush1.bf16.msra.mxu0 0
        %3653 = vmatprep.subr.bf16.mxu0 0
        %3654 = vmatpush1.bf16.msra.mxu0 0
        %3655 = vmatprep.subr.bf16.mxu0 0
        %3656 = vmatpush1.bf16.msra.mxu0 0
        %3657 = vmatprep.subr.bf16.mxu0 0
        %3658 = vmatpush1.bf16.msra.mxu0 0
        %3659 = vmatprep.subr.bf16.mxu0 0
        %3660 = vmatpush1.bf16.msra.mxu0 0
        %3661 = vmatprep.subr.bf16.mxu0 0
        %3662 = vmatpush1.bf16.msra.mxu0 0
        %3663 = vmatprep.subr.bf16.mxu0 0
        %3664 = vmatpush1.bf16.msra.mxu0 0
        %3665 = vmatprep.subr.bf16.mxu0 0
        %3666 = vmatpush1.bf16.msra.mxu0 0
        %3667 = vmatprep.subr.bf16.mxu0 0
        %3668 = vmatpush1.bf16.msra.mxu0 0
        %3669 = vmatprep.mubr.bf16.mxu0 0
        %3670 = vmatmul.mubr.bf16.gmra.mrb[0].mxu0 %v3629
        %v3671 = vpop.f32.mrb[0].mxu0
        %v3672 = vadd.f32 0.0, %v3671
        %v3673 = vpop.f32.mrb[0].mxu0
        %v3674 = vpop.f32.mrb[0].mxu0
        %v3675 = vadd.f32 0.0, %v3674
        %v3676 = vpop.f32.mrb[0].mxu0
        %3677 = vmatprep.mubr.bf16.mxu0 0
        %3678 = vmatmul.mubr.bf16.gmra.mrb[0].mxu0 %v3632
        %v3679 = vpop.f32.mrb[0].mxu0
        %v3680 = vadd.f32 0.0, %v3679
        %v3681 = vpop.f32.mrb[0].mxu0
        %v3682 = vpop.f32.mrb[0].mxu0
        %v3683 = vpop.f32.mrb[0].mxu0
        %3684 = vdwg.mxu0
        %v3685 = vpack.c.bf16 %v3276, %v3273
        %v3686 = vpack.c.bf16 %v3330, %v3281
        %v3687 = vpack.c.bf16 %v3338, %v3333
        %v3688 = vpack.c.bf16 %v3390, %v3387
        %v3689 = vpack.c.bf16 %v3444, %v3395
        %v3690 = vpack.c.bf16 %v3452, %v3447
        %v3691 = vpack.c.bf16 %v3504, %v3501
        %v3692 = vpack.c.bf16 %v3558, %v3509
        %v3693 = vpack.c.bf16 %v3566, %v3561
        %v3694 = vpack.c.bf16 %v3618, %v3615
        %v3695 = vpack.c.bf16 %v3672, %v3623
        %v3696 = vpack.c.bf16 %v3680, %v3675
        %v3697 = vld [vmem:[%s11] sm:$0xf]
        %v3698 = vld [vmem:[%s11 + $0x4] sm:$0xf]
        %v3699 = vld [vmem:[%s11 + $0x8] sm:$0xf]
        %v3700 = vld [vmem:[%s11 + $0xc] sm:$0xf]
        %v3701 = vld [vmem:[%s12] sm:$0x1]
        %v3702 = vlaneseq
        %v3703 = vshrl.u32 %v3702, 7
        %v3704 = vsub.s32 0, %v3703
        %v3705 = vrot.slane %v3701, %v3704
        %v3710 = vunpack.c.l.b16 %v3697
        %v3711 = vunpack.c.l.b16 %v3698
        %v3712 = vunpack.c.l.b16 %v3699
        %v3713 = vunpack.c.l.b16 %v3700
        %v3714 = vpack.c.b16 %v3711, %v3710
        %v3715 = vpack.c.b16 %v3713, %v3712
        %v3719 = vsel %vm2211, %v3685, 0
        %v3722 = vsel %vm2211, %v3686, 0
        %v3725 = vsel %vm2211, %v3687, 0
        %v3728 = vsel %vm2211, %v3688, 0
        %v3731 = vsel %vm2211, %v3689, 0
        %v3734 = vsel %vm2211, %v3690, 0
        %v3737 = vsel %vm2211, %v3691, 0
        %v3740 = vsel %vm2211, %v3692, 0
        %v3743 = vsel %vm2211, %v3693, 0
        %v3746 = vsel %vm2211, %v3694, 0
        %v3749 = vsel %vm2211, %v3695, 0
        %v3752 = vsel %vm2211, %v3696, 0
        %3754 = vmatprep.subr.bf16.mxu0 0
        %3755 = vmatpush1.bf16.msra.mxu0 %v3714
        %3756 = vmatprep.subr.bf16.mxu0 0
        %3757 = vmatpush1.bf16.msra.mxu0 %v3715
        %3758 = vmatprep.subr.bf16.mxu0 0
        %3759 = vmatpush1.bf16.msra.mxu0 0
        %3760 = vmatprep.subr.bf16.mxu0 0
        %3761 = vmatpush1.bf16.msra.mxu0 0
        %3762 = vmatprep.subr.bf16.mxu0 0
        %3763 = vmatpush1.bf16.msra.mxu0 0
        %3764 = vmatprep.subr.bf16.mxu0 0
        %3765 = vmatpush1.bf16.msra.mxu0 0
        %3766 = vmatprep.subr.bf16.mxu0 0
        %3767 = vmatpush1.bf16.msra.mxu0 0
        %3768 = vmatprep.subr.bf16.mxu0 0
        %3769 = vmatpush1.bf16.msra.mxu0 0
        %3770 = vmatprep.subr.bf16.mxu0 0
        %3771 = vmatpush1.bf16.msra.mxu0 0
        %3772 = vmatprep.subr.bf16.mxu0 0
        %3773 = vmatpush1.bf16.msra.mxu0 0
        %3774 = vmatprep.subr.bf16.mxu0 0
        %3775 = vmatpush1.bf16.msra.mxu0 0
        %3776 = vmatprep.subr.bf16.mxu0 0
        %3777 = vmatpush1.bf16.msra.mxu0 0
        %3778 = vmatprep.subr.bf16.mxu0 0
        %3779 = vmatpush1.bf16.msra.mxu0 0
        %3780 = vmatprep.subr.bf16.mxu0 0
        %3781 = vmatpush1.bf16.msra.mxu0 0
        %3782 = vmatprep.subr.bf16.mxu0 0
        %3783 = vmatpush1.bf16.msra.mxu0 0
        %3784 = vmatprep.subr.bf16.mxu0 0
        %3785 = vmatpush1.bf16.msra.mxu0 0
        %3786 = vmatprep.mubr.bf16.mxu0 0
        %3787 = vmatmul.mubr.bf16.gmra.mrb[0].mxu0 %v3719
        %v3788 = vpop.f32.mrb[0].mxu0
        %v3789 = vadd.f32 %v3705, %v3788
        %v3790 = vpop.f32.mrb[0].mxu0
        %v3791 = vpop.f32.mrb[0].mxu0
        %v3792 = vadd.f32 %v3705, %v3791
        %v3793 = vpop.f32.mrb[0].mxu0
        %3794 = vmatprep.mubr.bf16.mxu0 0
        %3795 = vmatmul.mubr.bf16.gmra.mrb[0].mxu0 %v3722
        %v3796 = vpop.f32.mrb[0].mxu0
        %v3797 = vadd.f32 %v3705, %v3796
        %v3798 = vpop.f32.mrb[0].mxu0
        %v3799 = vpop.f32.mrb[0].mxu0
        %v3800 = vadd.f32 %v3705, %v3799
        %v3801 = vpop.f32.mrb[0].mxu0
        %3802 = vmatprep.mubr.bf16.mxu0 0
        %3803 = vmatmul.mubr.bf16.gmra.mrb[0].mxu0 %v3725
        %v3804 = vpop.f32.mrb[0].mxu0
        %v3805 = vadd.f32 %v3705, %v3804
        %v3806 = vpop.f32.mrb[0].mxu0
        %v3807 = vpop.f32.mrb[0].mxu0
        %v3808 = vadd.f32 %v3705, %v3807
        %v3809 = vpop.f32.mrb[0].mxu0
        %3810 = vmatprep.mubr.bf16.mxu0 0
        %3811 = vmatmul.mubr.bf16.gmra.mrb[0].mxu0 %v3728
        %v3812 = vpop.f32.mrb[0].mxu0
        %v3813 = vadd.f32 %v3705, %v3812
        %v3814 = vpop.f32.mrb[0].mxu0
        %v3815 = vpop.f32.mrb[0].mxu0
        %v3816 = vadd.f32 %v3705, %v3815
        %v3817 = vpop.f32.mrb[0].mxu0
        %3818 = vmatprep.mubr.bf16.mxu0 0
        %3819 = vmatmul.mubr.bf16.gmra.mrb[0].mxu0 %v3731
        %v3820 = vpop.f32.mrb[0].mxu0
        %v3821 = vadd.f32 %v3705, %v3820
        %v3822 = vpop.f32.mrb[0].mxu0
        %v3823 = vpop.f32.mrb[0].mxu0
        %v3824 = vadd.f32 %v3705, %v3823
        %v3825 = vpop.f32.mrb[0].mxu0
        %3826 = vmatprep.mubr.bf16.mxu0 0
        %3827 = vmatmul.mubr.bf16.gmra.mrb[0].mxu0 %v3734
        %v3828 = vpop.f32.mrb[0].mxu0
        %v3829 = vadd.f32 %v3705, %v3828
        %v3830 = vpop.f32.mrb[0].mxu0
        %v3831 = vpop.f32.mrb[0].mxu0
        %v3832 = vadd.f32 %v3705, %v3831
        %v3833 = vpop.f32.mrb[0].mxu0
        %3834 = vmatprep.mubr.bf16.mxu0 0
        %3835 = vmatmul.mubr.bf16.gmra.mrb[0].mxu0 %v3737
        %v3836 = vpop.f32.mrb[0].mxu0
        %v3837 = vadd.f32 %v3705, %v3836
        %v3838 = vpop.f32.mrb[0].mxu0
        %v3839 = vpop.f32.mrb[0].mxu0
        %v3840 = vadd.f32 %v3705, %v3839
        %v3841 = vpop.f32.mrb[0].mxu0
        %3842 = vmatprep.mubr.bf16.mxu0 0
        %3843 = vmatmul.mubr.bf16.gmra.mrb[0].mxu0 %v3740
        %v3844 = vpop.f32.mrb[0].mxu0
        %v3845 = vadd.f32 %v3705, %v3844
        %v3846 = vpop.f32.mrb[0].mxu0
        %v3847 = vpop.f32.mrb[0].mxu0
        %v3848 = vadd.f32 %v3705, %v3847
        %v3849 = vpop.f32.mrb[0].mxu0
        %3850 = vmatprep.mubr.bf16.mxu0 0
        %3851 = vmatmul.mubr.bf16.gmra.mrb[0].mxu0 %v3743
        %v3852 = vpop.f32.mrb[0].mxu0
        %v3853 = vadd.f32 %v3705, %v3852
        %v3854 = vpop.f32.mrb[0].mxu0
        %v3855 = vpop.f32.mrb[0].mxu0
        %v3856 = vadd.f32 %v3705, %v3855
        %v3857 = vpop.f32.mrb[0].mxu0
        %3858 = vmatprep.mubr.bf16.mxu0 0
        %3859 = vmatmul.mubr.bf16.gmra.mrb[0].mxu0 %v3746
        %v3860 = vpop.f32.mrb[0].mxu0
        %v3861 = vadd.f32 %v3705, %v3860
        %v3862 = vpop.f32.mrb[0].mxu0
        %v3863 = vpop.f32.mrb[0].mxu0
        %v3864 = vadd.f32 %v3705, %v3863
        %v3865 = vpop.f32.mrb[0].mxu0
        %3866 = vmatprep.mubr.bf16.mxu0 0
        %3867 = vmatmul.mubr.bf16.gmra.mrb[0].mxu0 %v3749
        %v3868 = vpop.f32.mrb[0].mxu0
        %v3869 = vadd.f32 %v3705, %v3868
        %v3870 = vpop.f32.mrb[0].mxu0
        %v3871 = vpop.f32.mrb[0].mxu0
        %v3872 = vadd.f32 %v3705, %v3871
        %v3873 = vpop.f32.mrb[0].mxu0
        %3874 = vmatprep.mubr.bf16.mxu0 0
        %3875 = vmatmul.mubr.bf16.gmra.mrb[0].mxu0 %v3752
        %v3876 = vpop.f32.mrb[0].mxu0
        %v3877 = vadd.f32 %v3705, %v3876
        %v3878 = vpop.f32.mrb[0].mxu0
        %v3879 = vpop.f32.mrb[0].mxu0
        %v3880 = vadd.f32 %v3705, %v3879
        %v3881 = vpop.f32.mrb[0].mxu0
        %3882 = vdwg.mxu0
        %v3883 = vmax.f32 %v3789, 0.0
        %v3884 = vmax.f32 %v3792, 0.0
        %v3885 = vmax.f32 %v3797, 0.0
        %v3886 = vmax.f32 %v3800, 0.0
        %v3887 = vmax.f32 %v3805, 0.0
        %v3888 = vmax.f32 %v3808, 0.0
        %v3889 = vmax.f32 %v3813, 0.0
        %v3890 = vmax.f32 %v3816, 0.0
        %v3891 = vmax.f32 %v3821, 0.0
        %v3892 = vmax.f32 %v3824, 0.0
        %v3893 = vmax.f32 %v3829, 0.0
        %v3894 = vmax.f32 %v3832, 0.0
        %v3895 = vmax.f32 %v3837, 0.0
        %v3896 = vmax.f32 %v3840, 0.0
        %v3897 = vmax.f32 %v3845, 0.0
        %v3898 = vmax.f32 %v3848, 0.0
        %v3899 = vmax.f32 %v3853, 0.0
        %v3900 = vmax.f32 %v3856, 0.0
        %v3901 = vmax.f32 %v3861, 0.0
        %v3902 = vmax.f32 %v3864, 0.0
        %v3903 = vmax.f32 %v3869, 0.0
        %v3904 = vmax.f32 %v3872, 0.0
        %v3905 = vmax.f32 %v3877, 0.0
        %v3906 = vmax.f32 %v3880, 0.0
        %v3907 = vpack.c.bf16 %v3884, %v3883
        %v3908 = vpack.c.bf16 %v3885, %v3885
        %v3909 = vpack.c.bf16 %v3887, %v3886
        %v3910 = vpack.c.bf16 %v3888, %v3888
        %v3911 = vpack.c.bf16 %v3890, %v3889
        %v3912 = vpack.c.bf16 %v3891, %v3891
        %v3913 = vpack.c.bf16 %v3893, %v3892
        %v3914 = vpack.c.bf16 %v3894, %v3894
        %v3915 = vpack.c.bf16 %v3896, %v3895
        %v3916 = vpack.c.bf16 %v3897, %v3897
        %v3917 = vpack.c.bf16 %v3899, %v3898
        %v3918 = vpack.c.bf16 %v3900, %v3900
        %v3919 = vpack.c.bf16 %v3902, %v3901
        %v3920 = vpack.c.bf16 %v3903, %v3903
        %v3921 = vpack.c.bf16 %v3905, %v3904
        %v3922 = vpack.c.bf16 %v3906, %v3906
        %v3939 = vunpack.c.l.b16 %v3907
        %v3940 = vunpack.c.h.b16 %v3907
        %v3941 = vunpack.c.l.b16 %v3908
        %v3942 = vunpack.c.l.b16 %v3909
        %v3943 = vunpack.c.h.b16 %v3909
        %v3944 = vunpack.c.l.b16 %v3910
        %v3945 = vunpack.c.l.b16 %v3911
        %v3946 = vunpack.c.h.b16 %v3911
        %v3947 = vunpack.c.l.b16 %v3912
        %v3948 = vunpack.c.l.b16 %v3913
        %v3949 = vunpack.c.h.b16 %v3913
        %v3950 = vunpack.c.l.b16 %v3914
        %v3951 = vunpack.c.l.b16 %v3915
        %v3952 = vunpack.c.h.b16 %v3915
        %v3953 = vunpack.c.l.b16 %v3916
        %v3954 = vunpack.c.l.b16 %v3917
        %v3955 = vunpack.c.h.b16 %v3917
        %v3956 = vunpack.c.l.b16 %v3918
        %v3957 = vunpack.c.l.b16 %v3919
        %v3958 = vunpack.c.h.b16 %v3919
        %v3959 = vunpack.c.l.b16 %v3920
        %v3960 = vunpack.c.l.b16 %v3921
        %v3961 = vunpack.c.h.b16 %v3921
        %v3962 = vunpack.c.l.b16 %v3922
        %s3963 = scalar_lea.vmem %s9, 16
        %v3964 = vld [vmem:[%s3963] sm:$0xf]
        %v3965 = vld [vmem:[%s3963 + $0x4] sm:$0xf]
        %v3966 = vld [vmem:[%s3963 + $0x8] sm:$0xf]
        %v3967 = vld [vmem:[%s3963 + $0xc] sm:$0xf]
        %v3968 = vld [vmem:[%s10 + $0x1] sm:$0x1]
        %v3969 = vlaneseq
        %v3970 = vshrl.u32 %v3969, 7
        %v3971 = vsub.s32 0, %v3970
        %v3972 = vrot.slane %v3968, %v3971
        %v3973 = vpack.c.b16 %v3940, %v3939
        %v3974 = vpack.c.b16 %v3942, %v3941
        %v3975 = vpack.c.b16 %v3944, %v3943
        %v3976 = vpack.c.b16 %v3946, %v3945
        %v3977 = vpack.c.b16 %v3948, %v3947
        %v3978 = vpack.c.b16 %v3950, %v3949
        %v3979 = vpack.c.b16 %v3952, %v3951
        %v3980 = vpack.c.b16 %v3954, %v3953
        %v3981 = vpack.c.b16 %v3956, %v3955
        %v3982 = vpack.c.b16 %v3958, %v3957
        %v3983 = vpack.c.b16 %v3960, %v3959
        %v3984 = vpack.c.b16 %v3962, %v3961
        %v3989 = vunpack.c.l.b16 %v3964
        %v3990 = vunpack.c.l.b16 %v3965
        %v3991 = vunpack.c.l.b16 %v3966
        %v3992 = vunpack.c.l.b16 %v3967
        %v3993 = vpack.c.b16 %v3990, %v3989
        %v3994 = vpack.c.b16 %v3992, %v3991
        %v3998 = vsel %vm2211, %v3973, 0
        %v4001 = vsel %vm2211, %v3974, 0
        %v4004 = vsel %vm2211, %v3975, 0
        %v4007 = vsel %vm2211, %v3976, 0
        %v4010 = vsel %vm2211, %v3977, 0
        %v4013 = vsel %vm2211, %v3978, 0
        %v4016 = vsel %vm2211, %v3979, 0
        %v4019 = vsel %vm2211, %v3980, 0
        %v4022 = vsel %vm2211, %v3981, 0
        %v4025 = vsel %vm2211, %v3982, 0
        %v4028 = vsel %vm2211, %v3983, 0
        %v4031 = vsel %vm2211, %v3984, 0
        %4033 = vmatprep.subr.bf16.mxu0 0
        %4034 = vmatpush1.bf16.msra.mxu0 %v3993
        %4035 = vmatprep.subr.bf16.mxu0 0
        %4036 = vmatpush1.bf16.msra.mxu0 %v3994
        %4037 = vmatprep.subr.bf16.mxu0 0
        %4038 = vmatpush1.bf16.msra.mxu0 0
        %4039 = vmatprep.subr.bf16.mxu0 0
        %4040 = vmatpush1.bf16.msra.mxu0 0
        %4041 = vmatprep.subr.bf16.mxu0 0
        %4042 = vmatpush1.bf16.msra.mxu0 0
        %4043 = vmatprep.subr.bf16.mxu0 0
        %4044 = vmatpush1.bf16.msra.mxu0 0
        %4045 = vmatprep.subr.bf16.mxu0 0
        %4046 = vmatpush1.bf16.msra.mxu0 0
        %4047 = vmatprep.subr.bf16.mxu0 0
        %4048 = vmatpush1.bf16.msra.mxu0 0
        %4049 = vmatprep.subr.bf16.mxu0 0
        %4050 = vmatpush1.bf16.msra.mxu0 0
        %4051 = vmatprep.subr.bf16.mxu0 0
        %4052 = vmatpush1.bf16.msra.mxu0 0
        %4053 = vmatprep.subr.bf16.mxu0 0
        %4054 = vmatpush1.bf16.msra.mxu0 0
        %4055 = vmatprep.subr.bf16.mxu0 0
        %4056 = vmatpush1.bf16.msra.mxu0 0
        %4057 = vmatprep.subr.bf16.mxu0 0
        %4058 = vmatpush1.bf16.msra.mxu0 0
        %4059 = vmatprep.subr.bf16.mxu0 0
        %4060 = vmatpush1.bf16.msra.mxu0 0
        %4061 = vmatprep.subr.bf16.mxu0 0
        %4062 = vmatpush1.bf16.msra.mxu0 0
        %4063 = vmatprep.subr.bf16.mxu0 0
        %4064 = vmatpush1.bf16.msra.mxu0 0
        %4065 = vmatprep.mubr.bf16.mxu0 0
        %4066 = vmatmul.mubr.bf16.gmra.mrb[0].mxu0 %v3998
        %v4067 = vpop.f32.mrb[0].mxu0
        %v4068 = vadd.f32 %v3972, %v4067
        %v4069 = vpop.f32.mrb[0].mxu0
        %v4070 = vpop.f32.mrb[0].mxu0
        %v4071 = vadd.f32 %v3972, %v4070
        %v4072 = vpop.f32.mrb[0].mxu0
        %4073 = vmatprep.mubr.bf16.mxu0 0
        %4074 = vmatmul.mubr.bf16.gmra.mrb[0].mxu0 %v4001
        %v4075 = vpop.f32.mrb[0].mxu0
        %v4076 = vadd.f32 %v3972, %v4075
        %v4077 = vpop.f32.mrb[0].mxu0
        %v4078 = vpop.f32.mrb[0].mxu0
        %v4079 = vadd.f32 %v3972, %v4078
        %v4080 = vpop.f32.mrb[0].mxu0
        %4081 = vmatprep.mubr.bf16.mxu0 0
        %4082 = vmatmul.mubr.bf16.gmra.mrb[0].mxu0 %v4004
        %v4083 = vpop.f32.mrb[0].mxu0
        %v4084 = vadd.f32 %v3972, %v4083
        %v4085 = vpop.f32.mrb[0].mxu0
        %v4086 = vpop.f32.mrb[0].mxu0
        %v4087 = vadd.f32 %v3972, %v4086
        %v4088 = vpop.f32.mrb[0].mxu0
        %4089 = vmatprep.mubr.bf16.mxu0 0
        %4090 = vmatmul.mubr.bf16.gmra.mrb[0].mxu0 %v4007
        %v4091 = vpop.f32.mrb[0].mxu0
        %v4092 = vadd.f32 %v3972, %v4091
        %v4093 = vpop.f32.mrb[0].mxu0
        %v4094 = vpop.f32.mrb[0].mxu0
        %v4095 = vadd.f32 %v3972, %v4094
        %v4096 = vpop.f32.mrb[0].mxu0
        %4097 = vmatprep.mubr.bf16.mxu0 0
        %4098 = vmatmul.mubr.bf16.gmra.mrb[0].mxu0 %v4010
        %v4099 = vpop.f32.mrb[0].mxu0
        %v4100 = vadd.f32 %v3972, %v4099
        %v4101 = vpop.f32.mrb[0].mxu0
        %v4102 = vpop.f32.mrb[0].mxu0
        %v4103 = vadd.f32 %v3972, %v4102
        %v4104 = vpop.f32.mrb[0].mxu0
        %4105 = vmatprep.mubr.bf16.mxu0 0
        %4106 = vmatmul.mubr.bf16.gmra.mrb[0].mxu0 %v4013
        %v4107 = vpop.f32.mrb[0].mxu0
        %v4108 = vadd.f32 %v3972, %v4107
        %v4109 = vpop.f32.mrb[0].mxu0
        %v4110 = vpop.f32.mrb[0].mxu0
        %v4111 = vadd.f32 %v3972, %v4110
        %v4112 = vpop.f32.mrb[0].mxu0
        %4113 = vmatprep.mubr.bf16.mxu0 0
        %4114 = vmatmul.mubr.bf16.gmra.mrb[0].mxu0 %v4016
        %v4115 = vpop.f32.mrb[0].mxu0
        %v4116 = vadd.f32 %v3972, %v4115
        %v4117 = vpop.f32.mrb[0].mxu0
        %v4118 = vpop.f32.mrb[0].mxu0
        %v4119 = vadd.f32 %v3972, %v4118
        %v4120 = vpop.f32.mrb[0].mxu0
        %4121 = vmatprep.mubr.bf16.mxu0 0
        %4122 = vmatmul.mubr.bf16.gmra.mrb[0].mxu0 %v4019
        %v4123 = vpop.f32.mrb[0].mxu0
        %v4124 = vadd.f32 %v3972, %v4123
        %v4125 = vpop.f32.mrb[0].mxu0
        %v4126 = vpop.f32.mrb[0].mxu0
        %v4127 = vadd.f32 %v3972, %v4126
        %v4128 = vpop.f32.mrb[0].mxu0
        %4129 = vmatprep.mubr.bf16.mxu0 0
        %4130 = vmatmul.mubr.bf16.gmra.mrb[0].mxu0 %v4022
        %v4131 = vpop.f32.mrb[0].mxu0
        %v4132 = vadd.f32 %v3972, %v4131
        %v4133 = vpop.f32.mrb[0].mxu0
        %v4134 = vpop.f32.mrb[0].mxu0
        %v4135 = vadd.f32 %v3972, %v4134
        %v4136 = vpop.f32.mrb[0].mxu0
        %4137 = vmatprep.mubr.bf16.mxu0 0
        %4138 = vmatmul.mubr.bf16.gmra.mrb[0].mxu0 %v4025
        %v4139 = vpop.f32.mrb[0].mxu0
        %v4140 = vadd.f32 %v3972, %v4139
        %v4141 = vpop.f32.mrb[0].mxu0
        %v4142 = vpop.f32.mrb[0].mxu0
        %v4143 = vadd.f32 %v3972, %v4142
        %v4144 = vpop.f32.mrb[0].mxu0
        %4145 = vmatprep.mubr.bf16.mxu0 0
        %4146 = vmatmul.mubr.bf16.gmra.mrb[0].mxu0 %v4028
        %v4147 = vpop.f32.mrb[0].mxu0
        %v4148 = vadd.f32 %v3972, %v4147
        %v4149 = vpop.f32.mrb[0].mxu0
        %v4150 = vpop.f32.mrb[0].mxu0
        %v4151 = vadd.f32 %v3972, %v4150
        %v4152 = vpop.f32.mrb[0].mxu0
        %4153 = vmatprep.mubr.bf16.mxu0 0
        %4154 = vmatmul.mubr.bf16.gmra.mrb[0].mxu0 %v4031
        %v4155 = vpop.f32.mrb[0].mxu0
        %v4156 = vadd.f32 %v3972, %v4155
        %v4157 = vpop.f32.mrb[0].mxu0
        %v4158 = vpop.f32.mrb[0].mxu0
        %v4159 = vadd.f32 %v3972, %v4158
        %v4160 = vpop.f32.mrb[0].mxu0
        %4161 = vdwg.mxu0
        %v4162 = vpack.c.bf16 %v4071, %v4068
        %v4163 = vpack.c.bf16 %v4076, %v4076
        %v4164 = vpack.c.bf16 %v4084, %v4079
        %v4165 = vpack.c.bf16 %v4087, %v4087
        %v4166 = vpack.c.bf16 %v4095, %v4092
        %v4167 = vpack.c.bf16 %v4100, %v4100
        %v4168 = vpack.c.bf16 %v4108, %v4103
        %v4169 = vpack.c.bf16 %v4111, %v4111
        %v4170 = vpack.c.bf16 %v4119, %v4116
        %v4171 = vpack.c.bf16 %v4124, %v4124
        %v4172 = vpack.c.bf16 %v4132, %v4127
        %v4173 = vpack.c.bf16 %v4135, %v4135
        %v4174 = vpack.c.bf16 %v4143, %v4140
        %v4175 = vpack.c.bf16 %v4148, %v4148
        %v4176 = vpack.c.bf16 %v4156, %v4151
        %v4177 = vpack.c.bf16 %v4159, %v4159
        %4180 = vrot.lane.b32.xlu0 %v4162, 96
        %v4181 = vpop.permute.xlu0 %4180
        %4182 = vrot.lane.b32.xlu0 %v4163, 96
        %v4183 = vpop.permute.xlu0 %4182
        %v4185 = vsel %vm2211, %v4162, 0
        %v4188 = vsel %vm2211, %v4163, 0
        %v4191 = vsel %vm2211, %v4181, 0
        %v4194 = vsel %vm2211, %v4183, 0
        %4196 = vmatprep.subr.bf16.mxu0 0
        %4197 = vmatpush1.bf16.xpose.msra.mxu0 %v4191
        %4198 = vmatprep.subr.bf16.mxu0 0
        %4199 = vmatpush1.bf16.xpose.msra.mxu0 %v4194
        %4200 = vmatprep.subr.bf16.mxu0 0
        %4201 = vmatpush1.bf16.xpose.msra.mxu0 0
        %4202 = vmatprep.subr.bf16.mxu0 0
        %4203 = vmatpush1.bf16.xpose.msra.mxu0 0
        %4204 = vmatprep.subr.bf16.mxu0 0
        %4205 = vmatpush1.bf16.xpose.msra.mxu0 0
        %4206 = vmatprep.subr.bf16.mxu0 0
        %4207 = vmatpush1.bf16.xpose.msra.mxu0 0
        %4208 = vmatprep.subr.bf16.mxu0 0
        %4209 = vmatpush1.bf16.xpose.msra.mxu0 0
        %4210 = vmatprep.subr.bf16.mxu0 0
        %4211 = vmatpush1.bf16.xpose.msra.mxu0 0
        %4212 = vmatprep.subr.bf16.mxu0 0
        %4213 = vmatpush1.bf16.xpose.msra.mxu0 0
        %4214 = vmatprep.subr.bf16.mxu0 0
        %4215 = vmatpush1.bf16.xpose.msra.mxu0 0
        %4216 = vmatprep.subr.bf16.mxu0 0
        %4217 = vmatpush1.bf16.xpose.msra.mxu0 0
        %4218 = vmatprep.subr.bf16.mxu0 0
        %4219 = vmatpush1.bf16.xpose.msra.mxu0 0
        %4220 = vmatprep.subr.bf16.mxu0 0
        %4221 = vmatpush1.bf16.xpose.msra.mxu0 0
        %4222 = vmatprep.subr.bf16.mxu0 0
        %4223 = vmatpush1.bf16.xpose.msra.mxu0 0
        %4224 = vmatprep.subr.bf16.mxu0 0
        %4225 = vmatpush1.bf16.xpose.msra.mxu0 0
        %4226 = vmatprep.subr.bf16.mxu0 0
        %4227 = vmatpush1.bf16.xpose.msra.mxu0 0
        %4228 = vmatprep.mubr.bf16.mxu0 0
        %4229 = vmatmul.mubr.bf16.gmra.mrb[0].mxu0 %v4185
        %v4230 = vpop.f32.mrb[0].mxu0
        %v4231 = vadd.f32 0.0, %v4230
        %v4232 = vpop.f32.mrb[0].mxu0
        %v4233 = vpop.f32.mrb[0].mxu0
        %v4234 = vadd.f32 0.0, %v4233
        %v4235 = vpop.f32.mrb[0].mxu0
        %4236 = vmatprep.mubr.bf16.mxu0 0
        %4237 = vmatmul.mubr.bf16.gmra.mrb[0].mxu0 %v4188
        %v4238 = vpop.f32.mrb[0].mxu0
        %v4239 = vadd.f32 0.0, %v4238
        %v4240 = vpop.f32.mrb[0].mxu0
        %v4241 = vpop.f32.mrb[0].mxu0
        %v4242 = vpop.f32.mrb[0].mxu0
        %4243 = vdwg.mxu0
        %4246 = vrot.lane.b32.xlu0 %v4164, 96
        %v4247 = vpop.permute.xlu0 %4246
        %4248 = vrot.lane.b32.xlu0 %v4165, 96
        %v4249 = vpop.permute.xlu0 %4248
        %v4251 = vsel %vm2211, %v4164, 0
        %v4254 = vsel %vm2211, %v4165, 0
        %v4257 = vsel %vm2211, %v4247, 0
        %v4260 = vsel %vm2211, %v4249, 0
        %4262 = vmatprep.subr.bf16.mxu0 0
        %4263 = vmatpush1.bf16.xpose.msra.mxu0 %v4257
        %4264 = vmatprep.subr.bf16.mxu0 0
        %4265 = vmatpush1.bf16.xpose.msra.mxu0 %v4260
        %4266 = vmatprep.subr.bf16.mxu0 0
        %4267 = vmatpush1.bf16.xpose.msra.mxu0 0
        %4268 = vmatprep.subr.bf16.mxu0 0
        %4269 = vmatpush1.bf16.xpose.msra.mxu0 0
        %4270 = vmatprep.subr.bf16.mxu0 0
        %4271 = vmatpush1.bf16.xpose.msra.mxu0 0
        %4272 = vmatprep.subr.bf16.mxu0 0
        %4273 = vmatpush1.bf16.xpose.msra.mxu0 0
        %4274 = vmatprep.subr.bf16.mxu0 0
        %4275 = vmatpush1.bf16.xpose.msra.mxu0 0
        %4276 = vmatprep.subr.bf16.mxu0 0
        %4277 = vmatpush1.bf16.xpose.msra.mxu0 0
        %4278 = vmatprep.subr.bf16.mxu0 0
        %4279 = vmatpush1.bf16.xpose.msra.mxu0 0
        %4280 = vmatprep.subr.bf16.mxu0 0
        %4281 = vmatpush1.bf16.xpose.msra.mxu0 0
        %4282 = vmatprep.subr.bf16.mxu0 0
        %4283 = vmatpush1.bf16.xpose.msra.mxu0 0
        %4284 = vmatprep.subr.bf16.mxu0 0
        %4285 = vmatpush1.bf16.xpose.msra.mxu0 0
        %4286 = vmatprep.subr.bf16.mxu0 0
        %4287 = vmatpush1.bf16.xpose.msra.mxu0 0
        %4288 = vmatprep.subr.bf16.mxu0 0
        %4289 = vmatpush1.bf16.xpose.msra.mxu0 0
        %4290 = vmatprep.subr.bf16.mxu0 0
        %4291 = vmatpush1.bf16.xpose.msra.mxu0 0
        %4292 = vmatprep.subr.bf16.mxu0 0
        %4293 = vmatpush1.bf16.xpose.msra.mxu0 0
        %4294 = vmatprep.mubr.bf16.mxu0 0
        %4295 = vmatmul.mubr.bf16.gmra.mrb[0].mxu0 %v4251
        %v4296 = vpop.f32.mrb[0].mxu0
        %v4297 = vadd.f32 0.0, %v4296
        %v4298 = vpop.f32.mrb[0].mxu0
        %v4299 = vpop.f32.mrb[0].mxu0
        %v4300 = vadd.f32 0.0, %v4299
        %v4301 = vpop.f32.mrb[0].mxu0
        %4302 = vmatprep.mubr.bf16.mxu0 0
        %4303 = vmatmul.mubr.bf16.gmra.mrb[0].mxu0 %v4254
        %v4304 = vpop.f32.mrb[0].mxu0
        %v4305 = vadd.f32 0.0, %v4304
        %v4306 = vpop.f32.mrb[0].mxu0
        %v4307 = vpop.f32.mrb[0].mxu0
        %v4308 = vpop.f32.mrb[0].mxu0
        %4309 = vdwg.mxu0
        %4312 = vrot.lane.b32.xlu0 %v4166, 96
        %v4313 = vpop.permute.xlu0 %4312
        %4314 = vrot.lane.b32.xlu0 %v4167, 96
        %v4315 = vpop.permute.xlu0 %4314
        %v4317 = vsel %vm2211, %v4166, 0
        %v4320 = vsel %vm2211, %v4167, 0
        %v4323 = vsel %vm2211, %v4313, 0
        %v4326 = vsel %vm2211, %v4315, 0
        %4328 = vmatprep.subr.bf16.mxu0 0
        %4329 = vmatpush1.bf16.xpose.msra.mxu0 %v4323
        %4330 = vmatprep.subr.bf16.mxu0 0
        %4331 = vmatpush1.bf16.xpose.msra.mxu0 %v4326
        %4332 = vmatprep.subr.bf16.mxu0 0
        %4333 = vmatpush1.bf16.xpose.msra.mxu0 0
        %4334 = vmatprep.subr.bf16.mxu0 0
        %4335 = vmatpush1.bf16.xpose.msra.mxu0 0
        %4336 = vmatprep.subr.bf16.mxu0 0
        %4337 = vmatpush1.bf16.xpose.msra.mxu0 0
        %4338 = vmatprep.subr.bf16.mxu0 0
        %4339 = vmatpush1.bf16.xpose.msra.mxu0 0
        %4340 = vmatprep.subr.bf16.mxu0 0
        %4341 = vmatpush1.bf16.xpose.msra.mxu0 0
        %4342 = vmatprep.subr.bf16.mxu0 0
        %4343 = vmatpush1.bf16.xpose.msra.mxu0 0
        %4344 = vmatprep.subr.bf16.mxu0 0
        %4345 = vmatpush1.bf16.xpose.msra.mxu0 0
        %4346 = vmatprep.subr.bf16.mxu0 0
        %4347 = vmatpush1.bf16.xpose.msra.mxu0 0
        %4348 = vmatprep.subr.bf16.mxu0 0
        %4349 = vmatpush1.bf16.xpose.msra.mxu0 0
        %4350 = vmatprep.subr.bf16.mxu0 0
        %4351 = vmatpush1.bf16.xpose.msra.mxu0 0
        %4352 = vmatprep.subr.bf16.mxu0 0
        %4353 = vmatpush1.bf16.xpose.msra.mxu0 0
        %4354 = vmatprep.subr.bf16.mxu0 0
        %4355 = vmatpush1.bf16.xpose.msra.mxu0 0
        %4356 = vmatprep.subr.bf16.mxu0 0
        %4357 = vmatpush1.bf16.xpose.msra.mxu0 0
        %4358 = vmatprep.subr.bf16.mxu0 0
        %4359 = vmatpush1.bf16.xpose.msra.mxu0 0
        %4360 = vmatprep.mubr.bf16.mxu0 0
        %4361 = vmatmul.mubr.bf16.gmra.mrb[0].mxu0 %v4317
        %v4362 = vpop.f32.mrb[0].mxu0
        %v4363 = vadd.f32 0.0, %v4362
        %v4364 = vpop.f32.mrb[0].mxu0
        %v4365 = vpop.f32.mrb[0].mxu0
        %v4366 = vadd.f32 0.0, %v4365
        %v4367 = vpop.f32.mrb[0].mxu0
        %4368 = vmatprep.mubr.bf16.mxu0 0
        %4369 = vmatmul.mubr.bf16.gmra.mrb[0].mxu0 %v4320
        %v4370 = vpop.f32.mrb[0].mxu0
        %v4371 = vadd.f32 0.0, %v4370
        %v4372 = vpop.f32.mrb[0].mxu0
        %v4373 = vpop.f32.mrb[0].mxu0
        %v4374 = vpop.f32.mrb[0].mxu0
        %4375 = vdwg.mxu0
        %4378 = vrot.lane.b32.xlu0 %v4168, 96
        %v4379 = vpop.permute.xlu0 %4378
        %4380 = vrot.lane.b32.xlu0 %v4169, 96
        %v4381 = vpop.permute.xlu0 %4380
        %v4383 = vsel %vm2211, %v4168, 0
        %v4386 = vsel %vm2211, %v4169, 0
        %v4389 = vsel %vm2211, %v4379, 0
        %v4392 = vsel %vm2211, %v4381, 0
        %4394 = vmatprep.subr.bf16.mxu0 0
        %4395 = vmatpush1.bf16.xpose.msra.mxu0 %v4389
        %4396 = vmatprep.subr.bf16.mxu0 0
        %4397 = vmatpush1.bf16.xpose.msra.mxu0 %v4392
        %4398 = vmatprep.subr.bf16.mxu0 0
        %4399 = vmatpush1.bf16.xpose.msra.mxu0 0
        %4400 = vmatprep.subr.bf16.mxu0 0
        %4401 = vmatpush1.bf16.xpose.msra.mxu0 0
        %4402 = vmatprep.subr.bf16.mxu0 0
        %4403 = vmatpush1.bf16.xpose.msra.mxu0 0
        %4404 = vmatprep.subr.bf16.mxu0 0
        %4405 = vmatpush1.bf16.xpose.msra.mxu0 0
        %4406 = vmatprep.subr.bf16.mxu0 0
        %4407 = vmatpush1.bf16.xpose.msra.mxu0 0
        %4408 = vmatprep.subr.bf16.mxu0 0
        %4409 = vmatpush1.bf16.xpose.msra.mxu0 0
        %4410 = vmatprep.subr.bf16.mxu0 0
        %4411 = vmatpush1.bf16.xpose.msra.mxu0 0
        %4412 = vmatprep.subr.bf16.mxu0 0
        %4413 = vmatpush1.bf16.xpose.msra.mxu0 0
        %4414 = vmatprep.subr.bf16.mxu0 0
        %4415 = vmatpush1.bf16.xpose.msra.mxu0 0
        %4416 = vmatprep.subr.bf16.mxu0 0
        %4417 = vmatpush1.bf16.xpose.msra.mxu0 0
        %4418 = vmatprep.subr.bf16.mxu0 0
        %4419 = vmatpush1.bf16.xpose.msra.mxu0 0
        %4420 = vmatprep.subr.bf16.mxu0 0
        %4421 = vmatpush1.bf16.xpose.msra.mxu0 0
        %4422 = vmatprep.subr.bf16.mxu0 0
        %4423 = vmatpush1.bf16.xpose.msra.mxu0 0
        %4424 = vmatprep.subr.bf16.mxu0 0
        %4425 = vmatpush1.bf16.xpose.msra.mxu0 0
        %4426 = vmatprep.mubr.bf16.mxu0 0
        %4427 = vmatmul.mubr.bf16.gmra.mrb[0].mxu0 %v4383
        %v4428 = vpop.f32.mrb[0].mxu0
        %v4429 = vadd.f32 0.0, %v4428
        %v4430 = vpop.f32.mrb[0].mxu0
        %v4431 = vpop.f32.mrb[0].mxu0
        %v4432 = vadd.f32 0.0, %v4431
        %v4433 = vpop.f32.mrb[0].mxu0
        %4434 = vmatprep.mubr.bf16.mxu0 0
        %4435 = vmatmul.mubr.bf16.gmra.mrb[0].mxu0 %v4386
        %v4436 = vpop.f32.mrb[0].mxu0
        %v4437 = vadd.f32 0.0, %v4436
        %v4438 = vpop.f32.mrb[0].mxu0
        %v4439 = vpop.f32.mrb[0].mxu0
        %v4440 = vpop.f32.mrb[0].mxu0
        %4441 = vdwg.mxu0
        %4444 = vrot.lane.b32.xlu0 %v4170, 96
        %v4445 = vpop.permute.xlu0 %4444
        %4446 = vrot.lane.b32.xlu0 %v4171, 96
        %v4447 = vpop.permute.xlu0 %4446
        %v4449 = vsel %vm2211, %v4170, 0
        %v4452 = vsel %vm2211, %v4171, 0
        %v4455 = vsel %vm2211, %v4445, 0
        %v4458 = vsel %vm2211, %v4447, 0
        %4460 = vmatprep.subr.bf16.mxu0 0
        %4461 = vmatpush1.bf16.xpose.msra.mxu0 %v4455
        %4462 = vmatprep.subr.bf16.mxu0 0
        %4463 = vmatpush1.bf16.xpose.msra.mxu0 %v4458
        %4464 = vmatprep.subr.bf16.mxu0 0
        %4465 = vmatpush1.bf16.xpose.msra.mxu0 0
        %4466 = vmatprep.subr.bf16.mxu0 0
        %4467 = vmatpush1.bf16.xpose.msra.mxu0 0
        %4468 = vmatprep.subr.bf16.mxu0 0
        %4469 = vmatpush1.bf16.xpose.msra.mxu0 0
        %4470 = vmatprep.subr.bf16.mxu0 0
        %4471 = vmatpush1.bf16.xpose.msra.mxu0 0
        %4472 = vmatprep.subr.bf16.mxu0 0
        %4473 = vmatpush1.bf16.xpose.msra.mxu0 0
        %4474 = vmatprep.subr.bf16.mxu0 0
        %4475 = vmatpush1.bf16.xpose.msra.mxu0 0
        %4476 = vmatprep.subr.bf16.mxu0 0
        %4477 = vmatpush1.bf16.xpose.msra.mxu0 0
        %4478 = vmatprep.subr.bf16.mxu0 0
        %4479 = vmatpush1.bf16.xpose.msra.mxu0 0
        %4480 = vmatprep.subr.bf16.mxu0 0
        %4481 = vmatpush1.bf16.xpose.msra.mxu0 0
        %4482 = vmatprep.subr.bf16.mxu0 0
        %4483 = vmatpush1.bf16.xpose.msra.mxu0 0
        %4484 = vmatprep.subr.bf16.mxu0 0
        %4485 = vmatpush1.bf16.xpose.msra.mxu0 0
        %4486 = vmatprep.subr.bf16.mxu0 0
        %4487 = vmatpush1.bf16.xpose.msra.mxu0 0
        %4488 = vmatprep.subr.bf16.mxu0 0
        %4489 = vmatpush1.bf16.xpose.msra.mxu0 0
        %4490 = vmatprep.subr.bf16.mxu0 0
        %4491 = vmatpush1.bf16.xpose.msra.mxu0 0
        %4492 = vmatprep.mubr.bf16.mxu0 0
        %4493 = vmatmul.mubr.bf16.gmra.mrb[0].mxu0 %v4449
        %v4494 = vpop.f32.mrb[0].mxu0
        %v4495 = vadd.f32 0.0, %v4494
        %v4496 = vpop.f32.mrb[0].mxu0
        %v4497 = vpop.f32.mrb[0].mxu0
        %v4498 = vadd.f32 0.0, %v4497
        %v4499 = vpop.f32.mrb[0].mxu0
        %4500 = vmatprep.mubr.bf16.mxu0 0
        %4501 = vmatmul.mubr.bf16.gmra.mrb[0].mxu0 %v4452
        %v4502 = vpop.f32.mrb[0].mxu0
        %v4503 = vadd.f32 0.0, %v4502
        %v4504 = vpop.f32.mrb[0].mxu0
        %v4505 = vpop.f32.mrb[0].mxu0
        %v4506 = vpop.f32.mrb[0].mxu0
        %4507 = vdwg.mxu0
        %4510 = vrot.lane.b32.xlu0 %v4172, 96
        %v4511 = vpop.permute.xlu0 %4510
        %4512 = vrot.lane.b32.xlu0 %v4173, 96
        %v4513 = vpop.permute.xlu0 %4512
        %v4515 = vsel %vm2211, %v4172, 0
        %v4518 = vsel %vm2211, %v4173, 0
        %v4521 = vsel %vm2211, %v4511, 0
        %v4524 = vsel %vm2211, %v4513, 0
        %4526 = vmatprep.subr.bf16.mxu0 0
        %4527 = vmatpush1.bf16.xpose.msra.mxu0 %v4521
        %4528 = vmatprep.subr.bf16.mxu0 0
        %4529 = vmatpush1.bf16.xpose.msra.mxu0 %v4524
        %4530 = vmatprep.subr.bf16.mxu0 0
        %4531 = vmatpush1.bf16.xpose.msra.mxu0 0
        %4532 = vmatprep.subr.bf16.mxu0 0
        %4533 = vmatpush1.bf16.xpose.msra.mxu0 0
        %4534 = vmatprep.subr.bf16.mxu0 0
        %4535 = vmatpush1.bf16.xpose.msra.mxu0 0
        %4536 = vmatprep.subr.bf16.mxu0 0
        %4537 = vmatpush1.bf16.xpose.msra.mxu0 0
        %4538 = vmatprep.subr.bf16.mxu0 0
        %4539 = vmatpush1.bf16.xpose.msra.mxu0 0
        %4540 = vmatprep.subr.bf16.mxu0 0
        %4541 = vmatpush1.bf16.xpose.msra.mxu0 0
        %4542 = vmatprep.subr.bf16.mxu0 0
        %4543 = vmatpush1.bf16.xpose.msra.mxu0 0
        %4544 = vmatprep.subr.bf16.mxu0 0
        %4545 = vmatpush1.bf16.xpose.msra.mxu0 0
        %4546 = vmatprep.subr.bf16.mxu0 0
        %4547 = vmatpush1.bf16.xpose.msra.mxu0 0
        %4548 = vmatprep.subr.bf16.mxu0 0
        %4549 = vmatpush1.bf16.xpose.msra.mxu0 0
        %4550 = vmatprep.subr.bf16.mxu0 0
        %4551 = vmatpush1.bf16.xpose.msra.mxu0 0
        %4552 = vmatprep.subr.bf16.mxu0 0
        %4553 = vmatpush1.bf16.xpose.msra.mxu0 0
        %4554 = vmatprep.subr.bf16.mxu0 0
        %4555 = vmatpush1.bf16.xpose.msra.mxu0 0
        %4556 = vmatprep.subr.bf16.mxu0 0
        %4557 = vmatpush1.bf16.xpose.msra.mxu0 0
        %4558 = vmatprep.mubr.bf16.mxu0 0
        %4559 = vmatmul.mubr.bf16.gmra.mrb[0].mxu0 %v4515
        %v4560 = vpop.f32.mrb[0].mxu0
        %v4561 = vadd.f32 0.0, %v4560
        %v4562 = vpop.f32.mrb[0].mxu0
        %v4563 = vpop.f32.mrb[0].mxu0
        %v4564 = vadd.f32 0.0, %v4563
        %v4565 = vpop.f32.mrb[0].mxu0
        %4566 = vmatprep.mubr.bf16.mxu0 0
        %4567 = vmatmul.mubr.bf16.gmra.mrb[0].mxu0 %v4518
        %v4568 = vpop.f32.mrb[0].mxu0
        %v4569 = vadd.f32 0.0, %v4568
        %v4570 = vpop.f32.mrb[0].mxu0
        %v4571 = vpop.f32.mrb[0].mxu0
        %v4572 = vpop.f32.mrb[0].mxu0
        %4573 = vdwg.mxu0
        %4576 = vrot.lane.b32.xlu0 %v4174, 96
        %v4577 = vpop.permute.xlu0 %4576
        %4578 = vrot.lane.b32.xlu0 %v4175, 96
        %v4579 = vpop.permute.xlu0 %4578
        %v4581 = vsel %vm2211, %v4174, 0
        %v4584 = vsel %vm2211, %v4175, 0
        %v4587 = vsel %vm2211, %v4577, 0
        %v4590 = vsel %vm2211, %v4579, 0
        %4592 = vmatprep.subr.bf16.mxu0 0
        %4593 = vmatpush1.bf16.xpose.msra.mxu0 %v4587
        %4594 = vmatprep.subr.bf16.mxu0 0
        %4595 = vmatpush1.bf16.xpose.msra.mxu0 %v4590
        %4596 = vmatprep.subr.bf16.mxu0 0
        %4597 = vmatpush1.bf16.xpose.msra.mxu0 0
        %4598 = vmatprep.subr.bf16.mxu0 0
        %4599 = vmatpush1.bf16.xpose.msra.mxu0 0
        %4600 = vmatprep.subr.bf16.mxu0 0
        %4601 = vmatpush1.bf16.xpose.msra.mxu0 0
        %4602 = vmatprep.subr.bf16.mxu0 0
        %4603 = vmatpush1.bf16.xpose.msra.mxu0 0
        %4604 = vmatprep.subr.bf16.mxu0 0
        %4605 = vmatpush1.bf16.xpose.msra.mxu0 0
        %4606 = vmatprep.subr.bf16.mxu0 0
        %4607 = vmatpush1.bf16.xpose.msra.mxu0 0
        %4608 = vmatprep.subr.bf16.mxu0 0
        %4609 = vmatpush1.bf16.xpose.msra.mxu0 0
        %4610 = vmatprep.subr.bf16.mxu0 0
        %4611 = vmatpush1.bf16.xpose.msra.mxu0 0
        %4612 = vmatprep.subr.bf16.mxu0 0
        %4613 = vmatpush1.bf16.xpose.msra.mxu0 0
        %4614 = vmatprep.subr.bf16.mxu0 0
        %4615 = vmatpush1.bf16.xpose.msra.mxu0 0
        %4616 = vmatprep.subr.bf16.mxu0 0
        %4617 = vmatpush1.bf16.xpose.msra.mxu0 0
        %4618 = vmatprep.subr.bf16.mxu0 0
        %4619 = vmatpush1.bf16.xpose.msra.mxu0 0
        %4620 = vmatprep.subr.bf16.mxu0 0
        %4621 = vmatpush1.bf16.xpose.msra.mxu0 0
        %4622 = vmatprep.subr.bf16.mxu0 0
        %4623 = vmatpush1.bf16.xpose.msra.mxu0 0
        %4624 = vmatprep.mubr.bf16.mxu0 0
        %4625 = vmatmul.mubr.bf16.gmra.mrb[0].mxu0 %v4581
        %v4626 = vpop.f32.mrb[0].mxu0
        %v4627 = vadd.f32 0.0, %v4626
        %v4628 = vpop.f32.mrb[0].mxu0
        %v4629 = vpop.f32.mrb[0].mxu0
        %v4630 = vadd.f32 0.0, %v4629
        %v4631 = vpop.f32.mrb[0].mxu0
        %4632 = vmatprep.mubr.bf16.mxu0 0
        %4633 = vmatmul.mubr.bf16.gmra.mrb[0].mxu0 %v4584
        %v4634 = vpop.f32.mrb[0].mxu0
        %v4635 = vadd.f32 0.0, %v4634
        %v4636 = vpop.f32.mrb[0].mxu0
        %v4637 = vpop.f32.mrb[0].mxu0
        %v4638 = vpop.f32.mrb[0].mxu0
        %4639 = vdwg.mxu0
        %4642 = vrot.lane.b32.xlu0 %v4176, 96
        %v4643 = vpop.permute.xlu0 %4642
        %4644 = vrot.lane.b32.xlu0 %v4177, 96
        %v4645 = vpop.permute.xlu0 %4644
        %v4647 = vsel %vm2211, %v4176, 0
        %v4650 = vsel %vm2211, %v4177, 0
        %v4653 = vsel %vm2211, %v4643, 0
        %v4656 = vsel %vm2211, %v4645, 0
        %4658 = vmatprep.subr.bf16.mxu0 0
        %4659 = vmatpush1.bf16.xpose.msra.mxu0 %v4653
        %4660 = vmatprep.subr.bf16.mxu0 0
        %4661 = vmatpush1.bf16.xpose.msra.mxu0 %v4656
        %4662 = vmatprep.subr.bf16.mxu0 0
        %4663 = vmatpush1.bf16.xpose.msra.mxu0 0
        %4664 = vmatprep.subr.bf16.mxu0 0
        %4665 = vmatpush1.bf16.xpose.msra.mxu0 0
        %4666 = vmatprep.subr.bf16.mxu0 0
        %4667 = vmatpush1.bf16.xpose.msra.mxu0 0
        %4668 = vmatprep.subr.bf16.mxu0 0
        %4669 = vmatpush1.bf16.xpose.msra.mxu0 0
        %4670 = vmatprep.subr.bf16.mxu0 0
        %4671 = vmatpush1.bf16.xpose.msra.mxu0 0
        %4672 = vmatprep.subr.bf16.mxu0 0
        %4673 = vmatpush1.bf16.xpose.msra.mxu0 0
        %4674 = vmatprep.subr.bf16.mxu0 0
        %4675 = vmatpush1.bf16.xpose.msra.mxu0 0
        %4676 = vmatprep.subr.bf16.mxu0 0
        %4677 = vmatpush1.bf16.xpose.msra.mxu0 0
        %4678 = vmatprep.subr.bf16.mxu0 0
        %4679 = vmatpush1.bf16.xpose.msra.mxu0 0
        %4680 = vmatprep.subr.bf16.mxu0 0
        %4681 = vmatpush1.bf16.xpose.msra.mxu0 0
        %4682 = vmatprep.subr.bf16.mxu0 0
        %4683 = vmatpush1.bf16.xpose.msra.mxu0 0
        %4684 = vmatprep.subr.bf16.mxu0 0
        %4685 = vmatpush1.bf16.xpose.msra.mxu0 0
        %4686 = vmatprep.subr.bf16.mxu0 0
        %4687 = vmatpush1.bf16.xpose.msra.mxu0 0
        %4688 = vmatprep.subr.bf16.mxu0 0
        %4689 = vmatpush1.bf16.xpose.msra.mxu0 0
        %4690 = vmatprep.mubr.bf16.mxu0 0
        %4691 = vmatmul.mubr.bf16.gmra.mrb[0].mxu0 %v4647
        %v4692 = vpop.f32.mrb[0].mxu0
        %v4693 = vadd.f32 0.0, %v4692
        %v4694 = vpop.f32.mrb[0].mxu0
        %v4695 = vpop.f32.mrb[0].mxu0
        %v4696 = vadd.f32 0.0, %v4695
        %v4697 = vpop.f32.mrb[0].mxu0
        %4698 = vmatprep.mubr.bf16.mxu0 0
        %4699 = vmatmul.mubr.bf16.gmra.mrb[0].mxu0 %v4650
        %v4700 = vpop.f32.mrb[0].mxu0
        %v4701 = vadd.f32 0.0, %v4700
        %v4702 = vpop.f32.mrb[0].mxu0
        %v4703 = vpop.f32.mrb[0].mxu0
        %v4704 = vpop.f32.mrb[0].mxu0
        %4705 = vdwg.mxu0
        %v4706 = vsel %vm2922, %v4231, -1e+30
        %v4707 = vsel %vm2922, %v4234, -1e+30
        %v4708 = vsel %vm2922, %v4239, -1e+30
        %v4709 = vsel %vm2922, %v4297, -1e+30
        %v4710 = vsel %vm2922, %v4300, -1e+30
        %v4711 = vsel %vm2922, %v4305, -1e+30
        %v4712 = vsel %vm2922, %v4363, -1e+30
        %v4713 = vsel %vm2922, %v4366, -1e+30
        %v4714 = vsel %vm2922, %v4371, -1e+30
        %v4715 = vsel %vm2922, %v4429, -1e+30
        %v4716 = vsel %vm2922, %v4432, -1e+30
        %v4717 = vsel %vm2922, %v4437, -1e+30
        %v4718 = vsel %vm2922, %v4495, -1e+30
        %v4719 = vsel %vm2922, %v4498, -1e+30
        %v4720 = vsel %vm2922, %v4503, -1e+30
        %v4721 = vsel %vm2922, %v4561, -1e+30
        %v4722 = vsel %vm2922, %v4564, -1e+30
        %v4723 = vsel %vm2922, %v4569, -1e+30
        %v4724 = vsel %vm2922, %v4627, -1e+30
        %v4725 = vsel %vm2922, %v4630, -1e+30
        %v4726 = vsel %vm2922, %v4635, -1e+30
        %v4727 = vsel %vm2922, %v4693, -1e+30
        %v4728 = vsel %vm2922, %v4696, -1e+30
        %v4729 = vsel %vm2922, %v4701, -1e+30
        %v4730 = vsel %vm2947, %v4706, -inf
        %4731 = vmax.xlane.f32.xlu0 %v4730
        %v4732 = vpop.xlane.xlu0 %4731
        %v4733 = vsel %vm2947, %v4707, -inf
        %4734 = vmax.xlane.f32.xlu0 %v4733
        %v4735 = vpop.xlane.xlu0 %4734
        %v4736 = vsel %vm2947, %v4708, -inf
        %4737 = vmax.xlane.f32.xlu0 %v4736
        %v4738 = vpop.xlane.xlu0 %4737
        %v4739 = vsel %vm2947, %v4709, -inf
        %4740 = vmax.xlane.f32.xlu0 %v4739
        %v4741 = vpop.xlane.xlu0 %4740
        %v4742 = vsel %vm2947, %v4710, -inf
        %4743 = vmax.xlane.f32.xlu0 %v4742
        %v4744 = vpop.xlane.xlu0 %4743
        %v4745 = vsel %vm2947, %v4711, -inf
        %4746 = vmax.xlane.f32.xlu0 %v4745
        %v4747 = vpop.xlane.xlu0 %4746
        %v4748 = vsel %vm2947, %v4712, -inf
        %4749 = vmax.xlane.f32.xlu0 %v4748
        %v4750 = vpop.xlane.xlu0 %4749
        %v4751 = vsel %vm2947, %v4713, -inf
        %4752 = vmax.xlane.f32.xlu0 %v4751
        %v4753 = vpop.xlane.xlu0 %4752
        %v4754 = vsel %vm2947, %v4714, -inf
        %4755 = vmax.xlane.f32.xlu0 %v4754
        %v4756 = vpop.xlane.xlu0 %4755
        %v4757 = vsel %vm2947, %v4715, -inf
        %4758 = vmax.xlane.f32.xlu0 %v4757
        %v4759 = vpop.xlane.xlu0 %4758
        %v4760 = vsel %vm2947, %v4716, -inf
        %4761 = vmax.xlane.f32.xlu0 %v4760
        %v4762 = vpop.xlane.xlu0 %4761
        %v4763 = vsel %vm2947, %v4717, -inf
        %4764 = vmax.xlane.f32.xlu0 %v4763
        %v4765 = vpop.xlane.xlu0 %4764
        %v4766 = vsel %vm2947, %v4718, -inf
        %4767 = vmax.xlane.f32.xlu0 %v4766
        %v4768 = vpop.xlane.xlu0 %4767
        %v4769 = vsel %vm2947, %v4719, -inf
        %4770 = vmax.xlane.f32.xlu0 %v4769
        %v4771 = vpop.xlane.xlu0 %4770
        %v4772 = vsel %vm2947, %v4720, -inf
        %4773 = vmax.xlane.f32.xlu0 %v4772
        %v4774 = vpop.xlane.xlu0 %4773
        %v4775 = vsel %vm2947, %v4721, -inf
        %4776 = vmax.xlane.f32.xlu0 %v4775
        %v4777 = vpop.xlane.xlu0 %4776
        %v4778 = vsel %vm2947, %v4722, -inf
        %4779 = vmax.xlane.f32.xlu0 %v4778
        %v4780 = vpop.xlane.xlu0 %4779
        %v4781 = vsel %vm2947, %v4723, -inf
        %4782 = vmax.xlane.f32.xlu0 %v4781
        %v4783 = vpop.xlane.xlu0 %4782
        %v4784 = vsel %vm2947, %v4724, -inf
        %4785 = vmax.xlane.f32.xlu0 %v4784
        %v4786 = vpop.xlane.xlu0 %4785
        %v4787 = vsel %vm2947, %v4725, -inf
        %4788 = vmax.xlane.f32.xlu0 %v4787
        %v4789 = vpop.xlane.xlu0 %4788
        %v4790 = vsel %vm2947, %v4726, -inf
        %4791 = vmax.xlane.f32.xlu0 %v4790
        %v4792 = vpop.xlane.xlu0 %4791
        %v4793 = vsel %vm2947, %v4727, -inf
        %4794 = vmax.xlane.f32.xlu0 %v4793
        %v4795 = vpop.xlane.xlu0 %4794
        %v4796 = vsel %vm2947, %v4728, -inf
        %4797 = vmax.xlane.f32.xlu0 %v4796
        %v4798 = vpop.xlane.xlu0 %4797
        %v4799 = vsel %vm2947, %v4729, -inf
        %4800 = vmax.xlane.f32.xlu0 %v4799
        %v4801 = vpop.xlane.xlu0 %4800
        %v4802 = vsub.f32 %v4706, %v4732
        %v4803 = vsub.f32 %v4707, %v4735
        %v4804 = vsub.f32 %v4708, %v4738
        %v4805 = vsub.f32 %v4709, %v4741
        %v4806 = vsub.f32 %v4710, %v4744
        %v4807 = vsub.f32 %v4711, %v4747
        %v4808 = vsub.f32 %v4712, %v4750
        %v4809 = vsub.f32 %v4713, %v4753
        %v4810 = vsub.f32 %v4714, %v4756
        %v4811 = vsub.f32 %v4715, %v4759
        %v4812 = vsub.f32 %v4716, %v4762
        %v4813 = vsub.f32 %v4717, %v4765
        %v4814 = vsub.f32 %v4718, %v4768
        %v4815 = vsub.f32 %v4719, %v4771
        %v4816 = vsub.f32 %v4720, %v4774
        %v4817 = vsub.f32 %v4721, %v4777
        %v4818 = vsub.f32 %v4722, %v4780
        %v4819 = vsub.f32 %v4723, %v4783
        %v4820 = vsub.f32 %v4724, %v4786
        %v4821 = vsub.f32 %v4725, %v4789
        %v4822 = vsub.f32 %v4726, %v4792
        %v4823 = vsub.f32 %v4727, %v4795
        %v4824 = vsub.f32 %v4728, %v4798
        %v4825 = vsub.f32 %v4729, %v4801
        %v4826 = vmul.f32 %v4802, 1.442695
        %v4827 = vpow.pop %v4826
        %v4828 = vmul.f32 %v4803, 1.442695
        %v4829 = vpow.pop %v4828
        %v4830 = vmul.f32 %v4804, 1.442695
        %v4831 = vpow.pop %v4830
        %v4832 = vmul.f32 %v4805, 1.442695
        %v4833 = vpow.pop %v4832
        %v4834 = vmul.f32 %v4806, 1.442695
        %v4835 = vpow.pop %v4834
        %v4836 = vmul.f32 %v4807, 1.442695
        %v4837 = vpow.pop %v4836
        %v4838 = vmul.f32 %v4808, 1.442695
        %v4839 = vpow.pop %v4838
        %v4840 = vmul.f32 %v4809, 1.442695
        %v4841 = vpow.pop %v4840
        %v4842 = vmul.f32 %v4810, 1.442695
        %v4843 = vpow.pop %v4842
        %v4844 = vmul.f32 %v4811, 1.442695
        %v4845 = vpow.pop %v4844
        %v4846 = vmul.f32 %v4812, 1.442695
        %v4847 = vpow.pop %v4846
        %v4848 = vmul.f32 %v4813, 1.442695
        %v4849 = vpow.pop %v4848
        %v4850 = vmul.f32 %v4814, 1.442695
        %v4851 = vpow.pop %v4850
        %v4852 = vmul.f32 %v4815, 1.442695
        %v4853 = vpow.pop %v4852
        %v4854 = vmul.f32 %v4816, 1.442695
        %v4855 = vpow.pop %v4854
        %v4856 = vmul.f32 %v4817, 1.442695
        %v4857 = vpow.pop %v4856
        %v4858 = vmul.f32 %v4818, 1.442695
        %v4859 = vpow.pop %v4858
        %v4860 = vmul.f32 %v4819, 1.442695
        %v4861 = vpow.pop %v4860
        %v4862 = vmul.f32 %v4820, 1.442695
        %v4863 = vpow.pop %v4862
        %v4864 = vmul.f32 %v4821, 1.442695
        %v4865 = vpow.pop %v4864
        %v4866 = vmul.f32 %v4822, 1.442695
        %v4867 = vpow.pop %v4866
        %v4868 = vmul.f32 %v4823, 1.442695
        %v4869 = vpow.pop %v4868
        %v4870 = vmul.f32 %v4824, 1.442695
        %v4871 = vpow.pop %v4870
        %v4872 = vmul.f32 %v4825, 1.442695
        %v4873 = vpow.pop %v4872
        %v4874 = vsel %vm2947, %v4827, 0.0
        %4875 = vadd.xlane.f32.xlu0 %v4874
        %v4876 = vpop.xlane.xlu0 %4875
        %v4877 = vsel %vm2947, %v4829, 0.0
        %4878 = vadd.xlane.f32.xlu0 %v4877
        %v4879 = vpop.xlane.xlu0 %4878
        %v4880 = vsel %vm2947, %v4831, 0.0
        %4881 = vadd.xlane.f32.xlu0 %v4880
        %v4882 = vpop.xlane.xlu0 %4881
        %v4883 = vsel %vm2947, %v4833, 0.0
        %4884 = vadd.xlane.f32.xlu0 %v4883
        %v4885 = vpop.xlane.xlu0 %4884
        %v4886 = vsel %vm2947, %v4835, 0.0
        %4887 = vadd.xlane.f32.xlu0 %v4886
        %v4888 = vpop.xlane.xlu0 %4887
        %v4889 = vsel %vm2947, %v4837, 0.0
        %4890 = vadd.xlane.f32.xlu0 %v4889
        %v4891 = vpop.xlane.xlu0 %4890
        %v4892 = vsel %vm2947, %v4839, 0.0
        %4893 = vadd.xlane.f32.xlu0 %v4892
        %v4894 = vpop.xlane.xlu0 %4893
        %v4895 = vsel %vm2947, %v4841, 0.0
        %4896 = vadd.xlane.f32.xlu0 %v4895
        %v4897 = vpop.xlane.xlu0 %4896
        %v4898 = vsel %vm2947, %v4843, 0.0
        %4899 = vadd.xlane.f32.xlu0 %v4898
        %v4900 = vpop.xlane.xlu0 %4899
        %v4901 = vsel %vm2947, %v4845, 0.0
        %4902 = vadd.xlane.f32.xlu0 %v4901
        %v4903 = vpop.xlane.xlu0 %4902
        %v4904 = vsel %vm2947, %v4847, 0.0
        %4905 = vadd.xlane.f32.xlu0 %v4904
        %v4906 = vpop.xlane.xlu0 %4905
        %v4907 = vsel %vm2947, %v4849, 0.0
        %4908 = vadd.xlane.f32.xlu0 %v4907
        %v4909 = vpop.xlane.xlu0 %4908
        %v4910 = vsel %vm2947, %v4851, 0.0
        %4911 = vadd.xlane.f32.xlu0 %v4910
        %v4912 = vpop.xlane.xlu0 %4911
        %v4913 = vsel %vm2947, %v4853, 0.0
        %4914 = vadd.xlane.f32.xlu0 %v4913
        %v4915 = vpop.xlane.xlu0 %4914
        %v4916 = vsel %vm2947, %v4855, 0.0
        %4917 = vadd.xlane.f32.xlu0 %v4916
        %v4918 = vpop.xlane.xlu0 %4917
        %v4919 = vsel %vm2947, %v4857, 0.0
        %4920 = vadd.xlane.f32.xlu0 %v4919
        %v4921 = vpop.xlane.xlu0 %4920
        %v4922 = vsel %vm2947, %v4859, 0.0
        %4923 = vadd.xlane.f32.xlu0 %v4922
        %v4924 = vpop.xlane.xlu0 %4923
        %v4925 = vsel %vm2947, %v4861, 0.0
        %4926 = vadd.xlane.f32.xlu0 %v4925
        %v4927 = vpop.xlane.xlu0 %4926
        %v4928 = vsel %vm2947, %v4863, 0.0
        %4929 = vadd.xlane.f32.xlu0 %v4928
        %v4930 = vpop.xlane.xlu0 %4929
        %v4931 = vsel %vm2947, %v4865, 0.0
        %4932 = vadd.xlane.f32.xlu0 %v4931
        %v4933 = vpop.xlane.xlu0 %4932
        %v4934 = vsel %vm2947, %v4867, 0.0
        %4935 = vadd.xlane.f32.xlu0 %v4934
        %v4936 = vpop.xlane.xlu0 %4935
        %v4937 = vsel %vm2947, %v4869, 0.0
        %4938 = vadd.xlane.f32.xlu0 %v4937
        %v4939 = vpop.xlane.xlu0 %4938
        %v4940 = vsel %vm2947, %v4871, 0.0
        %4941 = vadd.xlane.f32.xlu0 %v4940
        %v4942 = vpop.xlane.xlu0 %4941
        %v4943 = vsel %vm2947, %v4873, 0.0
        %4944 = vadd.xlane.f32.xlu0 %v4943
        %v4945 = vpop.xlane.xlu0 %4944
        %v4946 = vrcp.pop %v4876
        %v4947 = vrcp.pop %v4879
        %v4948 = vrcp.pop %v4882
        %v4949 = vrcp.pop %v4885
        %v4950 = vrcp.pop %v4888
        %v4951 = vrcp.pop %v4891
        %v4952 = vrcp.pop %v4894
        %v4953 = vrcp.pop %v4897
        %v4954 = vrcp.pop %v4900
        %v4955 = vrcp.pop %v4903
        %v4956 = vrcp.pop %v4906
        %v4957 = vrcp.pop %v4909
        %v4958 = vrcp.pop %v4912
        %v4959 = vrcp.pop %v4915
        %v4960 = vrcp.pop %v4918
        %v4961 = vrcp.pop %v4921
        %v4962 = vrcp.pop %v4924
        %v4963 = vrcp.pop %v4927
        %v4964 = vrcp.pop %v4930
        %v4965 = vrcp.pop %v4933
        %v4966 = vrcp.pop %v4936
        %v4967 = vrcp.pop %v4939
        %v4968 = vrcp.pop %v4942
        %v4969 = vrcp.pop %v4945
        %v4970 = vmul.f32 %v4827, %v4946
        %v4971 = vmul.f32 %v4829, %v4947
        %v4972 = vmul.f32 %v4831, %v4948
        %v4973 = vmul.f32 %v4833, %v4949
        %v4974 = vmul.f32 %v4835, %v4950
        %v4975 = vmul.f32 %v4837, %v4951
        %v4976 = vmul.f32 %v4839, %v4952
        %v4977 = vmul.f32 %v4841, %v4953
        %v4978 = vmul.f32 %v4843, %v4954
        %v4979 = vmul.f32 %v4845, %v4955
        %v4980 = vmul.f32 %v4847, %v4956
        %v4981 = vmul.f32 %v4849, %v4957
        %v4982 = vmul.f32 %v4851, %v4958
        %v4983 = vmul.f32 %v4853, %v4959
        %v4984 = vmul.f32 %v4855, %v4960
        %v4985 = vmul.f32 %v4857, %v4961
        %v4986 = vmul.f32 %v4859, %v4962
        %v4987 = vmul.f32 %v4861, %v4963
        %v4988 = vmul.f32 %v4863, %v4964
        %v4989 = vmul.f32 %v4865, %v4965
        %v4990 = vmul.f32 %v4867, %v4966
        %v4991 = vmul.f32 %v4869, %v4967
        %v4992 = vmul.f32 %v4871, %v4968
        %v4993 = vmul.f32 %v4873, %v4969
        %v4994 = vpack.c.bf16 %v4971, %v4970
        %v4995 = vpack.c.bf16 %v4972, %v4972
        %v4996 = vpack.c.bf16 %v4974, %v4973
        %v4997 = vpack.c.bf16 %v4975, %v4975
        %v4998 = vpack.c.bf16 %v4977, %v4976
        %v4999 = vpack.c.bf16 %v4978, %v4978
        %v5000 = vpack.c.bf16 %v4980, %v4979
        %v5001 = vpack.c.bf16 %v4981, %v4981
        %v5002 = vpack.c.bf16 %v4983, %v4982
        %v5003 = vpack.c.bf16 %v4984, %v4984
        %v5004 = vpack.c.bf16 %v4986, %v4985
        %v5005 = vpack.c.bf16 %v4987, %v4987
        %v5006 = vpack.c.bf16 %v4989, %v4988
        %v5007 = vpack.c.bf16 %v4990, %v4990
        %v5008 = vpack.c.bf16 %v4992, %v4991
        %v5009 = vpack.c.bf16 %v4993, %v4993
        %v5011 = vsel %vm2947, %v4994, 0
        %v5014 = vsel %vm2947, %v4995, 0
        %v5017 = vsel %vm3234, %v3908, 0
        %5019 = vmatprep.subr.bf16.mxu0 0
        %5020 = vmatpush1.bf16.msra.mxu0 %v3907
        %5021 = vmatprep.subr.bf16.mxu0 0
        %5022 = vmatpush1.bf16.msra.mxu0 %v5017
        %5023 = vmatprep.subr.bf16.mxu0 0
        %5024 = vmatpush1.bf16.msra.mxu0 0
        %5025 = vmatprep.subr.bf16.mxu0 0
        %5026 = vmatpush1.bf16.msra.mxu0 0
        %5027 = vmatprep.subr.bf16.mxu0 0
        %5028 = vmatpush1.bf16.msra.mxu0 0
        %5029 = vmatprep.subr.bf16.mxu0 0
        %5030 = vmatpush1.bf16.msra.mxu0 0
        %5031 = vmatprep.subr.bf16.mxu0 0
        %5032 = vmatpush1.bf16.msra.mxu0 0
        %5033 = vmatprep.subr.bf16.mxu0 0
        %5034 = vmatpush1.bf16.msra.mxu0 0
        %5035 = vmatprep.subr.bf16.mxu0 0
        %5036 = vmatpush1.bf16.msra.mxu0 0
        %5037 = vmatprep.subr.bf16.mxu0 0
        %5038 = vmatpush1.bf16.msra.mxu0 0
        %5039 = vmatprep.subr.bf16.mxu0 0
        %5040 = vmatpush1.bf16.msra.mxu0 0
        %5041 = vmatprep.subr.bf16.mxu0 0
        %5042 = vmatpush1.bf16.msra.mxu0 0
        %5043 = vmatprep.subr.bf16.mxu0 0
        %5044 = vmatpush1.bf16.msra.mxu0 0
        %5045 = vmatprep.subr.bf16.mxu0 0
        %5046 = vmatpush1.bf16.msra.mxu0 0
        %5047 = vmatprep.subr.bf16.mxu0 0
        %5048 = vmatpush1.bf16.msra.mxu0 0
        %5049 = vmatprep.subr.bf16.mxu0 0
        %5050 = vmatpush1.bf16.msra.mxu0 0
        %5051 = vmatprep.mubr.bf16.mxu0 0
        %5052 = vmatmul.mubr.bf16.gmra.mrb[0].mxu0 %v5011
        %v5053 = vpop.f32.mrb[0].mxu0
        %v5054 = vadd.f32 0.0, %v5053
        %v5055 = vpop.f32.mrb[0].mxu0
        %v5056 = vpop.f32.mrb[0].mxu0
        %v5057 = vadd.f32 0.0, %v5056
        %v5058 = vpop.f32.mrb[0].mxu0
        %5059 = vmatprep.mubr.bf16.mxu0 0
        %5060 = vmatmul.mubr.bf16.gmra.mrb[0].mxu0 %v5014
        %v5061 = vpop.f32.mrb[0].mxu0
        %v5062 = vadd.f32 0.0, %v5061
        %v5063 = vpop.f32.mrb[0].mxu0
        %v5064 = vpop.f32.mrb[0].mxu0
        %v5065 = vpop.f32.mrb[0].mxu0
        %5066 = vdwg.mxu0
        %v5068 = vsel %vm2947, %v4996, 0
        %v5071 = vsel %vm2947, %v4997, 0
        %v5074 = vsel %vm3234, %v3910, 0
        %5076 = vmatprep.subr.bf16.mxu0 0
        %5077 = vmatpush1.bf16.msra.mxu0 %v3909
        %5078 = vmatprep.subr.bf16.mxu0 0
        %5079 = vmatpush1.bf16.msra.mxu0 %v5074
        %5080 = vmatprep.subr.bf16.mxu0 0
        %5081 = vmatpush1.bf16.msra.mxu0 0
        %5082 = vmatprep.subr.bf16.mxu0 0
        %5083 = vmatpush1.bf16.msra.mxu0 0
        %5084 = vmatprep.subr.bf16.mxu0 0
        %5085 = vmatpush1.bf16.msra.mxu0 0
        %5086 = vmatprep.subr.bf16.mxu0 0
        %5087 = vmatpush1.bf16.msra.mxu0 0
        %5088 = vmatprep.subr.bf16.mxu0 0
        %5089 = vmatpush1.bf16.msra.mxu0 0
        %5090 = vmatprep.subr.bf16.mxu0 0
        %5091 = vmatpush1.bf16.msra.mxu0 0
        %5092 = vmatprep.subr.bf16.mxu0 0
        %5093 = vmatpush1.bf16.msra.mxu0 0
        %5094 = vmatprep.subr.bf16.mxu0 0
        %5095 = vmatpush1.bf16.msra.mxu0 0
        %5096 = vmatprep.subr.bf16.mxu0 0
        %5097 = vmatpush1.bf16.msra.mxu0 0
        %5098 = vmatprep.subr.bf16.mxu0 0
        %5099 = vmatpush1.bf16.msra.mxu0 0
        %5100 = vmatprep.subr.bf16.mxu0 0
        %5101 = vmatpush1.bf16.msra.mxu0 0
        %5102 = vmatprep.subr.bf16.mxu0 0
        %5103 = vmatpush1.bf16.msra.mxu0 0
        %5104 = vmatprep.subr.bf16.mxu0 0
        %5105 = vmatpush1.bf16.msra.mxu0 0
        %5106 = vmatprep.subr.bf16.mxu0 0
        %5107 = vmatpush1.bf16.msra.mxu0 0
        %5108 = vmatprep.mubr.bf16.mxu0 0
        %5109 = vmatmul.mubr.bf16.gmra.mrb[0].mxu0 %v5068
        %v5110 = vpop.f32.mrb[0].mxu0
        %v5111 = vadd.f32 0.0, %v5110
        %v5112 = vpop.f32.mrb[0].mxu0
        %v5113 = vpop.f32.mrb[0].mxu0
        %v5114 = vadd.f32 0.0, %v5113
        %v5115 = vpop.f32.mrb[0].mxu0
        %5116 = vmatprep.mubr.bf16.mxu0 0
        %5117 = vmatmul.mubr.bf16.gmra.mrb[0].mxu0 %v5071
        %v5118 = vpop.f32.mrb[0].mxu0
        %v5119 = vadd.f32 0.0, %v5118
        %v5120 = vpop.f32.mrb[0].mxu0
        %v5121 = vpop.f32.mrb[0].mxu0
        %v5122 = vpop.f32.mrb[0].mxu0
        %5123 = vdwg.mxu0
        %v5125 = vsel %vm2947, %v4998, 0
        %v5128 = vsel %vm2947, %v4999, 0
        %v5131 = vsel %vm3234, %v3912, 0
        %5133 = vmatprep.subr.bf16.mxu0 0
        %5134 = vmatpush1.bf16.msra.mxu0 %v3911
        %5135 = vmatprep.subr.bf16.mxu0 0
        %5136 = vmatpush1.bf16.msra.mxu0 %v5131
        %5137 = vmatprep.subr.bf16.mxu0 0
        %5138 = vmatpush1.bf16.msra.mxu0 0
        %5139 = vmatprep.subr.bf16.mxu0 0
        %5140 = vmatpush1.bf16.msra.mxu0 0
        %5141 = vmatprep.subr.bf16.mxu0 0
        %5142 = vmatpush1.bf16.msra.mxu0 0
        %5143 = vmatprep.subr.bf16.mxu0 0
        %5144 = vmatpush1.bf16.msra.mxu0 0
        %5145 = vmatprep.subr.bf16.mxu0 0
        %5146 = vmatpush1.bf16.msra.mxu0 0
        %5147 = vmatprep.subr.bf16.mxu0 0
        %5148 = vmatpush1.bf16.msra.mxu0 0
        %5149 = vmatprep.subr.bf16.mxu0 0
        %5150 = vmatpush1.bf16.msra.mxu0 0
        %5151 = vmatprep.subr.bf16.mxu0 0
        %5152 = vmatpush1.bf16.msra.mxu0 0
        %5153 = vmatprep.subr.bf16.mxu0 0
        %5154 = vmatpush1.bf16.msra.mxu0 0
        %5155 = vmatprep.subr.bf16.mxu0 0
        %5156 = vmatpush1.bf16.msra.mxu0 0
        %5157 = vmatprep.subr.bf16.mxu0 0
        %5158 = vmatpush1.bf16.msra.mxu0 0
        %5159 = vmatprep.subr.bf16.mxu0 0
        %5160 = vmatpush1.bf16.msra.mxu0 0
        %5161 = vmatprep.subr.bf16.mxu0 0
        %5162 = vmatpush1.bf16.msra.mxu0 0
        %5163 = vmatprep.subr.bf16.mxu0 0
        %5164 = vmatpush1.bf16.msra.mxu0 0
        %5165 = vmatprep.mubr.bf16.mxu0 0
        %5166 = vmatmul.mubr.bf16.gmra.mrb[0].mxu0 %v5125
        %v5167 = vpop.f32.mrb[0].mxu0
        %v5168 = vadd.f32 0.0, %v5167
        %v5169 = vpop.f32.mrb[0].mxu0
        %v5170 = vpop.f32.mrb[0].mxu0
        %v5171 = vadd.f32 0.0, %v5170
        %v5172 = vpop.f32.mrb[0].mxu0
        %5173 = vmatprep.mubr.bf16.mxu0 0
        %5174 = vmatmul.mubr.bf16.gmra.mrb[0].mxu0 %v5128
        %v5175 = vpop.f32.mrb[0].mxu0
        %v5176 = vadd.f32 0.0, %v5175
        %v5177 = vpop.f32.mrb[0].mxu0
        %v5178 = vpop.f32.mrb[0].mxu0
        %v5179 = vpop.f32.mrb[0].mxu0
        %5180 = vdwg.mxu0
        %v5182 = vsel %vm2947, %v5000, 0
        %v5185 = vsel %vm2947, %v5001, 0
        %v5188 = vsel %vm3234, %v3914, 0
        %5190 = vmatprep.subr.bf16.mxu0 0
        %5191 = vmatpush1.bf16.msra.mxu0 %v3913
        %5192 = vmatprep.subr.bf16.mxu0 0
        %5193 = vmatpush1.bf16.msra.mxu0 %v5188
        %5194 = vmatprep.subr.bf16.mxu0 0
        %5195 = vmatpush1.bf16.msra.mxu0 0
        %5196 = vmatprep.subr.bf16.mxu0 0
        %5197 = vmatpush1.bf16.msra.mxu0 0
        %5198 = vmatprep.subr.bf16.mxu0 0
        %5199 = vmatpush1.bf16.msra.mxu0 0
        %5200 = vmatprep.subr.bf16.mxu0 0
        %5201 = vmatpush1.bf16.msra.mxu0 0
        %5202 = vmatprep.subr.bf16.mxu0 0
        %5203 = vmatpush1.bf16.msra.mxu0 0
        %5204 = vmatprep.subr.bf16.mxu0 0
        %5205 = vmatpush1.bf16.msra.mxu0 0
        %5206 = vmatprep.subr.bf16.mxu0 0
        %5207 = vmatpush1.bf16.msra.mxu0 0
        %5208 = vmatprep.subr.bf16.mxu0 0
        %5209 = vmatpush1.bf16.msra.mxu0 0
        %5210 = vmatprep.subr.bf16.mxu0 0
        %5211 = vmatpush1.bf16.msra.mxu0 0
        %5212 = vmatprep.subr.bf16.mxu0 0
        %5213 = vmatpush1.bf16.msra.mxu0 0
        %5214 = vmatprep.subr.bf16.mxu0 0
        %5215 = vmatpush1.bf16.msra.mxu0 0
        %5216 = vmatprep.subr.bf16.mxu0 0
        %5217 = vmatpush1.bf16.msra.mxu0 0
        %5218 = vmatprep.subr.bf16.mxu0 0
        %5219 = vmatpush1.bf16.msra.mxu0 0
        %5220 = vmatprep.subr.bf16.mxu0 0
        %5221 = vmatpush1.bf16.msra.mxu0 0
        %5222 = vmatprep.mubr.bf16.mxu0 0
        %5223 = vmatmul.mubr.bf16.gmra.mrb[0].mxu0 %v5182
        %v5224 = vpop.f32.mrb[0].mxu0
        %v5225 = vadd.f32 0.0, %v5224
        %v5226 = vpop.f32.mrb[0].mxu0
        %v5227 = vpop.f32.mrb[0].mxu0
        %v5228 = vadd.f32 0.0, %v5227
        %v5229 = vpop.f32.mrb[0].mxu0
        %5230 = vmatprep.mubr.bf16.mxu0 0
        %5231 = vmatmul.mubr.bf16.gmra.mrb[0].mxu0 %v5185
        %v5232 = vpop.f32.mrb[0].mxu0
        %v5233 = vadd.f32 0.0, %v5232
        %v5234 = vpop.f32.mrb[0].mxu0
        %v5235 = vpop.f32.mrb[0].mxu0
        %v5236 = vpop.f32.mrb[0].mxu0
        %5237 = vdwg.mxu0
        %v5239 = vsel %vm2947, %v5002, 0
        %v5242 = vsel %vm2947, %v5003, 0
        %v5245 = vsel %vm3234, %v3916, 0
        %5247 = vmatprep.subr.bf16.mxu0 0
        %5248 = vmatpush1.bf16.msra.mxu0 %v3915
        %5249 = vmatprep.subr.bf16.mxu0 0
        %5250 = vmatpush1.bf16.msra.mxu0 %v5245
        %5251 = vmatprep.subr.bf16.mxu0 0
        %5252 = vmatpush1.bf16.msra.mxu0 0
        %5253 = vmatprep.subr.bf16.mxu0 0
        %5254 = vmatpush1.bf16.msra.mxu0 0
        %5255 = vmatprep.subr.bf16.mxu0 0
        %5256 = vmatpush1.bf16.msra.mxu0 0
        %5257 = vmatprep.subr.bf16.mxu0 0
        %5258 = vmatpush1.bf16.msra.mxu0 0
        %5259 = vmatprep.subr.bf16.mxu0 0
        %5260 = vmatpush1.bf16.msra.mxu0 0
        %5261 = vmatprep.subr.bf16.mxu0 0
        %5262 = vmatpush1.bf16.msra.mxu0 0
        %5263 = vmatprep.subr.bf16.mxu0 0
        %5264 = vmatpush1.bf16.msra.mxu0 0
        %5265 = vmatprep.subr.bf16.mxu0 0
        %5266 = vmatpush1.bf16.msra.mxu0 0
        %5267 = vmatprep.subr.bf16.mxu0 0
        %5268 = vmatpush1.bf16.msra.mxu0 0
        %5269 = vmatprep.subr.bf16.mxu0 0
        %5270 = vmatpush1.bf16.msra.mxu0 0
        %5271 = vmatprep.subr.bf16.mxu0 0
        %5272 = vmatpush1.bf16.msra.mxu0 0
        %5273 = vmatprep.subr.bf16.mxu0 0
        %5274 = vmatpush1.bf16.msra.mxu0 0
        %5275 = vmatprep.subr.bf16.mxu0 0
        %5276 = vmatpush1.bf16.msra.mxu0 0
        %5277 = vmatprep.subr.bf16.mxu0 0
        %5278 = vmatpush1.bf16.msra.mxu0 0
        %5279 = vmatprep.mubr.bf16.mxu0 0
        %5280 = vmatmul.mubr.bf16.gmra.mrb[0].mxu0 %v5239
        %v5281 = vpop.f32.mrb[0].mxu0
        %v5282 = vadd.f32 0.0, %v5281
        %v5283 = vpop.f32.mrb[0].mxu0
        %v5284 = vpop.f32.mrb[0].mxu0
        %v5285 = vadd.f32 0.0, %v5284
        %v5286 = vpop.f32.mrb[0].mxu0
        %5287 = vmatprep.mubr.bf16.mxu0 0
        %5288 = vmatmul.mubr.bf16.gmra.mrb[0].mxu0 %v5242
        %v5289 = vpop.f32.mrb[0].mxu0
        %v5290 = vadd.f32 0.0, %v5289
        %v5291 = vpop.f32.mrb[0].mxu0
        %v5292 = vpop.f32.mrb[0].mxu0
        %v5293 = vpop.f32.mrb[0].mxu0
        %5294 = vdwg.mxu0
        %v5296 = vsel %vm2947, %v5004, 0
        %v5299 = vsel %vm2947, %v5005, 0
        %v5302 = vsel %vm3234, %v3918, 0
        %5304 = vmatprep.subr.bf16.mxu0 0
        %5305 = vmatpush1.bf16.msra.mxu0 %v3917
        %5306 = vmatprep.subr.bf16.mxu0 0
        %5307 = vmatpush1.bf16.msra.mxu0 %v5302
        %5308 = vmatprep.subr.bf16.mxu0 0
        %5309 = vmatpush1.bf16.msra.mxu0 0
        %5310 = vmatprep.subr.bf16.mxu0 0
        %5311 = vmatpush1.bf16.msra.mxu0 0
        %5312 = vmatprep.subr.bf16.mxu0 0
        %5313 = vmatpush1.bf16.msra.mxu0 0
        %5314 = vmatprep.subr.bf16.mxu0 0
        %5315 = vmatpush1.bf16.msra.mxu0 0
        %5316 = vmatprep.subr.bf16.mxu0 0
        %5317 = vmatpush1.bf16.msra.mxu0 0
        %5318 = vmatprep.subr.bf16.mxu0 0
        %5319 = vmatpush1.bf16.msra.mxu0 0
        %5320 = vmatprep.subr.bf16.mxu0 0
        %5321 = vmatpush1.bf16.msra.mxu0 0
        %5322 = vmatprep.subr.bf16.mxu0 0
        %5323 = vmatpush1.bf16.msra.mxu0 0
        %5324 = vmatprep.subr.bf16.mxu0 0
        %5325 = vmatpush1.bf16.msra.mxu0 0
        %5326 = vmatprep.subr.bf16.mxu0 0
        %5327 = vmatpush1.bf16.msra.mxu0 0
        %5328 = vmatprep.subr.bf16.mxu0 0
        %5329 = vmatpush1.bf16.msra.mxu0 0
        %5330 = vmatprep.subr.bf16.mxu0 0
        %5331 = vmatpush1.bf16.msra.mxu0 0
        %5332 = vmatprep.subr.bf16.mxu0 0
        %5333 = vmatpush1.bf16.msra.mxu0 0
        %5334 = vmatprep.subr.bf16.mxu0 0
        %5335 = vmatpush1.bf16.msra.mxu0 0
        %5336 = vmatprep.mubr.bf16.mxu0 0
        %5337 = vmatmul.mubr.bf16.gmra.mrb[0].mxu0 %v5296
        %v5338 = vpop.f32.mrb[0].mxu0
        %v5339 = vadd.f32 0.0, %v5338
        %v5340 = vpop.f32.mrb[0].mxu0
        %v5341 = vpop.f32.mrb[0].mxu0
        %v5342 = vadd.f32 0.0, %v5341
        %v5343 = vpop.f32.mrb[0].mxu0
        %5344 = vmatprep.mubr.bf16.mxu0 0
        %5345 = vmatmul.mubr.bf16.gmra.mrb[0].mxu0 %v5299
        %v5346 = vpop.f32.mrb[0].mxu0
        %v5347 = vadd.f32 0.0, %v5346
        %v5348 = vpop.f32.mrb[0].mxu0
        %v5349 = vpop.f32.mrb[0].mxu0
        %v5350 = vpop.f32.mrb[0].mxu0
        %5351 = vdwg.mxu0
        %v5353 = vsel %vm2947, %v5006, 0
        %v5356 = vsel %vm2947, %v5007, 0
        %v5359 = vsel %vm3234, %v3920, 0
        %5361 = vmatprep.subr.bf16.mxu0 0
        %5362 = vmatpush1.bf16.msra.mxu0 %v3919
        %5363 = vmatprep.subr.bf16.mxu0 0
        %5364 = vmatpush1.bf16.msra.mxu0 %v5359
        %5365 = vmatprep.subr.bf16.mxu0 0
        %5366 = vmatpush1.bf16.msra.mxu0 0
        %5367 = vmatprep.subr.bf16.mxu0 0
        %5368 = vmatpush1.bf16.msra.mxu0 0
        %5369 = vmatprep.subr.bf16.mxu0 0
        %5370 = vmatpush1.bf16.msra.mxu0 0
        %5371 = vmatprep.subr.bf16.mxu0 0
        %5372 = vmatpush1.bf16.msra.mxu0 0
        %5373 = vmatprep.subr.bf16.mxu0 0
        %5374 = vmatpush1.bf16.msra.mxu0 0
        %5375 = vmatprep.subr.bf16.mxu0 0
        %5376 = vmatpush1.bf16.msra.mxu0 0
        %5377 = vmatprep.subr.bf16.mxu0 0
        %5378 = vmatpush1.bf16.msra.mxu0 0
        %5379 = vmatprep.subr.bf16.mxu0 0
        %5380 = vmatpush1.bf16.msra.mxu0 0
        %5381 = vmatprep.subr.bf16.mxu0 0
        %5382 = vmatpush1.bf16.msra.mxu0 0
        %5383 = vmatprep.subr.bf16.mxu0 0
        %5384 = vmatpush1.bf16.msra.mxu0 0
        %5385 = vmatprep.subr.bf16.mxu0 0
        %5386 = vmatpush1.bf16.msra.mxu0 0
        %5387 = vmatprep.subr.bf16.mxu0 0
        %5388 = vmatpush1.bf16.msra.mxu0 0
        %5389 = vmatprep.subr.bf16.mxu0 0
        %5390 = vmatpush1.bf16.msra.mxu0 0
        %5391 = vmatprep.subr.bf16.mxu0 0
        %5392 = vmatpush1.bf16.msra.mxu0 0
        %5393 = vmatprep.mubr.bf16.mxu0 0
        %5394 = vmatmul.mubr.bf16.gmra.mrb[0].mxu0 %v5353
        %v5395 = vpop.f32.mrb[0].mxu0
        %v5396 = vadd.f32 0.0, %v5395
        %v5397 = vpop.f32.mrb[0].mxu0
        %v5398 = vpop.f32.mrb[0].mxu0
        %v5399 = vadd.f32 0.0, %v5398
        %v5400 = vpop.f32.mrb[0].mxu0
        %5401 = vmatprep.mubr.bf16.mxu0 0
        %5402 = vmatmul.mubr.bf16.gmra.mrb[0].mxu0 %v5356
        %v5403 = vpop.f32.mrb[0].mxu0
        %v5404 = vadd.f32 0.0, %v5403
        %v5405 = vpop.f32.mrb[0].mxu0
        %v5406 = vpop.f32.mrb[0].mxu0
        %v5407 = vpop.f32.mrb[0].mxu0
        %5408 = vdwg.mxu0
        %v5410 = vsel %vm2947, %v5008, 0
        %v5413 = vsel %vm2947, %v5009, 0
        %v5416 = vsel %vm3234, %v3922, 0
        %5418 = vmatprep.subr.bf16.mxu0 0
        %5419 = vmatpush1.bf16.msra.mxu0 %v3921
        %5420 = vmatprep.subr.bf16.mxu0 0
        %5421 = vmatpush1.bf16.msra.mxu0 %v5416
        %5422 = vmatprep.subr.bf16.mxu0 0
        %5423 = vmatpush1.bf16.msra.mxu0 0
        %5424 = vmatprep.subr.bf16.mxu0 0
        %5425 = vmatpush1.bf16.msra.mxu0 0
        %5426 = vmatprep.subr.bf16.mxu0 0
        %5427 = vmatpush1.bf16.msra.mxu0 0
        %5428 = vmatprep.subr.bf16.mxu0 0
        %5429 = vmatpush1.bf16.msra.mxu0 0
        %5430 = vmatprep.subr.bf16.mxu0 0
        %5431 = vmatpush1.bf16.msra.mxu0 0
        %5432 = vmatprep.subr.bf16.mxu0 0
        %5433 = vmatpush1.bf16.msra.mxu0 0
        %5434 = vmatprep.subr.bf16.mxu0 0
        %5435 = vmatpush1.bf16.msra.mxu0 0
        %5436 = vmatprep.subr.bf16.mxu0 0
        %5437 = vmatpush1.bf16.msra.mxu0 0
        %5438 = vmatprep.subr.bf16.mxu0 0
        %5439 = vmatpush1.bf16.msra.mxu0 0
        %5440 = vmatprep.subr.bf16.mxu0 0
        %5441 = vmatpush1.bf16.msra.mxu0 0
        %5442 = vmatprep.subr.bf16.mxu0 0
        %5443 = vmatpush1.bf16.msra.mxu0 0
        %5444 = vmatprep.subr.bf16.mxu0 0
        %5445 = vmatpush1.bf16.msra.mxu0 0
        %5446 = vmatprep.subr.bf16.mxu0 0
        %5447 = vmatpush1.bf16.msra.mxu0 0
        %5448 = vmatprep.subr.bf16.mxu0 0
        %5449 = vmatpush1.bf16.msra.mxu0 0
        %5450 = vmatprep.mubr.bf16.mxu0 0
        %5451 = vmatmul.mubr.bf16.gmra.mrb[0].mxu0 %v5410
        %v5452 = vpop.f32.mrb[0].mxu0
        %v5453 = vadd.f32 0.0, %v5452
        %v5454 = vpop.f32.mrb[0].mxu0
        %v5455 = vpop.f32.mrb[0].mxu0
        %v5456 = vadd.f32 0.0, %v5455
        %v5457 = vpop.f32.mrb[0].mxu0
        %5458 = vmatprep.mubr.bf16.mxu0 0
        %5459 = vmatmul.mubr.bf16.gmra.mrb[0].mxu0 %v5413
        %v5460 = vpop.f32.mrb[0].mxu0
        %v5461 = vadd.f32 0.0, %v5460
        %v5462 = vpop.f32.mrb[0].mxu0
        %v5463 = vpop.f32.mrb[0].mxu0
        %v5464 = vpop.f32.mrb[0].mxu0
        %5465 = vdwg.mxu0
        %v5466 = vpack.c.bf16 %v5057, %v5054
        %v5467 = vpack.c.bf16 %v5111, %v5062
        %v5468 = vpack.c.bf16 %v5119, %v5114
        %v5469 = vpack.c.bf16 %v5171, %v5168
        %v5470 = vpack.c.bf16 %v5225, %v5176
        %v5471 = vpack.c.bf16 %v5233, %v5228
        %v5472 = vpack.c.bf16 %v5285, %v5282
        %v5473 = vpack.c.bf16 %v5339, %v5290
        %v5474 = vpack.c.bf16 %v5347, %v5342
        %v5475 = vpack.c.bf16 %v5399, %v5396
        %v5476 = vpack.c.bf16 %v5453, %v5404
        %v5477 = vpack.c.bf16 %v5461, %v5456
        %s5478 = scalar_lea.vmem %s11, 16
        %v5479 = vld [vmem:[%s5478] sm:$0xf]
        %v5480 = vld [vmem:[%s5478 + $0x4] sm:$0xf]
        %v5481 = vld [vmem:[%s5478 + $0x8] sm:$0xf]
        %v5482 = vld [vmem:[%s5478 + $0xc] sm:$0xf]
        %v5483 = vld [vmem:[%s12 + $0x1] sm:$0x1]
        %v5484 = vlaneseq
        %v5485 = vshrl.u32 %v5484, 7
        %v5486 = vsub.s32 0, %v5485
        %v5487 = vrot.slane %v5483, %v5486
        %v5492 = vunpack.c.l.b16 %v5479
        %v5493 = vunpack.c.l.b16 %v5480
        %v5494 = vunpack.c.l.b16 %v5481
        %v5495 = vunpack.c.l.b16 %v5482
        %v5496 = vpack.c.b16 %v5493, %v5492
        %v5497 = vpack.c.b16 %v5495, %v5494
        %v5501 = vsel %vm2211, %v5466, 0
        %v5504 = vsel %vm2211, %v5467, 0
        %v5507 = vsel %vm2211, %v5468, 0
        %v5510 = vsel %vm2211, %v5469, 0
        %v5513 = vsel %vm2211, %v5470, 0
        %v5516 = vsel %vm2211, %v5471, 0
        %v5519 = vsel %vm2211, %v5472, 0
        %v5522 = vsel %vm2211, %v5473, 0
        %v5525 = vsel %vm2211, %v5474, 0
        %v5528 = vsel %vm2211, %v5475, 0
        %v5531 = vsel %vm2211, %v5476, 0
        %v5534 = vsel %vm2211, %v5477, 0
        %5536 = vmatprep.subr.bf16.mxu0 0
        %5537 = vmatpush1.bf16.msra.mxu0 %v5496
        %5538 = vmatprep.subr.bf16.mxu0 0
        %5539 = vmatpush1.bf16.msra.mxu0 %v5497
        %5540 = vmatprep.subr.bf16.mxu0 0
        %5541 = vmatpush1.bf16.msra.mxu0 0
        %5542 = vmatprep.subr.bf16.mxu0 0
        %5543 = vmatpush1.bf16.msra.mxu0 0
        %5544 = vmatprep.subr.bf16.mxu0 0
        %5545 = vmatpush1.bf16.msra.mxu0 0
        %5546 = vmatprep.subr.bf16.mxu0 0
        %5547 = vmatpush1.bf16.msra.mxu0 0
        %5548 = vmatprep.subr.bf16.mxu0 0
        %5549 = vmatpush1.bf16.msra.mxu0 0
        %5550 = vmatprep.subr.bf16.mxu0 0
        %5551 = vmatpush1.bf16.msra.mxu0 0
        %5552 = vmatprep.subr.bf16.mxu0 0
        %5553 = vmatpush1.bf16.msra.mxu0 0
        %5554 = vmatprep.subr.bf16.mxu0 0
        %5555 = vmatpush1.bf16.msra.mxu0 0
        %5556 = vmatprep.subr.bf16.mxu0 0
        %5557 = vmatpush1.bf16.msra.mxu0 0
        %5558 = vmatprep.subr.bf16.mxu0 0
        %5559 = vmatpush1.bf16.msra.mxu0 0
        %5560 = vmatprep.subr.bf16.mxu0 0
        %5561 = vmatpush1.bf16.msra.mxu0 0
        %5562 = vmatprep.subr.bf16.mxu0 0
        %5563 = vmatpush1.bf16.msra.mxu0 0
        %5564 = vmatprep.subr.bf16.mxu0 0
        %5565 = vmatpush1.bf16.msra.mxu0 0
        %5566 = vmatprep.subr.bf16.mxu0 0
        %5567 = vmatpush1.bf16.msra.mxu0 0
        %5568 = vmatprep.mubr.bf16.mxu0 0
        %5569 = vmatmul.mubr.bf16.gmra.mrb[0].mxu0 %v5501
        %v5570 = vpop.f32.mrb[0].mxu0
        %v5571 = vadd.f32 %v5487, %v5570
        %v5572 = vpop.f32.mrb[0].mxu0
        %v5573 = vpop.f32.mrb[0].mxu0
        %v5574 = vpop.f32.mrb[0].mxu0
        %5575 = vmatprep.mubr.bf16.mxu0 0
        %5576 = vmatmul.mubr.bf16.gmra.mrb[0].mxu0 %v5504
        %v5577 = vpop.f32.mrb[0].mxu0
        %v5578 = vpop.f32.mrb[0].mxu0
        %v5579 = vpop.f32.mrb[0].mxu0
        %v5580 = vadd.f32 %v5487, %v5579
        %v5581 = vpop.f32.mrb[0].mxu0
        %5582 = vmatprep.mubr.bf16.mxu0 0
        %5583 = vmatmul.mubr.bf16.gmra.mrb[0].mxu0 %v5507
        %v5584 = vpop.f32.mrb[0].mxu0
        %v5585 = vpop.f32.mrb[0].mxu0
        %v5586 = vpop.f32.mrb[0].mxu0
        %v5587 = vpop.f32.mrb[0].mxu0
        %5588 = vmatprep.mubr.bf16.mxu0 0
        %5589 = vmatmul.mubr.bf16.gmra.mrb[0].mxu0 %v5510
        %v5590 = vpop.f32.mrb[0].mxu0
        %v5591 = vadd.f32 %v5487, %v5590
        %v5592 = vpop.f32.mrb[0].mxu0
        %v5593 = vpop.f32.mrb[0].mxu0
        %v5594 = vpop.f32.mrb[0].mxu0
        %5595 = vmatprep.mubr.bf16.mxu0 0
        %5596 = vmatmul.mubr.bf16.gmra.mrb[0].mxu0 %v5513
        %v5597 = vpop.f32.mrb[0].mxu0
        %v5598 = vpop.f32.mrb[0].mxu0
        %v5599 = vpop.f32.mrb[0].mxu0
        %v5600 = vadd.f32 %v5487, %v5599
        %v5601 = vpop.f32.mrb[0].mxu0
        %5602 = vmatprep.mubr.bf16.mxu0 0
        %5603 = vmatmul.mubr.bf16.gmra.mrb[0].mxu0 %v5516
        %v5604 = vpop.f32.mrb[0].mxu0
        %v5605 = vpop.f32.mrb[0].mxu0
        %v5606 = vpop.f32.mrb[0].mxu0
        %v5607 = vpop.f32.mrb[0].mxu0
        %5608 = vmatprep.mubr.bf16.mxu0 0
        %5609 = vmatmul.mubr.bf16.gmra.mrb[0].mxu0 %v5519
        %v5610 = vpop.f32.mrb[0].mxu0
        %v5611 = vadd.f32 %v5487, %v5610
        %v5612 = vpop.f32.mrb[0].mxu0
        %v5613 = vpop.f32.mrb[0].mxu0
        %v5614 = vpop.f32.mrb[0].mxu0
        %5615 = vmatprep.mubr.bf16.mxu0 0
        %5616 = vmatmul.mubr.bf16.gmra.mrb[0].mxu0 %v5522
        %v5617 = vpop.f32.mrb[0].mxu0
        %v5618 = vpop.f32.mrb[0].mxu0
        %v5619 = vpop.f32.mrb[0].mxu0
        %v5620 = vadd.f32 %v5487, %v5619
        %v5621 = vpop.f32.mrb[0].mxu0
        %5622 = vmatprep.mubr.bf16.mxu0 0
        %5623 = vmatmul.mubr.bf16.gmra.mrb[0].mxu0 %v5525
        %v5624 = vpop.f32.mrb[0].mxu0
        %v5625 = vpop.f32.mrb[0].mxu0
        %v5626 = vpop.f32.mrb[0].mxu0
        %v5627 = vpop.f32.mrb[0].mxu0
        %5628 = vmatprep.mubr.bf16.mxu0 0
        %5629 = vmatmul.mubr.bf16.gmra.mrb[0].mxu0 %v5528
        %v5630 = vpop.f32.mrb[0].mxu0
        %v5631 = vadd.f32 %v5487, %v5630
        %v5632 = vpop.f32.mrb[0].mxu0
        %v5633 = vpop.f32.mrb[0].mxu0
        %v5634 = vpop.f32.mrb[0].mxu0
        %5635 = vmatprep.mubr.bf16.mxu0 0
        %5636 = vmatmul.mubr.bf16.gmra.mrb[0].mxu0 %v5531
        %v5637 = vpop.f32.mrb[0].mxu0
        %v5638 = vpop.f32.mrb[0].mxu0
        %v5639 = vpop.f32.mrb[0].mxu0
        %v5640 = vadd.f32 %v5487, %v5639
        %v5641 = vpop.f32.mrb[0].mxu0
        %5642 = vmatprep.mubr.bf16.mxu0 0
        %5643 = vmatmul.mubr.bf16.gmra.mrb[0].mxu0 %v5534
        %v5644 = vpop.f32.mrb[0].mxu0
        %v5645 = vpop.f32.mrb[0].mxu0
        %v5646 = vpop.f32.mrb[0].mxu0
        %v5647 = vpop.f32.mrb[0].mxu0
        %5648 = vdwg.mxu0
        %v5649 = vmax.f32 %v5571, 0.0
        %v5650 = vmax.f32 %v5580, 0.0
        %v5651 = vmax.f32 %v5591, 0.0
        %v5652 = vmax.f32 %v5600, 0.0
        %v5653 = vmax.f32 %v5611, 0.0
        %v5654 = vmax.f32 %v5620, 0.0
        %v5655 = vmax.f32 %v5631, 0.0
        %v5656 = vmax.f32 %v5640, 0.0
        %v5657 = vld [vmem:[%s13] sm:$0x1]
        %v5658 = vpack.c.bf16 %v5649, %v5649
        %v5659 = vpack.c.bf16 %v5650, %v5650
        %v5660 = vpack.c.bf16 %v5651, %v5651
        %v5661 = vpack.c.bf16 %v5652, %v5652
        %v5662 = vpack.c.bf16 %v5653, %v5653
        %v5663 = vpack.c.bf16 %v5654, %v5654
        %v5664 = vpack.c.bf16 %v5655, %v5655
        %v5665 = vpack.c.bf16 %v5656, %v5656
        %v5666 = vld [vmem:[#allocation4] sm:$0x1]
        %5668 = vset.pattern.permute.xlu0 0
        %5669 = vperm.xlu0 %5668, %v5666
        %v5670 = vpop.permute.xlu0 %5669
        %v5672 = vlaneseq
        %v5673 = vshrl.u32 %v5672, 7
        %v5674 = vsub.s32 0, %v5673
        %v5675 = vrot.slane %v5670, %v5674
        %v5684 = vunpack.c.l.b16 %v5658
        %v5685 = vunpack.c.l.b16 %v5659
        %v5686 = vunpack.c.l.b16 %v5660
        %v5687 = vunpack.c.l.b16 %v5661
        %v5688 = vunpack.c.l.b16 %v5662
        %v5689 = vunpack.c.l.b16 %v5663
        %v5690 = vunpack.c.l.b16 %v5664
        %v5691 = vunpack.c.l.b16 %v5665
        %v5692 = vrot.slane %v5685, 7
        %v5693 = vsel %vm1924, %v5692, %v5684
        %v5694 = vrot.slane %v5686, 6
        %v5695 = vsel %vm1927, %v5694, %v5693
        %v5696 = vrot.slane %v5687, 5
        %v5697 = vsel %vm1930, %v5696, %v5695
        %v5698 = vrot.slane %v5688, 4
        %v5699 = vsel %vm1933, %v5698, %v5697
        %v5700 = vrot.slane %v5689, 3
        %v5701 = vsel %vm1936, %v5700, %v5699
        %v5702 = vrot.slane %v5690, 2
        %v5703 = vsel %vm1939, %v5702, %v5701
        %v5704 = vrot.slane %v5691, 1
        %v5705 = vsel %vm1942, %v5704, %v5703
        %v5706 = vpack.c.b16 %v5705, %v5705
        %v5708 = vsel %vm2211, %v5657, 0
        %v5711 = vsel %vm2211, %v5706, 0
        %5713 = vmatprep.subr.bf16.mxu0 0
        %5714 = vmatpush1.bf16.xpose.msra.mxu0 %v5711
        %5715 = vmatprep.subr.bf16.mxu0 0
        %5716 = vmatpush1.bf16.xpose.msra.mxu0 0
        %5717 = vmatprep.subr.bf16.mxu0 0
        %5718 = vmatpush1.bf16.xpose.msra.mxu0 0
        %5719 = vmatprep.subr.bf16.mxu0 0
        %5720 = vmatpush1.bf16.xpose.msra.mxu0 0
        %5721 = vmatprep.subr.bf16.mxu0 0
        %5722 = vmatpush1.bf16.xpose.msra.mxu0 0
        %5723 = vmatprep.subr.bf16.mxu0 0
        %5724 = vmatpush1.bf16.xpose.msra.mxu0 0
        %5725 = vmatprep.subr.bf16.mxu0 0
        %5726 = vmatpush1.bf16.xpose.msra.mxu0 0
        %5727 = vmatprep.subr.bf16.mxu0 0
        %5728 = vmatpush1.bf16.xpose.msra.mxu0 0
        %5729 = vmatprep.subr.bf16.mxu0 0
        %5730 = vmatpush1.bf16.xpose.msra.mxu0 0
        %5731 = vmatprep.subr.bf16.mxu0 0
        %5732 = vmatpush1.bf16.xpose.msra.mxu0 0
        %5733 = vmatprep.subr.bf16.mxu0 0
        %5734 = vmatpush1.bf16.xpose.msra.mxu0 0
        %5735 = vmatprep.subr.bf16.mxu0 0
        %5736 = vmatpush1.bf16.xpose.msra.mxu0 0
        %5737 = vmatprep.subr.bf16.mxu0 0
        %5738 = vmatpush1.bf16.xpose.msra.mxu0 0
        %5739 = vmatprep.subr.bf16.mxu0 0
        %5740 = vmatpush1.bf16.xpose.msra.mxu0 0
        %5741 = vmatprep.subr.bf16.mxu0 0
        %5742 = vmatpush1.bf16.xpose.msra.mxu0 0
        %5743 = vmatprep.subr.bf16.mxu0 0
        %5744 = vmatpush1.bf16.xpose.msra.mxu0 0
        %5745 = vmatprep.mubr.bf16.mxu0 0
        %5746 = vmatmul.mubr.bf16.gmra.mrb[0].mxu0 %v5708
        %v5747 = vpop.f32.mrb[0].mxu0
        %v5748 = vadd.f32 %v5675, %v5747
        %v5749 = vpop.f32.mrb[0].mxu0
        %v5750 = vpop.f32.mrb[0].mxu0
        %v5751 = vpop.f32.mrb[0].mxu0
        %5752 = vdwg.mxu0
        %v5753 = vsub.f32 0.0, %v5748
        %v5754 = vmul.f32 %v5753, 1.442695
        %v5755 = vpow.pop %v5754
        %v5756 = vadd.f32 %v5755, 1.0
        %v5757 = vrcp.pop %v5756
        %v5758 = vmul.f32 1.0, %v5757
        %vm5759 = vcmask 57344
        %5760 = vst.msk [vmem:[%s525] sm:$0x1] %vm5759, %v5758
        %s5761 = sand.u32 %s373, 1
        %s5762 = scalar_lea.sflag [#allocation6], %s5761
        %s5763 = sand.u32 %s373, 1
        %s5764 = scalar_lea.vmem [#allocation5], %s5763
        // Predicated region
        $region77: #{encoder_similarity.1} parent=75 // pred_check
          %p5765 = pneg %p383
        $region78: #{encoder_similarity.1} parent=75 // pred_check_branch
          %5767 = sbr.rel (%p5765) target = $region80
        $region79: #{encoder_similarity.1} parent=75 // pred_region
          %s5769 = ssub.s32 16, 16
          %5770 = vsyncadd %s5762, %s5769
          %s5771 = sadd.s32 %s41, %s42
          %s5772 = smul.addr %s5771, 16
          %s5773 = scalar_lea.hbm %s15, %s5772
          %s5775 = sshll.u32 %s5764, 4
          %s5776 = int_to_ptr.vmem [resolvable:$true] %s5775
          %5778 = dma.vmem_to_hbm [thread:$0]  %s5776, 16, %s5773, %s5762
        $region80: #{encoder_similarity.1} parent=75 // pred_fallthru
          _
      $region76: #{encoder_similarity.1} parent=5 // pred_fallthru
        _
      %p5779 = scmp.le.s32.totalorder 2, %s32
      // Predicated region
      $region81: #{encoder_similarity.1} parent=5 // pred_check
        %p5780 = pneg %p5779
      $region82: #{encoder_similarity.1} parent=5 // pred_check_branch
        %5782 = sbr.rel (%p5780) target = $region84
      $region83: #{encoder_similarity.1} parent=5 // pred_region
        %s5783 = ssub.s32 %s32, 2
        // Predicated region
        $region85: #{encoder_similarity.1} parent=83 // pred_check
          %p5784 = pneg %p389
        $region86: #{encoder_similarity.1} parent=83 // pred_check_branch
          %5786 = sbr.rel (%p5784) target = $region88
        $region87: #{encoder_similarity.1} parent=83 // pred_region
          %s5787 = sand.u32 %s374, 1
          %s5788 = scalar_lea.sflag [#allocation6], %s5787
          %s5789 = sand.u32 %s374, 1
          %s5790 = scalar_lea.vmem [#allocation5], %s5789
          %5791 = dma.done %s5788, 16
        $region88: #{encoder_similarity.1} parent=83 // pred_fallthru
          _
      $region84: #{encoder_similarity.1} parent=5 // pred_fallthru
        _
    $region6: #{encoder_similarity.1} parent=1 // loop_footer
      %s36 = sadd.s32 1, %s32
    $region7: #{encoder_similarity.1} parent=1 // loop_footer_branch
      %31 = sbr.rel target = $region3
    $region8: #{encoder_similarity.1} parent=1 // loop_exit
      _
    %5792 = vsyncpa [#allocation6], 1
    %s5793 = scalar_lea.sflag [#allocation6], 1
    %5794 = vsyncpa %s5793, 1

</llo_original>
